<compile_context>
chip_gen: v7x
topology: tpu7x:2x2x1
jax: 0.10.0
libtpu: 0.0.40
codegen_flags: <defaults>
</compile_context>

<pallas_src>
import math

import jax
import jax.numpy as jnp
import numpy as np
from jax import lax
from jax.experimental import pallas as pl
from jax.experimental.pallas import tpu as pltpu

EPS = 1e-5

# Gaussian color model matrix (fixed buffer in the PyTorch module).
GCM = ((0.06, 0.63, 0.27), (0.30, 0.04, -0.35), (0.34, -0.60, 0.17))


# ----------------------------------------------------------------------------
# Color invariants.  `recip(d)` supplies 1/d: exact division for the JAX
# reference, EUP approx-reciprocal (+1 Newton step) inside the kernel.
# ----------------------------------------------------------------------------
def _E_inv(E, Ex, Ey, El, Elx, Ely, Ell, Ellx, Elly, recip):
    del E, El, Ell, recip
    return Ex**2 + Ey**2 + Elx**2 + Ely**2 + Ellx**2 + Elly**2


def _W_inv(E, Ex, Ey, El, Elx, Ely, Ell, Ellx, Elly, recip):
    iE = recip(E + EPS)
    return ((Ex * iE) ** 2 + (Elx * iE) ** 2 + (Ellx * iE) ** 2
            + (Ey * iE) ** 2 + (Ely * iE) ** 2 + (Elly * iE) ** 2)


def _C_inv(E, Ex, Ey, El, Elx, Ely, Ell, Ellx, Elly, recip):
    iE2 = recip(E * E + EPS)
    Clx = (Elx * E - El * Ex) * iE2
    Cly = (Ely * E - El * Ey) * iE2
    Cllx = (Ellx * E - Ell * Ex) * iE2
    Clly = (Elly * E - Ell * Ey) * iE2
    return Clx**2 + Cly**2 + Cllx**2 + Clly**2


def _N_inv(E, Ex, Ey, El, Elx, Ely, Ell, Ellx, Elly, recip):
    iE2 = recip(E * E + EPS)
    iE3 = recip(E * E * E + EPS)
    Nlx = (Elx * E - El * Ex) * iE2
    Nly = (Ely * E - El * Ey) * iE2
    Nllx = (Ellx * E**2 - Ell * Ex * E - 2 * Elx * El * E + 2 * El**2 * Ex) * iE3
    Nlly = (Elly * E**2 - Ell * Ey * E - 2 * Ely * El * E + 2 * El**2 * Ey) * iE3
    return Nlx**2 + Nly**2 + Nllx**2 + Nlly**2


def _H_inv(E, Ex, Ey, El, Elx, Ely, Ell, Ellx, Elly, recip):
    iD = recip(El * El + Ell * Ell + EPS)
    Hx = (Ell * Elx - El * Ellx) * iD
    Hy = (Ell * Ely - El * Elly) * iD
    return Hx**2 + Hy**2


INV_FNS = {"E": _E_inv, "W": _W_inv, "C": _C_inv, "N": _N_inv, "H": _H_inv}


def _fast_recip(d):
    # EUP approx reciprocal + 1 Newton-Raphson step -> ~f32 accuracy; the
    # heavy lifting lands on the otherwise-idle EUP slot.
    r = pl.reciprocal(d, approx=True)
    return r * (2.0 - d * r)


# ----------------------------------------------------------------------------
# Gaussian basis filters.
#   2-D version (faithful to the PyTorch code) -> used only by the reference.
#   1-D factorization (g1, d1) -> used by the separable Pallas kernel:
#     g      = g1[i] * g1[j]
#     dg/dx  = d1[i] * g1[j]      (i = filter row / H axis)
#     dg/dy  = g1[i] * d1[j]      (j = filter col / W axis)
#   g1 is exactly symmetric and d1 exactly antisymmetric (d1[center] == 0),
#   which the kernel exploits to pair mirrored taps.
# ----------------------------------------------------------------------------
def gaussian_basis_filters(scale, kernel_size=3):
    std = 2.0 ** scale
    filter_size = int(math.ceil(kernel_size * std + 0.5))
    x = jnp.arange(-filter_size, filter_size + 1, dtype=jnp.float32)
    xx, yy = jnp.meshgrid(x, x, indexing="ij")
    g = jnp.exp(-((xx / std) ** 2) / 2) * jnp.exp(-((yy / std) ** 2) / 2)
    g = g / jnp.sum(g)
    dgdx = (-xx / (std**3 * 2 * math.pi)
            * jnp.exp(-((xx / std) ** 2) / 2) * jnp.exp(-((yy / std) ** 2) / 2))
    dgdx = dgdx / jnp.sum(jnp.abs(dgdx))
    dgdy = (-yy / (std**3 * 2 * math.pi)
            * jnp.exp(-((yy / std) ** 2) / 2) * jnp.exp(-((xx / std) ** 2) / 2))
    dgdy = dgdy / jnp.sum(jnp.abs(dgdy))
    return jnp.stack([g, dgdx, dgdy], axis=0)  # (3, ks, ks)


def gaussian_taps_1d(scale, kernel_size=3):
    std = 2.0 ** scale
    filter_size = int(math.ceil(kernel_size * std + 0.5))
    x = jnp.arange(-filter_size, filter_size + 1, dtype=jnp.float32)
    e = jnp.exp(-((x / std) ** 2) / 2)
    g1 = e / jnp.sum(e)
    d1 = -x / (std**3 * 2 * math.pi) * e
    d1 = d1 / jnp.sum(jnp.abs(d1))
    taps = jnp.stack([g1, d1], axis=0).astype(jnp.float32)  # (2, ks)
    return taps, 2 * filter_size + 1


def _cdiv(a, b):
    return (a + b - 1) // b


def _round_up(a, m):
    return _cdiv(a, m) * m


# ----------------------------------------------------------------------------
# Kernel 1: separable conv + invariant + log + per-band instance-norm partials.
# ----------------------------------------------------------------------------
def _make_ci_band_kernel(invariant, ks, band, wp, H, W, needs_mask):
    inv_fn = INV_FNS[invariant]
    half = ks // 2

    def kernel(taps_ref, x_ref, xlog_ref, stats_ref):
        # taps_ref : SMEM (2, ks)             -- row 0 = g1, row 1 = d1
        # x_ref    : VMEM (3, band+2p, wp+2p)  halo'd RGB band
        # xlog_ref : VMEM (band, wp)           un-normalized log response
        # stats_ref: VMEM (2, 128)             row 0 = sum, row 1 = sum of squares
        r = pl.program_id(1)

        # Hoist the 1-D taps: 2*ks scalar SMEM reads total (symmetry means we
        # only need the left half + the g center tap).
        g_t = [taps_ref[0, j] for j in range(half + 1)]
        d_t = [taps_ref[1, j] for j in range(half)]

        responses = []
        for (c0, c1, c2) in GCM:
            # Gaussian color model channel on the halo'd band.
            ch = c0 * x_ref[0] + c1 * x_ref[1] + c2 * x_ref[2]

            # Column pass (lane / W axis).  g1 symmetric, d1 antisymmetric with
            # zero center tap -> pair mirrored slices: ~half the multiplies.
            colg = g_t[half] * ch[:, half:half + wp]
            cold = None
            for j in range(half):
                a = ch[:, j:j + wp]
                b = ch[:, ks - 1 - j:ks - 1 - j + wp]
                colg = colg + g_t[j] * (a + b)
                t = d_t[j] * (a - b)
                cold = t if cold is None else cold + t
            if cold is None:            # unreachable for clamped scale; defensive
                cold = jnp.zeros_like(colg)

            # Row pass (sublane / H axis): g & dg/dx from colg; dg/dy from cold.
            fg = g_t[half] * colg[half:half + band, :]
            fdy = g_t[half] * cold[half:half + band, :]
            fdx = None
            for i in range(half):
                ga = colg[i:i + band, :]
                gb = colg[ks - 1 - i:ks - 1 - i + band, :]
                da = cold[i:i + band, :]
                db = cold[ks - 1 - i:ks - 1 - i + band, :]
                fg = fg + g_t[i] * (ga + gb)
                fdy = fdy + g_t[i] * (da + db)
                t = d_t[i] * (ga - gb)
                fdx = t if fdx is None else fdx + t
            if fdx is None:             # unreachable; defensive
                fdx = jnp.zeros_like(fg)
            responses += [fg, fdx, fdy]

        E, Ex, Ey, El, Elx, Ely, Ell, Ellx, Elly = responses
        inv = inv_fn(E, Ex, Ey, El, Elx, Ely, Ell, Ellx, Elly, recip=_fast_recip)
        xlog = jnp.log(inv + EPS)
        xlog_ref[...] = xlog

        # Per-(batch, band) partial stats for the instance norm.  Only mask out
        # the H/W alignment padding if there actually is any.
        if needs_mask:
            row = lax.broadcasted_iota(jnp.int32, (band, wp), 0) + r * band
            col = lax.broadcasted_iota(jnp.int32, (band, wp), 1)
            m = jnp.where((row < H) & (col < W), xlog, 0.0)
        else:
            m = xlog
        s = jnp.sum(m)
        ss = jnp.sum(m * m)
        sel = lax.broadcasted_iota(jnp.int32, (2, 128), 0)
        stats_ref[...] = jnp.where(sel == 0, s, ss)

    return kernel


# ----------------------------------------------------------------------------
# Kernel 2: cheap memory-bound normalization pass (aliased in-place).
# ----------------------------------------------------------------------------
def _norm_kernel(stats_ref, x_ref, o_ref):
    # stats_ref : SMEM (B, 2) -- [mean, rstd] per batch element
    b = pl.program_id(0)
    o_ref[...] = (x_ref[...] - stats_ref[b, 0]) * stats_ref[b, 1]


# ----------------------------------------------------------------------------
# Wrapper.
# ----------------------------------------------------------------------------
def ciconv2d(x, *, invariant="W", scale=0.0, kernel_size=3):
    """x: (B, 3, H, W) float32, NCHW. Returns (B, 1, H, W) float32."""
    assert invariant in INV_FNS, "invalid invariant"
    B, C, H, W = x.shape
    assert C == 3, "CIConv2d expects RGB input"

    # TODO(synk): `scale` is a trainable nn.Parameter in PyTorch; the filter
    # size depends on it, so it is treated as a static inference-time constant
    # here (clamped exactly like the module) and receives no gradient.
    scale = float(min(max(scale, -2.5), 2.5))
    taps, ks = gaussian_taps_1d(scale, kernel_size)
    pad = ks // 2

    # Lane-dense W (multiple of 128); row bands (multiple of 8, <= 256 rows),
    # shrunk until the per-step VMEM working set stays well under the smallest
    # (v5e, 16 MiB) default scoped VMEM limit.
    wp = _round_up(W, 128)
    h8 = _round_up(H, 8)

    def vmem_est(b_rows):
        bh_, wh_ = b_rows + 2 * pad, wp + 2 * pad
        return 4 * (2 * 3 * bh_ * wh_        # double-buffered input band
                    + 3 * bh_ * wh_          # GCM channel + slack
                    + 2 * bh_ * wp           # column-pass intermediates
                    + 9 * b_rows * wp        # filter responses
                    + 4 * b_rows * wp)       # double-buffered output + slack

    n_bands_target = _cdiv(h8, 256)
    band = _round_up(_cdiv(h8, n_bands_target), 8)
    while band > 8 and vmem_est(band) > 12 * 2**20:
        n_bands_target += 1
        band = _round_up(_cdiv(h8, n_bands_target), 8)
    hp = band * _cdiv(H, band)
    num_bands = hp // band
    bh, wh = band + 2 * pad, wp + 2 * pad
    needs_mask = (wp != W) or (hp != H)

    xf = x.astype(jnp.float32)
    x_padded = jnp.pad(xf, ((0, 0), (0, 0), (pad, pad + hp - H), (pad, pad + wp - W)))
    # Pre-gather halo'd row bands so the plain BlockSpec pipeline handles the
    # overlapping windows (only 2*pad rows per band are duplicated in HBM).
    x_bands = jnp.stack(
        [lax.slice_in_dim(x_padded, r * band, r * band + bh, axis=2)
         for r in range(num_bands)],
        axis=1)  # (B, num_bands, 3, bh, wh)

    kernel1 = _make_ci_band_kernel(invariant, ks, band, wp, H, W, needs_mask)
    xlog_pad, stats = pl.pallas_call(
        kernel1,
        out_shape=(jax.ShapeDtypeStruct((B, hp, wp), jnp.float32),
                   jax.ShapeDtypeStruct((B, num_bands, 2, 128), jnp.float32)),
        grid=(B, num_bands),
        in_specs=[
            pl.BlockSpec(memory_space=pltpu.MemorySpace.SMEM),   # 1-D filter taps
            pl.BlockSpec((None, None, 3, bh, wh), lambda b, r: (b, r, 0, 0, 0)),
        ],
        out_specs=(
            pl.BlockSpec((None, band, wp), lambda b, r: (b, r, 0)),
            pl.BlockSpec((None, None, 2, 128), lambda b, r: (b, r, 0, 0)),
        ),
        compiler_params=pltpu.CompilerParams(
            dimension_semantics=("parallel", "parallel"),
            vmem_limit_bytes=32 * 1024 * 1024),
    )(taps, x_bands)

    # Reduce the per-band partials to per-sample mean / rstd (tiny, in JAX).
    n = float(H * W)
    total = stats[:, :, 0, 0].sum(axis=1)
    total_sq = stats[:, :, 1, 0].sum(axis=1)
    mean = total / n
    var = jnp.maximum(total_sq / n - mean * mean, 0.0)   # biased var (InstanceNorm)
    rstd = lax.rsqrt(var + 1e-5)
    norm_stats = jnp.stack([mean, rstd], axis=1)         # (B, 2)

    normed = pl.pallas_call(
        _norm_kernel,
        out_shape=jax.ShapeDtypeStruct((B, hp, wp), jnp.float32),
        grid=(B, num_bands),
        in_specs=[
            pl.BlockSpec(memory_space=pltpu.MemorySpace.SMEM),
            pl.BlockSpec((None, band, wp), lambda b, r: (b, r, 0)),
        ],
        out_specs=pl.BlockSpec((None, band, wp), lambda b, r: (b, r, 0)),
        input_output_aliases={1: 0},   # normalize in place (xlog buffer reused)
        compiler_params=pltpu.CompilerParams(
            dimension_semantics=("parallel", "parallel")),
    )(norm_stats, xlog_pad)

    return normed[:, None, :H, :W]


# ----------------------------------------------------------------------------
# Pure-JAX reference (faithful to the PyTorch forward; correctness check only).
# ----------------------------------------------------------------------------
def ciconv2d_ref(x, *, invariant="W", scale=0.0, kernel_size=3):
    scale = float(min(max(scale, -2.5), 2.5))
    w = gaussian_basis_filters(scale, kernel_size)          # (3, ks, ks)
    ks = int(w.shape[-1])
    pad = ks // 2
    gcm = jnp.array(GCM, jnp.float32)
    e = jnp.einsum("ck,bkhw->bchw", gcm, x.astype(jnp.float32),
                   precision=lax.Precision.HIGHEST)
    w4 = w[:, None, :, :]                                    # (3,1,ks,ks) OIHW

    def conv1(img):
        return lax.conv_general_dilated(
            img, w4, (1, 1), [(pad, pad), (pad, pad)],
            dimension_numbers=("NCHW", "OIHW", "NCHW"),
            precision=lax.Precision.HIGHEST)

    E_out, El_out, Ell_out = (conv1(e[:, i:i + 1]) for i in range(3))
    E, Ex, Ey = (E_out[:, i:i + 1] for i in range(3))
    El, Elx, Ely = (El_out[:, i:i + 1] for i in range(3))
    Ell, Ellx, Elly = (Ell_out[:, i:i + 1] for i in range(3))
    inv = INV_FNS[invariant](E, Ex, Ey, El, Elx, Ely, Ell, Ellx, Elly,
                             recip=lambda d: 1.0 / d)
    xlog = jnp.log(inv + EPS)
    mean = xlog.mean(axis=(2, 3), keepdims=True)
    var = ((xlog - mean) ** 2).mean(axis=(2, 3), keepdims=True)
    return (xlog - mean) / jnp.sqrt(var + 1e-5)


if __name__ == "__main__":
    key = jax.random.PRNGKey(0)
    B, C, H, W = 2, 3, 16, 16
    x = jax.random.uniform(key, (B, C, H, W), dtype=jnp.float32)

    invariant = "W"
    scale = 0.0  # nn.Parameter initialized deterministically to 0.0

    ciconv_fn = jax.jit(lambda a: ciconv2d(a, invariant=invariant, scale=scale))
    out = jax.block_until_ready(ciconv_fn(x))
    ref = jax.block_until_ready(ciconv2d_ref(x, invariant=invariant, scale=scale))

    assert out.shape == (B, 1, H, W)
    np.testing.assert_allclose(np.asarray(out), np.asarray(ref), rtol=2e-3, atol=2e-3)

    print("KERNEL_OK")
</pallas_src>

<mosaic_0001>
module attributes {stable_mosaic.version = 11 : i64} {
  func.func @_norm_kernel(%arg0: i32, %arg1: i32, %arg2: memref<2x2xf32, #tpu.memory_space<smem>>, %arg3: memref<1x16x128xf32, #tpu.memory_space<vmem>>, %arg4: memref<1x16x128xf32, #tpu.memory_space<vmem>>) attributes {dimension_semantics = [#tpu.dimension_semantics<parallel>, #tpu.dimension_semantics<parallel>], iteration_bounds = array<i64: 2, 1>, scalar_prefetch = 0 : i64, scratch_operands = 0 : i64, tpu.core_type = #tpu.core_type<tc>, window_params = [{transform_indices = @transform_0, window_bounds = array<i64: 2, 2>}, {transform_indices = @transform_1, window_bounds = array<i64: 1, 16, 128>}, {transform_indices = @transform_2, window_bounds = array<i64: 1, 16, 128>}]} {
    %c0 = arith.constant 0 : index
    %c0_0 = arith.constant 0 : index
    %c0_1 = arith.constant 0 : index
    %0 = vector.load %arg3[%c0, %c0_0, %c0_1] : memref<1x16x128xf32, #tpu.memory_space<vmem>>, vector<1x16x128xf32>
    %1 = vector.shape_cast %0 : vector<1x16x128xf32> to vector<16x128xf32>
    %2 = arith.index_cast %arg0 : i32 to index
    %c0_2 = arith.constant 0 : index
    %3 = memref.load %arg2[%2, %c0_2] : memref<2x2xf32, #tpu.memory_space<smem>>
    %4 = vector.broadcast %3 : f32 to vector<16x128xf32>
    %5 = arith.subf %1, %4 : vector<16x128xf32>
    %6 = arith.index_cast %arg0 : i32 to index
    %c1 = arith.constant 1 : index
    %7 = memref.load %arg2[%6, %c1] : memref<2x2xf32, #tpu.memory_space<smem>>
    %8 = vector.broadcast %7 : f32 to vector<16x128xf32>
    %9 = arith.mulf %5, %8 : vector<16x128xf32>
    %c0_3 = arith.constant 0 : index
    %c0_4 = arith.constant 0 : index
    %c0_5 = arith.constant 0 : index
    %10 = vector.load %arg4[%c0_3, %c0_4, %c0_5] : memref<1x16x128xf32, #tpu.memory_space<vmem>>, vector<1x16x128xf32>
    %11 = vector.shape_cast %10 : vector<1x16x128xf32> to vector<16x128xf32>
    %12 = vector.shape_cast %9 : vector<16x128xf32> to vector<1x16x128xf32>
    tpu.vector_store %arg4[%c0_3, %c0_4, %c0_5], %12 {strides = array<i32>} : memref<1x16x128xf32, #tpu.memory_space<vmem>>, vector<1x16x128xf32>,
    return
  }
  func.func @transform_0(%arg0: i32, %arg1: i32) -> (i32, i32) {
    %c0_i32 = arith.constant 0 : i32
    %c0_i32_0 = arith.constant 0 : i32
    %c0_i32_1 = arith.constant 0 : i32
    return %c0_i32, %c0_i32_0 : i32, i32
  }
  func.func @transform_1(%arg0: i32, %arg1: i32) -> (i32, i32, i32) {
    %c0_i32 = arith.constant 0 : i32
    %c0_i32_0 = arith.constant 0 : i32
    return %arg0, %arg1, %c0_i32 : i32, i32, i32
  }
  func.func @transform_2(%arg0: i32, %arg1: i32) -> (i32, i32, i32) {
    %c0_i32 = arith.constant 0 : i32
    %c0_i32_0 = arith.constant 0 : i32
    return %arg0, %arg1, %c0_i32 : i32, i32, i32
  }
}

module attributes {stable_mosaic.version = 11 : i64} {
  func.func @kernel(%arg0: i32, %arg1: i32, %arg2: memref<2x9xf32, #tpu.memory_space<smem>>, %arg3: memref<1x1x3x24x136xf32, #tpu.memory_space<vmem>>, %arg4: memref<1x16x128xf32, #tpu.memory_space<vmem>>, %arg5: memref<1x1x2x128xf32, #tpu.memory_space<vmem>>) attributes {dimension_semantics = [#tpu.dimension_semantics<parallel>, #tpu.dimension_semantics<parallel>], iteration_bounds = array<i64: 2, 1>, scalar_prefetch = 0 : i64, scratch_operands = 0 : i64, tpu.core_type = #tpu.core_type<tc>, window_params = [{transform_indices = @transform_0, window_bounds = array<i64: 2, 9>}, {transform_indices = @transform_1, window_bounds = array<i64: 1, 1, 3, 24, 136>}, {transform_indices = @transform_2, window_bounds = array<i64: 1, 16, 128>}, {transform_indices = @transform_3, window_bounds = array<i64: 1, 1, 2, 128>}]} {
    %c0 = arith.constant 0 : index
    %c0_0 = arith.constant 0 : index
    %0 = memref.load %arg2[%c0, %c0_0] : memref<2x9xf32, #tpu.memory_space<smem>>
    %c0_1 = arith.constant 0 : index
    %c1 = arith.constant 1 : index
    %1 = memref.load %arg2[%c0_1, %c1] : memref<2x9xf32, #tpu.memory_space<smem>>
    %c0_2 = arith.constant 0 : index
    %c2 = arith.constant 2 : index
    %2 = memref.load %arg2[%c0_2, %c2] : memref<2x9xf32, #tpu.memory_space<smem>>
    %c0_3 = arith.constant 0 : index
    %c3 = arith.constant 3 : index
    %3 = memref.load %arg2[%c0_3, %c3] : memref<2x9xf32, #tpu.memory_space<smem>>
    %c0_4 = arith.constant 0 : index
    %c4 = arith.constant 4 : index
    %4 = memref.load %arg2[%c0_4, %c4] : memref<2x9xf32, #tpu.memory_space<smem>>
    %c1_5 = arith.constant 1 : index
    %c0_6 = arith.constant 0 : index
    %5 = memref.load %arg2[%c1_5, %c0_6] : memref<2x9xf32, #tpu.memory_space<smem>>
    %c1_7 = arith.constant 1 : index
    %c1_8 = arith.constant 1 : index
    %6 = memref.load %arg2[%c1_7, %c1_8] : memref<2x9xf32, #tpu.memory_space<smem>>
    %c1_9 = arith.constant 1 : index
    %c2_10 = arith.constant 2 : index
    %7 = memref.load %arg2[%c1_9, %c2_10] : memref<2x9xf32, #tpu.memory_space<smem>>
    %c1_11 = arith.constant 1 : index
    %c3_12 = arith.constant 3 : index
    %8 = memref.load %arg2[%c1_11, %c3_12] : memref<2x9xf32, #tpu.memory_space<smem>>
    %c0_13 = arith.constant 0 : index
    %c0_14 = arith.constant 0 : index
    %c0_15 = arith.constant 0 : index
    %c0_16 = arith.constant 0 : index
    %c0_17 = arith.constant 0 : index
    %9 = vector.load %arg3[%c0_13, %c0_14, %c0_15, %c0_16, %c0_17] : memref<1x1x3x24x136xf32, #tpu.memory_space<vmem>>, vector<1x1x1x24x136xf32>
    %10 = vector.shape_cast %9 : vector<1x1x1x24x136xf32> to vector<24x136xf32>
    %cst = arith.constant 6.000000e-02 : f32
    %11 = vector.broadcast %cst : f32 to vector<24x136xf32>
    %12 = arith.mulf %11, %10 : vector<24x136xf32>
    %c0_18 = arith.constant 0 : index
    %c0_19 = arith.constant 0 : index
    %c1_20 = arith.constant 1 : index
    %c0_21 = arith.constant 0 : index
    %c0_22 = arith.constant 0 : index
    %13 = vector.load %arg3[%c0_18, %c0_19, %c1_20, %c0_21, %c0_22] : memref<1x1x3x24x136xf32, #tpu.memory_space<vmem>>, vector<1x1x1x24x136xf32>
    %14 = vector.shape_cast %13 : vector<1x1x1x24x136xf32> to vector<24x136xf32>
    %cst_23 = arith.constant 6.300000e-01 : f32
    %15 = vector.broadcast %cst_23 : f32 to vector<24x136xf32>
    %16 = arith.mulf %15, %14 : vector<24x136xf32>
    %17 = arith.addf %12, %16 : vector<24x136xf32>
    %c0_24 = arith.constant 0 : index
    %c0_25 = arith.constant 0 : index
    %c2_26 = arith.constant 2 : index
    %c0_27 = arith.constant 0 : index
    %c0_28 = arith.constant 0 : index
    %18 = vector.load %arg3[%c0_24, %c0_25, %c2_26, %c0_27, %c0_28] : memref<1x1x3x24x136xf32, #tpu.memory_space<vmem>>, vector<1x1x1x24x136xf32>
    %19 = vector.shape_cast %18 : vector<1x1x1x24x136xf32> to vector<24x136xf32>
    %cst_29 = arith.constant 2.700000e-01 : f32
    %20 = vector.broadcast %cst_29 : f32 to vector<24x136xf32>
    %21 = arith.mulf %20, %19 : vector<24x136xf32>
    %22 = arith.addf %17, %21 : vector<24x136xf32>
    %23 = vector.extract_strided_slice %22 {offsets = [0, 4], sizes = [24, 128], strides = [1, 1]} : vector<24x136xf32> to vector<24x128xf32>
    %24 = vector.broadcast %4 : f32 to vector<24x128xf32>
    %25 = arith.mulf %24, %23 : vector<24x128xf32>
    %26 = vector.extract_strided_slice %22 {offsets = [0, 0], sizes = [24, 128], strides = [1, 1]} : vector<24x136xf32> to vector<24x128xf32>
    %27 = vector.extract_strided_slice %22 {offsets = [0, 8], sizes = [24, 128], strides = [1, 1]} : vector<24x136xf32> to vector<24x128xf32>
    %28 = arith.addf %26, %27 : vector<24x128xf32>
    %29 = vector.broadcast %0 : f32 to vector<24x128xf32>
    %30 = arith.mulf %29, %28 : vector<24x128xf32>
    %31 = arith.addf %25, %30 : vector<24x128xf32>
    %32 = arith.subf %26, %27 : vector<24x128xf32>
    %33 = vector.broadcast %5 : f32 to vector<24x128xf32>
    %34 = arith.mulf %33, %32 : vector<24x128xf32>
    %35 = vector.extract_strided_slice %22 {offsets = [0, 1], sizes = [24, 128], strides = [1, 1]} : vector<24x136xf32> to vector<24x128xf32>
    %36 = vector.extract_strided_slice %22 {offsets = [0, 7], sizes = [24, 128], strides = [1, 1]} : vector<24x136xf32> to vector<24x128xf32>
    %37 = arith.addf %35, %36 : vector<24x128xf32>
    %38 = vector.broadcast %1 : f32 to vector<24x128xf32>
    %39 = arith.mulf %38, %37 : vector<24x128xf32>
    %40 = arith.addf %31, %39 : vector<24x128xf32>
    %41 = arith.subf %35, %36 : vector<24x128xf32>
    %42 = vector.broadcast %6 : f32 to vector<24x128xf32>
    %43 = arith.mulf %42, %41 : vector<24x128xf32>
    %44 = arith.addf %34, %43 : vector<24x128xf32>
    %45 = vector.extract_strided_slice %22 {offsets = [0, 2], sizes = [24, 128], strides = [1, 1]} : vector<24x136xf32> to vector<24x128xf32>
    %46 = vector.extract_strided_slice %22 {offsets = [0, 6], sizes = [24, 128], strides = [1, 1]} : vector<24x136xf32> to vector<24x128xf32>
    %47 = arith.addf %45, %46 : vector<24x128xf32>
    %48 = vector.broadcast %2 : f32 to vector<24x128xf32>
    %49 = arith.mulf %48, %47 : vector<24x128xf32>
    %50 = arith.addf %40, %49 : vector<24x128xf32>
    %51 = arith.subf %45, %46 : vector<24x128xf32>
    %52 = vector.broadcast %7 : f32 to vector<24x128xf32>
    %53 = arith.mulf %52, %51 : vector<24x128xf32>
    %54 = arith.addf %44, %53 : vector<24x128xf32>
    %55 = vector.extract_strided_slice %22 {offsets = [0, 3], sizes = [24, 128], strides = [1, 1]} : vector<24x136xf32> to vector<24x128xf32>
    %56 = vector.extract_strided_slice %22 {offsets = [0, 5], sizes = [24, 128], strides = [1, 1]} : vector<24x136xf32> to vector<24x128xf32>
    %57 = arith.addf %55, %56 : vector<24x128xf32>
    %58 = vector.broadcast %3 : f32 to vector<24x128xf32>
    %59 = arith.mulf %58, %57 : vector<24x128xf32>
    %60 = arith.addf %50, %59 : vector<24x128xf32>
    %61 = arith.subf %55, %56 : vector<24x128xf32>
    %62 = vector.broadcast %8 : f32 to vector<24x128xf32>
    %63 = arith.mulf %62, %61 : vector<24x128xf32>
    %64 = arith.addf %54, %63 : vector<24x128xf32>
    %65 = vector.extract_strided_slice %60 {offsets = [4, 0], sizes = [16, 128], strides = [1, 1]} : vector<24x128xf32> to vector<16x128xf32>
    %66 = vector.broadcast %4 : f32 to vector<16x128xf32>
    %67 = arith.mulf %66, %65 : vector<16x128xf32>
    %68 = vector.extract_strided_slice %64 {offsets = [4, 0], sizes = [16, 128], strides = [1, 1]} : vector<24x128xf32> to vector<16x128xf32>
    %69 = vector.broadcast %4 : f32 to vector<16x128xf32>
    %70 = arith.mulf %69, %68 : vector<16x128xf32>
    %71 = vector.extract_strided_slice %60 {offsets = [0, 0], sizes = [16, 128], strides = [1, 1]} : vector<24x128xf32> to vector<16x128xf32>
    %72 = vector.extract_strided_slice %60 {offsets = [8, 0], sizes = [16, 128], strides = [1, 1]} : vector<24x128xf32> to vector<16x128xf32>
    %73 = vector.extract_strided_slice %64 {offsets = [0, 0], sizes = [16, 128], strides = [1, 1]} : vector<24x128xf32> to vector<16x128xf32>
    %74 = vector.extract_strided_slice %64 {offsets = [8, 0], sizes = [16, 128], strides = [1, 1]} : vector<24x128xf32> to vector<16x128xf32>
    %75 = arith.addf %71, %72 : vector<16x128xf32>
    %76 = vector.broadcast %0 : f32 to vector<16x128xf32>
    %77 = arith.mulf %76, %75 : vector<16x128xf32>
    %78 = arith.addf %67, %77 : vector<16x128xf32>
    %79 = arith.addf %73, %74 : vector<16x128xf32>
    %80 = vector.broadcast %0 : f32 to vector<16x128xf32>
    %81 = arith.mulf %80, %79 : vector<16x128xf32>
    %82 = arith.addf %70, %81 : vector<16x128xf32>
    %83 = arith.subf %71, %72 : vector<16x128xf32>
    %84 = vector.broadcast %5 : f32 to vector<16x128xf32>
    %85 = arith.mulf %84, %83 : vector<16x128xf32>
    %86 = vector.extract_strided_slice %60 {offsets = [1, 0], sizes = [16, 128], strides = [1, 1]} : vector<24x128xf32> to vector<16x128xf32>
    %87 = vector.extract_strided_slice %60 {offsets = [7, 0], sizes = [16, 128], strides = [1, 1]} : vector<24x128xf32> to vector<16x128xf32>
    %88 = vector.extract_strided_slice %64 {offsets = [1, 0], sizes = [16, 128], strides = [1, 1]} : vector<24x128xf32> to vector<16x128xf32>
    %89 = vector.extract_strided_slice %64 {offsets = [7, 0], sizes = [16, 128], strides = [1, 1]} : vector<24x128xf32> to vector<16x128xf32>
    %90 = arith.addf %86, %87 : vector<16x128xf32>
    %91 = vector.broadcast %1 : f32 to vector<16x128xf32>
    %92 = arith.mulf %91, %90 : vector<16x128xf32>
    %93 = arith.addf %78, %92 : vector<16x128xf32>
    %94 = arith.addf %88, %89 : vector<16x128xf32>
    %95 = vector.broadcast %1 : f32 to vector<16x128xf32>
    %96 = arith.mulf %95, %94 : vector<16x128xf32>
    %97 = arith.addf %82, %96 : vector<16x128xf32>
    %98 = arith.subf %86, %87 : vector<16x128xf32>
    %99 = vector.broadcast %6 : f32 to vector<16x128xf32>
    %100 = arith.mulf %99, %98 : vector<16x128xf32>
    %101 = arith.addf %85, %100 : vector<16x128xf32>
    %102 = vector.extract_strided_slice %60 {offsets = [2, 0], sizes = [16, 128], strides = [1, 1]} : vector<24x128xf32> to vector<16x128xf32>
    %103 = vector.extract_strided_slice %60 {offsets = [6, 0], sizes = [16, 128], strides = [1, 1]} : vector<24x128xf32> to vector<16x128xf32>
    %104 = vector.extract_strided_slice %64 {offsets = [2, 0], sizes = [16, 128], strides = [1, 1]} : vector<24x128xf32> to vector<16x128xf32>
    %105 = vector.extract_strided_slice %64 {offsets = [6, 0], sizes = [16, 128], strides = [1, 1]} : vector<24x128xf32> to vector<16x128xf32>
    %106 = arith.addf %102, %103 : vector<16x128xf32>
    %107 = vector.broadcast %2 : f32 to vector<16x128xf32>
    %108 = arith.mulf %107, %106 : vector<16x128xf32>
    %109 = arith.addf %93, %108 : vector<16x128xf32>
    %110 = arith.addf %104, %105 : vector<16x128xf32>
    %111 = vector.broadcast %2 : f32 to vector<16x128xf32>
    %112 = arith.mulf %111, %110 : vector<16x128xf32>
    %113 = arith.addf %97, %112 : vector<16x128xf32>
    %114 = arith.subf %102, %103 : vector<16x128xf32>
    %115 = vector.broadcast %7 : f32 to vector<16x128xf32>
    %116 = arith.mulf %115, %114 : vector<16x128xf32>
    %117 = arith.addf %101, %116 : vector<16x128xf32>
    %118 = vector.extract_strided_slice %60 {offsets = [3, 0], sizes = [16, 128], strides = [1, 1]} : vector<24x128xf32> to vector<16x128xf32>
    %119 = vector.extract_strided_slice %60 {offsets = [5, 0], sizes = [16, 128], strides = [1, 1]} : vector<24x128xf32> to vector<16x128xf32>
    %120 = vector.extract_strided_slice %64 {offsets = [3, 0], sizes = [16, 128], strides = [1, 1]} : vector<24x128xf32> to vector<16x128xf32>
    %121 = vector.extract_strided_slice %64 {offsets = [5, 0], sizes = [16, 128], strides = [1, 1]} : vector<24x128xf32> to vector<16x128xf32>
    %122 = arith.addf %118, %119 : vector<16x128xf32>
    %123 = vector.broadcast %3 : f32 to vector<16x128xf32>
    %124 = arith.mulf %123, %122 : vector<16x128xf32>
    %125 = arith.addf %109, %124 : vector<16x128xf32>
    %126 = arith.addf %120, %121 : vector<16x128xf32>
    %127 = vector.broadcast %3 : f32 to vector<16x128xf32>
    %128 = arith.mulf %127, %126 : vector<16x128xf32>
    %129 = arith.addf %113, %128 : vector<16x128xf32>
    %130 = arith.subf %118, %119 : vector<16x128xf32>
    %131 = vector.broadcast %8 : f32 to vector<16x128xf32>
    %132 = arith.mulf %131, %130 : vector<16x128xf32>
    %133 = arith.addf %117, %132 : vector<16x128xf32>
    %c0_30 = arith.constant 0 : index
    %c0_31 = arith.constant 0 : index
    %c0_32 = arith.constant 0 : index
    %c0_33 = arith.constant 0 : index
    %c0_34 = arith.constant 0 : index
    %134 = vector.load %arg3[%c0_30, %c0_31, %c0_32, %c0_33, %c0_34] : memref<1x1x3x24x136xf32, #tpu.memory_space<vmem>>, vector<1x1x1x24x136xf32>
    %135 = vector.shape_cast %134 : vector<1x1x1x24x136xf32> to vector<24x136xf32>
    %cst_35 = arith.constant 3.000000e-01 : f32
    %136 = vector.broadcast %cst_35 : f32 to vector<24x136xf32>
    %137 = arith.mulf %136, %135 : vector<24x136xf32>
    %c0_36 = arith.constant 0 : index
    %c0_37 = arith.constant 0 : index
    %c1_38 = arith.constant 1 : index
    %c0_39 = arith.constant 0 : index
    %c0_40 = arith.constant 0 : index
    %138 = vector.load %arg3[%c0_36, %c0_37, %c1_38, %c0_39, %c0_40] : memref<1x1x3x24x136xf32, #tpu.memory_space<vmem>>, vector<1x1x1x24x136xf32>
    %139 = vector.shape_cast %138 : vector<1x1x1x24x136xf32> to vector<24x136xf32>
    %cst_41 = arith.constant 4.000000e-02 : f32
    %140 = vector.broadcast %cst_41 : f32 to vector<24x136xf32>
    %141 = arith.mulf %140, %139 : vector<24x136xf32>
    %142 = arith.addf %137, %141 : vector<24x136xf32>
    %c0_42 = arith.constant 0 : index
    %c0_43 = arith.constant 0 : index
    %c2_44 = arith.constant 2 : index
    %c0_45 = arith.constant 0 : index
    %c0_46 = arith.constant 0 : index
    %143 = vector.load %arg3[%c0_42, %c0_43, %c2_44, %c0_45, %c0_46] : memref<1x1x3x24x136xf32, #tpu.memory_space<vmem>>, vector<1x1x1x24x136xf32>
    %144 = vector.shape_cast %143 : vector<1x1x1x24x136xf32> to vector<24x136xf32>
    %cst_47 = arith.constant -3.500000e-01 : f32
    %145 = vector.broadcast %cst_47 : f32 to vector<24x136xf32>
    %146 = arith.mulf %145, %144 : vector<24x136xf32>
    %147 = arith.addf %142, %146 : vector<24x136xf32>
    %148 = vector.extract_strided_slice %147 {offsets = [0, 4], sizes = [24, 128], strides = [1, 1]} : vector<24x136xf32> to vector<24x128xf32>
    %149 = vector.broadcast %4 : f32 to vector<24x128xf32>
    %150 = arith.mulf %149, %148 : vector<24x128xf32>
    %151 = vector.extract_strided_slice %147 {offsets = [0, 0], sizes = [24, 128], strides = [1, 1]} : vector<24x136xf32> to vector<24x128xf32>
    %152 = vector.extract_strided_slice %147 {offsets = [0, 8], sizes = [24, 128], strides = [1, 1]} : vector<24x136xf32> to vector<24x128xf32>
    %153 = arith.addf %151, %152 : vector<24x128xf32>
    %154 = vector.broadcast %0 : f32 to vector<24x128xf32>
    %155 = arith.mulf %154, %153 : vector<24x128xf32>
    %156 = arith.addf %150, %155 : vector<24x128xf32>
    %157 = arith.subf %151, %152 : vector<24x128xf32>
    %158 = vector.broadcast %5 : f32 to vector<24x128xf32>
    %159 = arith.mulf %158, %157 : vector<24x128xf32>
    %160 = vector.extract_strided_slice %147 {offsets = [0, 1], sizes = [24, 128], strides = [1, 1]} : vector<24x136xf32> to vector<24x128xf32>
    %161 = vector.extract_strided_slice %147 {offsets = [0, 7], sizes = [24, 128], strides = [1, 1]} : vector<24x136xf32> to vector<24x128xf32>
    %162 = arith.addf %160, %161 : vector<24x128xf32>
    %163 = vector.broadcast %1 : f32 to vector<24x128xf32>
    %164 = arith.mulf %163, %162 : vector<24x128xf32>
    %165 = arith.addf %156, %164 : vector<24x128xf32>
    %166 = arith.subf %160, %161 : vector<24x128xf32>
    %167 = vector.broadcast %6 : f32 to vector<24x128xf32>
    %168 = arith.mulf %167, %166 : vector<24x128xf32>
    %169 = arith.addf %159, %168 : vector<24x128xf32>
    %170 = vector.extract_strided_slice %147 {offsets = [0, 2], sizes = [24, 128], strides = [1, 1]} : vector<24x136xf32> to vector<24x128xf32>
    %171 = vector.extract_strided_slice %147 {offsets = [0, 6], sizes = [24, 128], strides = [1, 1]} : vector<24x136xf32> to vector<24x128xf32>
    %172 = arith.addf %170, %171 : vector<24x128xf32>
    %173 = vector.broadcast %2 : f32 to vector<24x128xf32>
    %174 = arith.mulf %173, %172 : vector<24x128xf32>
    %175 = arith.addf %165, %174 : vector<24x128xf32>
    %176 = arith.subf %170, %171 : vector<24x128xf32>
    %177 = vector.broadcast %7 : f32 to vector<24x128xf32>
    %178 = arith.mulf %177, %176 : vector<24x128xf32>
    %179 = arith.addf %169, %178 : vector<24x128xf32>
    %180 = vector.extract_strided_slice %147 {offsets = [0, 3], sizes = [24, 128], strides = [1, 1]} : vector<24x136xf32> to vector<24x128xf32>
    %181 = vector.extract_strided_slice %147 {offsets = [0, 5], sizes = [24, 128], strides = [1, 1]} : vector<24x136xf32> to vector<24x128xf32>
    %182 = arith.addf %180, %181 : vector<24x128xf32>
    %183 = vector.broadcast %3 : f32 to vector<24x128xf32>
    %184 = arith.mulf %183, %182 : vector<24x128xf32>
    %185 = arith.addf %175, %184 : vector<24x128xf32>
    %186 = arith.subf %180, %181 : vector<24x128xf32>
    %187 = vector.broadcast %8 : f32 to vector<24x128xf32>
    %188 = arith.mulf %187, %186 : vector<24x128xf32>
    %189 = arith.addf %179, %188 : vector<24x128xf32>
    %190 = vector.extract_strided_slice %189 {offsets = [4, 0], sizes = [16, 128], strides = [1, 1]} : vector<24x128xf32> to vector<16x128xf32>
    %191 = vector.broadcast %4 : f32 to vector<16x128xf32>
    %192 = arith.mulf %191, %190 : vector<16x128xf32>
    %193 = vector.extract_strided_slice %185 {offsets = [0, 0], sizes = [16, 128], strides = [1, 1]} : vector<24x128xf32> to vector<16x128xf32>
    %194 = vector.extract_strided_slice %185 {offsets = [8, 0], sizes = [16, 128], strides = [1, 1]} : vector<24x128xf32> to vector<16x128xf32>
    %195 = vector.extract_strided_slice %189 {offsets = [0, 0], sizes = [16, 128], strides = [1, 1]} : vector<24x128xf32> to vector<16x128xf32>
    %196 = vector.extract_strided_slice %189 {offsets = [8, 0], sizes = [16, 128], strides = [1, 1]} : vector<24x128xf32> to vector<16x128xf32>
    %197 = arith.addf %195, %196 : vector<16x128xf32>
    %198 = vector.broadcast %0 : f32 to vector<16x128xf32>
    %199 = arith.mulf %198, %197 : vector<16x128xf32>
    %200 = arith.addf %192, %199 : vector<16x128xf32>
    %201 = arith.subf %193, %194 : vector<16x128xf32>
    %202 = vector.broadcast %5 : f32 to vector<16x128xf32>
    %203 = arith.mulf %202, %201 : vector<16x128xf32>
    %204 = vector.extract_strided_slice %185 {offsets = [1, 0], sizes = [16, 128], strides = [1, 1]} : vector<24x128xf32> to vector<16x128xf32>
    %205 = vector.extract_strided_slice %185 {offsets = [7, 0], sizes = [16, 128], strides = [1, 1]} : vector<24x128xf32> to vector<16x128xf32>
    %206 = vector.extract_strided_slice %189 {offsets = [1, 0], sizes = [16, 128], strides = [1, 1]} : vector<24x128xf32> to vector<16x128xf32>
    %207 = vector.extract_strided_slice %189 {offsets = [7, 0], sizes = [16, 128], strides = [1, 1]} : vector<24x128xf32> to vector<16x128xf32>
    %208 = arith.addf %206, %207 : vector<16x128xf32>
    %209 = vector.broadcast %1 : f32 to vector<16x128xf32>
    %210 = arith.mulf %209, %208 : vector<16x128xf32>
    %211 = arith.addf %200, %210 : vector<16x128xf32>
    %212 = arith.subf %204, %205 : vector<16x128xf32>
    %213 = vector.broadcast %6 : f32 to vector<16x128xf32>
    %214 = arith.mulf %213, %212 : vector<16x128xf32>
    %215 = arith.addf %203, %214 : vector<16x128xf32>
    %216 = vector.extract_strided_slice %185 {offsets = [2, 0], sizes = [16, 128], strides = [1, 1]} : vector<24x128xf32> to vector<16x128xf32>
    %217 = vector.extract_strided_slice %185 {offsets = [6, 0], sizes = [16, 128], strides = [1, 1]} : vector<24x128xf32> to vector<16x128xf32>
    %218 = vector.extract_strided_slice %189 {offsets = [2, 0], sizes = [16, 128], strides = [1, 1]} : vector<24x128xf32> to vector<16x128xf32>
    %219 = vector.extract_strided_slice %189 {offsets = [6, 0], sizes = [16, 128], strides = [1, 1]} : vector<24x128xf32> to vector<16x128xf32>
    %220 = arith.addf %218, %219 : vector<16x128xf32>
    %221 = vector.broadcast %2 : f32 to vector<16x128xf32>
    %222 = arith.mulf %221, %220 : vector<16x128xf32>
    %223 = arith.addf %211, %222 : vector<16x128xf32>
    %224 = arith.subf %216, %217 : vector<16x128xf32>
    %225 = vector.broadcast %7 : f32 to vector<16x128xf32>
    %226 = arith.mulf %225, %224 : vector<16x128xf32>
    %227 = arith.addf %215, %226 : vector<16x128xf32>
    %228 = vector.extract_strided_slice %185 {offsets = [3, 0], sizes = [16, 128], strides = [1, 1]} : vector<24x128xf32> to vector<16x128xf32>
    %229 = vector.extract_strided_slice %185 {offsets = [5, 0], sizes = [16, 128], strides = [1, 1]} : vector<24x128xf32> to vector<16x128xf32>
    %230 = vector.extract_strided_slice %189 {offsets = [3, 0], sizes = [16, 128], strides = [1, 1]} : vector<24x128xf32> to vector<16x128xf32>
    %231 = vector.extract_strided_slice %189 {offsets = [5, 0], sizes = [16, 128], strides = [1, 1]} : vector<24x128xf32> to vector<16x128xf32>
    %232 = arith.addf %230, %231 : vector<16x128xf32>
    %233 = vector.broadcast %3 : f32 to vector<16x128xf32>
    %234 = arith.mulf %233, %232 : vector<16x128xf32>
    %235 = arith.addf %223, %234 : vector<16x128xf32>
    %236 = arith.subf %228, %229 : vector<16x128xf32>
    %237 = vector.broadcast %8 : f32 to vector<16x128xf32>
    %238 = arith.mulf %237, %236 : vector<16x128xf32>
    %239 = arith.addf %227, %238 : vector<16x128xf32>
    %c0_48 = arith.constant 0 : index
    %c0_49 = arith.constant 0 : index
    %c0_50 = arith.constant 0 : index
    %c0_51 = arith.constant 0 : index
    %c0_52 = arith.constant 0 : index
    %240 = vector.load %arg3[%c0_48, %c0_49, %c0_50, %c0_51, %c0_52] : memref<1x1x3x24x136xf32, #tpu.memory_space<vmem>>, vector<1x1x1x24x136xf32>
    %241 = vector.shape_cast %240 : vector<1x1x1x24x136xf32> to vector<24x136xf32>
    %cst_53 = arith.constant 3.400000e-01 : f32
    %242 = vector.broadcast %cst_53 : f32 to vector<24x136xf32>
    %243 = arith.mulf %242, %241 : vector<24x136xf32>
    %c0_54 = arith.constant 0 : index
    %c0_55 = arith.constant 0 : index
    %c1_56 = arith.constant 1 : index
    %c0_57 = arith.constant 0 : index
    %c0_58 = arith.constant 0 : index
    %244 = vector.load %arg3[%c0_54, %c0_55, %c1_56, %c0_57, %c0_58] : memref<1x1x3x24x136xf32, #tpu.memory_space<vmem>>, vector<1x1x1x24x136xf32>
    %245 = vector.shape_cast %244 : vector<1x1x1x24x136xf32> to vector<24x136xf32>
    %cst_59 = arith.constant -6.000000e-01 : f32
    %246 = vector.broadcast %cst_59 : f32 to vector<24x136xf32>
    %247 = arith.mulf %246, %245 : vector<24x136xf32>
    %248 = arith.addf %243, %247 : vector<24x136xf32>
    %c0_60 = arith.constant 0 : index
    %c0_61 = arith.constant 0 : index
    %c2_62 = arith.constant 2 : index
    %c0_63 = arith.constant 0 : index
    %c0_64 = arith.constant 0 : index
    %249 = vector.load %arg3[%c0_60, %c0_61, %c2_62, %c0_63, %c0_64] : memref<1x1x3x24x136xf32, #tpu.memory_space<vmem>>, vector<1x1x1x24x136xf32>
    %250 = vector.shape_cast %249 : vector<1x1x1x24x136xf32> to vector<24x136xf32>
    %cst_65 = arith.constant 1.700000e-01 : f32
    %251 = vector.broadcast %cst_65 : f32 to vector<24x136xf32>
    %252 = arith.mulf %251, %250 : vector<24x136xf32>
    %253 = arith.addf %248, %252 : vector<24x136xf32>
    %254 = vector.extract_strided_slice %253 {offsets = [0, 4], sizes = [24, 128], strides = [1, 1]} : vector<24x136xf32> to vector<24x128xf32>
    %255 = vector.broadcast %4 : f32 to vector<24x128xf32>
    %256 = arith.mulf %255, %254 : vector<24x128xf32>
    %257 = vector.extract_strided_slice %253 {offsets = [0, 0], sizes = [24, 128], strides = [1, 1]} : vector<24x136xf32> to vector<24x128xf32>
    %258 = vector.extract_strided_slice %253 {offsets = [0, 8], sizes = [24, 128], strides = [1, 1]} : vector<24x136xf32> to vector<24x128xf32>
    %259 = arith.addf %257, %258 : vector<24x128xf32>
    %260 = vector.broadcast %0 : f32 to vector<24x128xf32>
    %261 = arith.mulf %260, %259 : vector<24x128xf32>
    %262 = arith.addf %256, %261 : vector<24x128xf32>
    %263 = arith.subf %257, %258 : vector<24x128xf32>
    %264 = vector.broadcast %5 : f32 to vector<24x128xf32>
    %265 = arith.mulf %264, %263 : vector<24x128xf32>
    %266 = vector.extract_strided_slice %253 {offsets = [0, 1], sizes = [24, 128], strides = [1, 1]} : vector<24x136xf32> to vector<24x128xf32>
    %267 = vector.extract_strided_slice %253 {offsets = [0, 7], sizes = [24, 128], strides = [1, 1]} : vector<24x136xf32> to vector<24x128xf32>
    %268 = arith.addf %266, %267 : vector<24x128xf32>
    %269 = vector.broadcast %1 : f32 to vector<24x128xf32>
    %270 = arith.mulf %269, %268 : vector<24x128xf32>
    %271 = arith.addf %262, %270 : vector<24x128xf32>
    %272 = arith.subf %266, %267 : vector<24x128xf32>
    %273 = vector.broadcast %6 : f32 to vector<24x128xf32>
    %274 = arith.mulf %273, %272 : vector<24x128xf32>
    %275 = arith.addf %265, %274 : vector<24x128xf32>
    %276 = vector.extract_strided_slice %253 {offsets = [0, 2], sizes = [24, 128], strides = [1, 1]} : vector<24x136xf32> to vector<24x128xf32>
    %277 = vector.extract_strided_slice %253 {offsets = [0, 6], sizes = [24, 128], strides = [1, 1]} : vector<24x136xf32> to vector<24x128xf32>
    %278 = arith.addf %276, %277 : vector<24x128xf32>
    %279 = vector.broadcast %2 : f32 to vector<24x128xf32>
    %280 = arith.mulf %279, %278 : vector<24x128xf32>
    %281 = arith.addf %271, %280 : vector<24x128xf32>
    %282 = arith.subf %276, %277 : vector<24x128xf32>
    %283 = vector.broadcast %7 : f32 to vector<24x128xf32>
    %284 = arith.mulf %283, %282 : vector<24x128xf32>
    %285 = arith.addf %275, %284 : vector<24x128xf32>
    %286 = vector.extract_strided_slice %253 {offsets = [0, 3], sizes = [24, 128], strides = [1, 1]} : vector<24x136xf32> to vector<24x128xf32>
    %287 = vector.extract_strided_slice %253 {offsets = [0, 5], sizes = [24, 128], strides = [1, 1]} : vector<24x136xf32> to vector<24x128xf32>
    %288 = arith.addf %286, %287 : vector<24x128xf32>
    %289 = vector.broadcast %3 : f32 to vector<24x128xf32>
    %290 = arith.mulf %289, %288 : vector<24x128xf32>
    %291 = arith.addf %281, %290 : vector<24x128xf32>
    %292 = arith.subf %286, %287 : vector<24x128xf32>
    %293 = vector.broadcast %8 : f32 to vector<24x128xf32>
    %294 = arith.mulf %293, %292 : vector<24x128xf32>
    %295 = arith.addf %285, %294 : vector<24x128xf32>
    %296 = vector.extract_strided_slice %295 {offsets = [4, 0], sizes = [16, 128], strides = [1, 1]} : vector<24x128xf32> to vector<16x128xf32>
    %297 = vector.broadcast %4 : f32 to vector<16x128xf32>
    %298 = arith.mulf %297, %296 : vector<16x128xf32>
    %299 = vector.extract_strided_slice %291 {offsets = [0, 0], sizes = [16, 128], strides = [1, 1]} : vector<24x128xf32> to vector<16x128xf32>
    %300 = vector.extract_strided_slice %291 {offsets = [8, 0], sizes = [16, 128], strides = [1, 1]} : vector<24x128xf32> to vector<16x128xf32>
    %301 = vector.extract_strided_slice %295 {offsets = [0, 0], sizes = [16, 128], strides = [1, 1]} : vector<24x128xf32> to vector<16x128xf32>
    %302 = vector.extract_strided_slice %295 {offsets = [8, 0], sizes = [16, 128], strides = [1, 1]} : vector<24x128xf32> to vector<16x128xf32>
    %303 = arith.addf %301, %302 : vector<16x128xf32>
    %304 = vector.broadcast %0 : f32 to vector<16x128xf32>
    %305 = arith.mulf %304, %303 : vector<16x128xf32>
    %306 = arith.addf %298, %305 : vector<16x128xf32>
    %307 = arith.subf %299, %300 : vector<16x128xf32>
    %308 = vector.broadcast %5 : f32 to vector<16x128xf32>
    %309 = arith.mulf %308, %307 : vector<16x128xf32>
    %310 = vector.extract_strided_slice %291 {offsets = [1, 0], sizes = [16, 128], strides = [1, 1]} : vector<24x128xf32> to vector<16x128xf32>
    %311 = vector.extract_strided_slice %291 {offsets = [7, 0], sizes = [16, 128], strides = [1, 1]} : vector<24x128xf32> to vector<16x128xf32>
    %312 = vector.extract_strided_slice %295 {offsets = [1, 0], sizes = [16, 128], strides = [1, 1]} : vector<24x128xf32> to vector<16x128xf32>
    %313 = vector.extract_strided_slice %295 {offsets = [7, 0], sizes = [16, 128], strides = [1, 1]} : vector<24x128xf32> to vector<16x128xf32>
    %314 = arith.addf %312, %313 : vector<16x128xf32>
    %315 = vector.broadcast %1 : f32 to vector<16x128xf32>
    %316 = arith.mulf %315, %314 : vector<16x128xf32>
    %317 = arith.addf %306, %316 : vector<16x128xf32>
    %318 = arith.subf %310, %311 : vector<16x128xf32>
    %319 = vector.broadcast %6 : f32 to vector<16x128xf32>
    %320 = arith.mulf %319, %318 : vector<16x128xf32>
    %321 = arith.addf %309, %320 : vector<16x128xf32>
    %322 = vector.extract_strided_slice %291 {offsets = [2, 0], sizes = [16, 128], strides = [1, 1]} : vector<24x128xf32> to vector<16x128xf32>
    %323 = vector.extract_strided_slice %291 {offsets = [6, 0], sizes = [16, 128], strides = [1, 1]} : vector<24x128xf32> to vector<16x128xf32>
    %324 = vector.extract_strided_slice %295 {offsets = [2, 0], sizes = [16, 128], strides = [1, 1]} : vector<24x128xf32> to vector<16x128xf32>
    %325 = vector.extract_strided_slice %295 {offsets = [6, 0], sizes = [16, 128], strides = [1, 1]} : vector<24x128xf32> to vector<16x128xf32>
    %326 = arith.addf %324, %325 : vector<16x128xf32>
    %327 = vector.broadcast %2 : f32 to vector<16x128xf32>
    %328 = arith.mulf %327, %326 : vector<16x128xf32>
    %329 = arith.addf %317, %328 : vector<16x128xf32>
    %330 = arith.subf %322, %323 : vector<16x128xf32>
    %331 = vector.broadcast %7 : f32 to vector<16x128xf32>
    %332 = arith.mulf %331, %330 : vector<16x128xf32>
    %333 = arith.addf %321, %332 : vector<16x128xf32>
    %334 = vector.extract_strided_slice %291 {offsets = [3, 0], sizes = [16, 128], strides = [1, 1]} : vector<24x128xf32> to vector<16x128xf32>
    %335 = vector.extract_strided_slice %291 {offsets = [5, 0], sizes = [16, 128], strides = [1, 1]} : vector<24x128xf32> to vector<16x128xf32>
    %336 = vector.extract_strided_slice %295 {offsets = [3, 0], sizes = [16, 128], strides = [1, 1]} : vector<24x128xf32> to vector<16x128xf32>
    %337 = vector.extract_strided_slice %295 {offsets = [5, 0], sizes = [16, 128], strides = [1, 1]} : vector<24x128xf32> to vector<16x128xf32>
    %338 = arith.addf %336, %337 : vector<16x128xf32>
    %339 = vector.broadcast %3 : f32 to vector<16x128xf32>
    %340 = arith.mulf %339, %338 : vector<16x128xf32>
    %341 = arith.addf %329, %340 : vector<16x128xf32>
    %342 = arith.subf %334, %335 : vector<16x128xf32>
    %343 = vector.broadcast %8 : f32 to vector<16x128xf32>
    %344 = arith.mulf %343, %342 : vector<16x128xf32>
    %345 = arith.addf %333, %344 : vector<16x128xf32>
    %cst_66 = arith.constant 9.99999974E-6 : f32
    %346 = vector.broadcast %cst_66 : f32 to vector<16x128xf32>
    %347 = arith.addf %125, %346 : vector<16x128xf32>
    %348 = tpu.reciprocal %347 {approx = true} : vector<16x128xf32> -> vector<16x128xf32>
    %349 = arith.mulf %347, %348 : vector<16x128xf32>
    %cst_67 = arith.constant 2.000000e+00 : f32
    %350 = vector.broadcast %cst_67 : f32 to vector<16x128xf32>
    %351 = arith.subf %350, %349 : vector<16x128xf32>
    %352 = arith.mulf %348, %351 : vector<16x128xf32>
    %353 = arith.mulf %133, %352 : vector<16x128xf32>
    %354 = arith.mulf %353, %353 : vector<16x128xf32>
    %355 = arith.mulf %239, %352 : vector<16x128xf32>
    %356 = arith.mulf %355, %355 : vector<16x128xf32>
    %357 = arith.addf %354, %356 : vector<16x128xf32>
    %358 = arith.mulf %345, %352 : vector<16x128xf32>
    %359 = arith.mulf %358, %358 : vector<16x128xf32>
    %360 = arith.addf %357, %359 : vector<16x128xf32>
    %361 = arith.mulf %129, %352 : vector<16x128xf32>
    %362 = arith.mulf %361, %361 : vector<16x128xf32>
    %363 = arith.addf %360, %362 : vector<16x128xf32>
    %364 = arith.mulf %235, %352 : vector<16x128xf32>
    %365 = arith.mulf %364, %364 : vector<16x128xf32>
    %366 = arith.addf %363, %365 : vector<16x128xf32>
    %367 = arith.mulf %341, %352 : vector<16x128xf32>
    %368 = arith.mulf %367, %367 : vector<16x128xf32>
    %369 = arith.addf %366, %368 : vector<16x128xf32>
    %cst_68 = arith.constant 9.99999974E-6 : f32
    %370 = vector.broadcast %cst_68 : f32 to vector<16x128xf32>
    %371 = arith.addf %369, %370 : vector<16x128xf32>
    %372 = math.log %371 : vector<16x128xf32>
    %c0_69 = arith.constant 0 : index
    %c0_70 = arith.constant 0 : index
    %c0_71 = arith.constant 0 : index
    %373 = vector.load %arg4[%c0_69, %c0_70, %c0_71] : memref<1x16x128xf32, #tpu.memory_space<vmem>>, vector<1x16x128xf32>
    %374 = vector.shape_cast %373 : vector<1x16x128xf32> to vector<16x128xf32>
    %375 = vector.shape_cast %372 : vector<16x128xf32> to vector<1x16x128xf32>
    tpu.vector_store %arg4[%c0_69, %c0_70, %c0_71], %375 {strides = array<i32>} : memref<1x16x128xf32, #tpu.memory_space<vmem>>, vector<1x16x128xf32>,
    %376 = tpu.iota {dimensions = array<i32: 0>} : vector<16x128xi32>
    %c16_i32 = arith.constant 16 : i32
    %377 = arith.muli %arg1, %c16_i32 : i32
    %378 = vector.broadcast %377 : i32 to vector<16x128xi32>
    %379 = arith.addi %376, %378 : vector<16x128xi32>
    %380 = tpu.iota {dimensions = array<i32: 1>} : vector<16x128xi32>
    %c16_i32_72 = arith.constant 16 : i32
    %381 = vector.broadcast %c16_i32_72 : i32 to vector<16x128xi32>
    %382 = arith.cmpi slt, %379, %381 : vector<16x128xi32>
    %c16_i32_73 = arith.constant 16 : i32
    %383 = vector.broadcast %c16_i32_73 : i32 to vector<16x128xi32>
    %384 = arith.cmpi slt, %380, %383 : vector<16x128xi32>
    %385 = arith.andi %382, %384 : vector<16x128xi1>
    %cst_74 = arith.constant 0.000000e+00 : f32
    %386 = vector.broadcast %cst_74 : f32 to vector<16x128xf32>
    %387 = arith.select %385, %372, %386 : vector<16x128xi1>, vector<16x128xf32>
    %388 = vector.shape_cast %387 : vector<16x128xf32> to vector<1x16x128xf32>
    %cst_75 = arith.constant dense<0.000000e+00> : vector<1xf32>
    %389 = vector.multi_reduction <add>, %388, %cst_75 [1, 2] : vector<1x16x128xf32> to vector<1xf32>
    %390 = vector.shape_cast %389 : vector<1xf32> to vector<1x1x1xf32>
    %391 = vector.extract %390[0, 0, 0] : f32 from vector<1x1x1xf32>
    %392 = arith.mulf %387, %387 : vector<16x128xf32>
    %393 = vector.shape_cast %392 : vector<16x128xf32> to vector<1x16x128xf32>
    %cst_76 = arith.constant dense<0.000000e+00> : vector<1xf32>
    %394 = vector.multi_reduction <add>, %393, %cst_76 [1, 2] : vector<1x16x128xf32> to vector<1xf32>
    %395 = vector.shape_cast %394 : vector<1xf32> to vector<1x1x1xf32>
    %396 = vector.extract %395[0, 0, 0] : f32 from vector<1x1x1xf32>
    %397 = tpu.iota {dimensions = array<i32: 0>} : vector<2x128xi32>
    %c0_i32 = arith.constant 0 : i32
    %398 = vector.broadcast %c0_i32 : i32 to vector<2x128xi32>
    %399 = arith.cmpi eq, %397, %398 : vector<2x128xi32>
    %400 = vector.broadcast %391 : f32 to vector<2x128xf32>
    %401 = vector.broadcast %396 : f32 to vector<2x128xf32>
    %402 = arith.select %399, %400, %401 : vector<2x128xi1>, vector<2x128xf32>
    %c0_77 = arith.constant 0 : index
    %c0_78 = arith.constant 0 : index
    %c0_79 = arith.constant 0 : index
    %c0_80 = arith.constant 0 : index
    %403 = vector.load %arg5[%c0_77, %c0_78, %c0_79, %c0_80] : memref<1x1x2x128xf32, #tpu.memory_space<vmem>>, vector<1x1x2x128xf32>
    %404 = vector.shape_cast %403 : vector<1x1x2x128xf32> to vector<2x128xf32>
    %405 = vector.shape_cast %402 : vector<2x128xf32> to vector<1x1x2x128xf32>
    tpu.vector_store %arg5[%c0_77, %c0_78, %c0_79, %c0_80], %405 {strides = array<i32>} : memref<1x1x2x128xf32, #tpu.memory_space<vmem>>, vector<1x1x2x128xf32>,
    return
  }
  func.func @transform_0(%arg0: i32, %arg1: i32) -> (i32, i32) {
    %c0_i32 = arith.constant 0 : i32
    %c0_i32_0 = arith.constant 0 : i32
    %c0_i32_1 = arith.constant 0 : i32
    return %c0_i32, %c0_i32_0 : i32, i32
  }
  func.func @transform_1(%arg0: i32, %arg1: i32) -> (i32, i32, i32, i32, i32) {
    %c0_i32 = arith.constant 0 : i32
    %c0_i32_0 = arith.constant 0 : i32
    %c0_i32_1 = arith.constant 0 : i32
    %c0_i32_2 = arith.constant 0 : i32
    return %arg0, %arg1, %c0_i32, %c0_i32_0, %c0_i32_1 : i32, i32, i32, i32, i32
  }
  func.func @transform_2(%arg0: i32, %arg1: i32) -> (i32, i32, i32) {
    %c0_i32 = arith.constant 0 : i32
    %c0_i32_0 = arith.constant 0 : i32
    return %arg0, %arg1, %c0_i32 : i32, i32, i32
  }
  func.func @transform_3(%arg0: i32, %arg1: i32) -> (i32, i32, i32, i32) {
    %c0_i32 = arith.constant 0 : i32
    %c0_i32_0 = arith.constant 0 : i32
    %c0_i32_1 = arith.constant 0 : i32
    return %arg0, %arg1, %c0_i32, %c0_i32_0 : i32, i32, i32, i32
  }
}

</mosaic_0001>

<llo_original>
// kernel: _lambda_.3
$region0: #{_lambda_.3}
  #allocation0 [shape = 'u32[]', space=smem, size = 0x4, offset = 0x4, fixed_abs, tag = 'smem constant byte address 0x4 - core index']
  #allocation1 [shape = 'u32[144,128]{1,0:T(1,128)}', space=vmem, size = 0x12000, scoped, tag = 'internal scratch']
  %s0 = inlined_call_operand.vmem [shape: f32[2,2], index: 0, kind: input, shape index: {}]
  %s1 = inlined_call_operand.vmem [shape: f32[2,16,128], index: 1, kind: input, shape index: {}, may-alias: {1,2}]
  %s2 = inlined_call_operand.vmem [shape: f32[2,16,128], index: 2, kind: output, shape index: {}, may-alias: {1,2}]
  %s3 = sld [smem:[#allocation0]]
  $region45: #{_lambda_.3} parent=0
    _
  %s5 = ssub.s32 1, %s3
  %s6 = scalar_select 0, %s5, %s3
  $region1: #{_lambda_.3} parent=0
    #allocation2 [shape = 'u8[1024]{0}', space=smem, size = 0x400, scoped, tag = 'input window, operand 0, single buffered']
    #allocation3 [shape = 's32[2]{0}', space=sflag, size = 0x8, scoped, tag = 'scoped memory for _lambda_.3']
    %7 = vsyncpa [#allocation3], 0
    loop: start=0, step=1, limit=4
    $region2: #{_lambda_.3} parent=1 // loop_pre_header
      _
    $region3: #{_lambda_.3} parent=1 // loop_header
      %s9 = sphi 0, %s13
      %p10 = scmp.ge.s32.totalorder %s9, 4
      %s16 = sphi 0, %s28
      %s17 = sphi 0, %s24
      %s18 = sphi 0, %s16
      %s19 = sphi 0, %s17
      %s20 = sphi 0, %s18
      %s21 = sphi 0, %s19
      %s29 = sphi 0, %s29
      %s31 = sphi 0, %s29
      %s32 = sphi 0, %s31
      %s46 = sphi 0, %s32
      %s54 = sphi 0, %s56
      %s57 = sphi 0, %s54
      %s58 = sphi 0, %s57
      %s74 = sphi 0, %s58
      %s82 = sphi 0, %s84
      %s85 = sphi 0, %s82
      %s86 = sphi 0, %s85
      %s102 = sphi 0, %s86
    $region4: #{_lambda_.3} parent=1 // loop_header_branch
      %12 = sbr.rel (%p10) target = $region8
    $region5: #{_lambda_.3} parent=1 // loop_body
      %s14 = ssub.s32 %s9, 1
      %s15 = ssub.s32 %s9, 2
      %s22 = sadd.s32 1, %s17
      %p23 = scmp.ge.s32.totalorder %s22, 1
      %s24 = scalar_select %p23, 0, %s22
      %s25 = sadd.s32 1, %s16
      %s26 = scalar_select %p23, %s25, %s16
      %p27 = scmp.ge.s32.totalorder %s26, 2
      %s28 = scalar_select %p27, 0, %s26
      %s30 = sadd.s32 %s29, 1
      %p33 = scmp.eq.s32.totalorder %s9, 1
      %p34 = scmp.ne.s32.totalorder %s29, %s31
      %p35 = scmp.eq.s32.totalorder %s9, 0
      %p36 = por %p34, %p35
      %p37 = scmp.ne.s32.totalorder %s29, %s31
      %p38 = scmp.eq.s32.totalorder %s14, 1
      %p39 = por %p37, %p38
      %p40 = scmp.ne.s32.totalorder %s31, %s32
      %p41 = scmp.eq.s32.totalorder %s14, 0
      %p42 = por %p40, %p41
      %p43 = scmp.ne.s32.totalorder %s31, %s32
      %p44 = scmp.eq.s32.totalorder %s15, 1
      %p45 = por %p43, %p44
      %p47 = scmp.ne.s32.totalorder %s32, %s46
      %p48 = scmp.eq.s32.totalorder %s15, 0
      %p49 = por %p47, %p48
      %s50 = ssub.s32 %s16, %s28
      %s51 = ssub.s32 %s17, %s24
      %s52 = sor.u32 %s50, %s51
      %p53 = scmp.eq.s32.totalorder %s52, 0
      %s55 = sadd.s32 %s54, 1
      %s56 = scalar_select %p53, %s54, %s55
      %p59 = pneg %p53
      %p60 = scmp.eq.s32.totalorder %s9, 1
      %p61 = por %p59, %p60
      %p62 = scmp.ne.s32.totalorder %s54, %s57
      %p63 = scmp.eq.s32.totalorder %s9, 0
      %p64 = por %p62, %p63
      %p65 = scmp.ne.s32.totalorder %s54, %s57
      %p66 = scmp.eq.s32.totalorder %s14, 1
      %p67 = por %p65, %p66
      %p68 = scmp.ne.s32.totalorder %s57, %s58
      %p69 = scmp.eq.s32.totalorder %s14, 0
      %p70 = por %p68, %p69
      %p71 = scmp.ne.s32.totalorder %s57, %s58
      %p72 = scmp.eq.s32.totalorder %s15, 1
      %p73 = por %p71, %p72
      %p75 = scmp.ne.s32.totalorder %s58, %s74
      %p76 = scmp.eq.s32.totalorder %s15, 0
      %p77 = por %p75, %p76
      %s78 = ssub.s32 %s16, %s28
      %s79 = ssub.s32 %s17, %s24
      %s80 = sor.u32 %s78, %s79
      %p81 = scmp.eq.s32.totalorder %s80, 0
      %s83 = sadd.s32 %s82, 1
      %s84 = scalar_select %p81, %s82, %s83
      %p87 = pneg %p81
      %p88 = scmp.eq.s32.totalorder %s9, 1
      %p89 = por %p87, %p88
      %p90 = scmp.ne.s32.totalorder %s82, %s85
      %p91 = scmp.eq.s32.totalorder %s9, 0
      %p92 = por %p90, %p91
      %p93 = scmp.ne.s32.totalorder %s82, %s85
      %p94 = scmp.eq.s32.totalorder %s14, 1
      %p95 = por %p93, %p94
      %p96 = scmp.ne.s32.totalorder %s85, %s86
      %p97 = scmp.eq.s32.totalorder %s14, 0
      %p98 = por %p96, %p97
      %p99 = scmp.ne.s32.totalorder %s85, %s86
      %p100 = scmp.eq.s32.totalorder %s15, 1
      %p101 = por %p99, %p100
      %p103 = scmp.ne.s32.totalorder %s86, %s102
      %p104 = scmp.eq.s32.totalorder %s15, 0
      %p105 = por %p103, %p104
      %p106 = scmp.le.s32.totalorder 1, %s9
      %p107 = scmp.lt.s32.totalorder %s9, 3
      %p108 = pnand %p106, %p107
      %p109 = pneg %p108
      // Predicated region
      $region9: #{_lambda_.3} parent=5 // pred_check
        _
      $region10: #{_lambda_.3} parent=5 // pred_check_branch
        %111 = sbr.rel (%p108) target = $region12
      $region11: #{_lambda_.3} parent=5 // pred_region
        %s112 = ssub.s32 %s9, 1
        // Predicated region
        $region13: #{_lambda_.3} parent=11 // pred_check
          %p113 = pneg %p42
        $region14: #{_lambda_.3} parent=11 // pred_check_branch
          %115 = sbr.rel (%p113) target = $region16
        $region15: #{_lambda_.3} parent=11 // pred_region
          %s117 = ssub.s32 32, 32
          %118 = vsyncadd [#allocation3], %s117
          %s120 = sshll.u32 %s0, 4
          %s121 = int_to_ptr.vmem [resolvable:$true] %s120
          %123 = dma.vmem_to_smem %s121, 32, [#allocation2], [#allocation3]
        $region16: #{_lambda_.3} parent=11 // pred_fallthru
          _
      $region12: #{_lambda_.3} parent=5 // pred_fallthru
        _
      %p124 = scmp.lt.s32.totalorder %s9, 2
      // Predicated region
      $region17: #{_lambda_.3} parent=5 // pred_check
        %p125 = pneg %p124
      $region18: #{_lambda_.3} parent=5 // pred_check_branch
        %127 = sbr.rel (%p125) target = $region20
      $region19: #{_lambda_.3} parent=5 // pred_region
        // Predicated region
        $region21: #{_lambda_.3} parent=19 // pred_check
          %p128 = pneg %p64
        $region22: #{_lambda_.3} parent=19 // pred_check_branch
          %130 = sbr.rel (%p128) target = $region24
        $region23: #{_lambda_.3} parent=19 // pred_region
          %s131 = smul.u32 2, %s17
          %p132 = scmp.lt.s32.totalorder %s16, 1
          %s133 = scalar_select %p132, %s16, 1
          %p134 = scmp.lt.s32.totalorder %s131, 1
          %s135 = scalar_select %p134, %s131, 1
          %s136 = smul.addr %s133, 2
          %s137 = sadd.s32 %s135, %s136
          %s138 = smul.addr %s137, 8
          %s139 = scalar_lea.vmem %s1, %s138
          %s140 = smul.u32 2, %s17
        $region24: #{_lambda_.3} parent=19 // pred_fallthru
          _
      $region20: #{_lambda_.3} parent=5 // pred_fallthru
        _
      %p141 = scmp.le.s32.totalorder 1, %s9
      %p142 = scmp.lt.s32.totalorder %s9, 3
      %p143 = pnand %p141, %p142
      %p144 = pneg %p143
      // Predicated region
      $region25: #{_lambda_.3} parent=5 // pred_check
        _
      $region26: #{_lambda_.3} parent=5 // pred_check_branch
        %146 = sbr.rel (%p143) target = $region28
      $region27: #{_lambda_.3} parent=5 // pred_region
        %s147 = ssub.s32 %s9, 1
        // Predicated region
        $region29: #{_lambda_.3} parent=27 // pred_check
          %p148 = pneg %p42
        $region30: #{_lambda_.3} parent=27 // pred_check_branch
          %150 = sbr.rel (%p148) target = $region32
        $region31: #{_lambda_.3} parent=27 // pred_region
          %151 = dma.done [#allocation3], 32
        $region32: #{_lambda_.3} parent=27 // pred_fallthru
          _
        %152 = sfence
        %p153 = pneg %p42
        %p154 = pneg %p39
        %s155 = smul.u32 2, %s19
        %p156 = scmp.lt.s32.totalorder %s18, 1
        %s157 = scalar_select %p156, %s18, 1
        %p158 = scmp.lt.s32.totalorder %s155, 1
        %s159 = scalar_select %p158, %s155, 1
        %s160 = smul.addr %s157, 2
        %s161 = sadd.s32 %s159, %s160
        %s162 = smul.addr %s161, 8
        %s163 = scalar_lea.vmem %s1, %s162
        %p164 = pneg %p70
        %p165 = pneg %p67
        %p166 = pneg %p98
        %p167 = pneg %p95
        %s168 = smul.u32 2, %s19
        %p169 = scmp.lt.s32.totalorder %s18, 1
        %s170 = scalar_select %p169, %s18, 1
        %p171 = scmp.lt.s32.totalorder %s168, 1
        %s172 = scalar_select %p171, %s168, 1
        %s173 = smul.addr %s170, 2
        %s174 = sadd.s32 %s172, %s173
        %s175 = smul.addr %s174, 8
        %s176 = scalar_lea.vmem %s2, %s175
        %s177 = smul.u32 2, %s19
        %p178 = scmp.lt.s32.totalorder %s18, 1
        %s179 = scalar_select %p178, %s18, 1
        %p180 = scmp.lt.s32.totalorder %s177, 1
        %s181 = scalar_select %p180, %s177, 1
        %s182 = smul.addr %s179, 2
        %s183 = sadd.s32 %s181, %s182
        %s184 = smul.addr %s183, 8
        %s185 = scalar_lea.vmem %s1, %s184
        %s186 = smul.u32 2, %s19
        %s187 = smul.u32 2, %s19
        %p188 = scmp.lt.s32.totalorder %s18, 1
        %s189 = scalar_select %p188, %s18, 1
        %p190 = scmp.lt.s32.totalorder %s187, 1
        %s191 = scalar_select %p190, %s187, 1
        %s192 = smul.addr %s189, 2
        %s193 = sadd.s32 %s191, %s192
        %s194 = smul.addr %s193, 8
        %s195 = scalar_lea.vmem %s2, %s194
        %s196 = smul.u32 2, %s19
        %v197 = vld [vmem:[%s185] sm:$0xff]
        %v198 = vld [vmem:[%s185 + $0x8] sm:$0xff]
        %s199 = smul.u32 %s18, 128
        %s200 = sld [smem:[#allocation2 + %s199]]
        %v201 = vstv %s200
        %v202 = vsub.f32 %v197, %v201
        %v203 = vsub.f32 %v198, %v201
        %s204 = sadd.s32 %s199, 1
        %s205 = sld [smem:[#allocation2 + %s204]]
        %v206 = vstv %s205
        %v207 = vmul.f32 %v202, %v206
        %v208 = vmul.f32 %v203, %v206
        %209 = vst [vmem:[%s195] sm:$0xff] %v207
        %210 = vst [vmem:[%s195 + $0x8] sm:$0xff] %v208
        %s211 = smul.u32 2, %s19
        %p212 = scmp.lt.s32.totalorder %s18, 1
        %s213 = scalar_select %p212, %s18, 1
        %p214 = scmp.lt.s32.totalorder %s211, 1
        %s215 = scalar_select %p214, %s211, 1
        %s216 = smul.addr %s213, 2
        %s217 = sadd.s32 %s215, %s216
        %s218 = smul.addr %s217, 8
        %s219 = scalar_lea.vmem %s2, %s218
        // Predicated region
        $region33: #{_lambda_.3} parent=27 // pred_check
          %p220 = pneg %p95
        $region34: #{_lambda_.3} parent=27 // pred_check_branch
          %222 = sbr.rel (%p220) target = $region36
        $region35: #{_lambda_.3} parent=27 // pred_region
          %s223 = smul.u32 2, %s19
        $region36: #{_lambda_.3} parent=27 // pred_fallthru
          _
      $region28: #{_lambda_.3} parent=5 // pred_fallthru
        _
      %p224 = scmp.le.s32.totalorder 2, %s9
      // Predicated region
      $region37: #{_lambda_.3} parent=5 // pred_check
        %p225 = pneg %p224
      $region38: #{_lambda_.3} parent=5 // pred_check_branch
        %227 = sbr.rel (%p225) target = $region40
      $region39: #{_lambda_.3} parent=5 // pred_region
        %s228 = ssub.s32 %s9, 2
        // Predicated region
        $region41: #{_lambda_.3} parent=39 // pred_check
          %p229 = pneg %p101
        $region42: #{_lambda_.3} parent=39 // pred_check_branch
          %231 = sbr.rel (%p229) target = $region44
        $region43: #{_lambda_.3} parent=39 // pred_region
          %s232 = smul.u32 2, %s21
          %p233 = scmp.lt.s32.totalorder %s20, 1
          %s234 = scalar_select %p233, %s20, 1
          %p235 = scmp.lt.s32.totalorder %s232, 1
          %s236 = scalar_select %p235, %s232, 1
          %s237 = smul.addr %s234, 2
          %s238 = sadd.s32 %s236, %s237
          %s239 = smul.addr %s238, 8
          %s240 = scalar_lea.vmem %s2, %s239
        $region44: #{_lambda_.3} parent=39 // pred_fallthru
          _
      $region40: #{_lambda_.3} parent=5 // pred_fallthru
        _
    $region6: #{_lambda_.3} parent=1 // loop_footer
      %s13 = sadd.s32 1, %s9
    $region7: #{_lambda_.3} parent=1 // loop_footer_branch
      %8 = sbr.rel target = $region3
    $region8: #{_lambda_.3} parent=1 // loop_exit
      _
    %241 = vsyncpa [#allocation3], 1
    %s242 = scalar_lea.sflag [#allocation3], 1
    %243 = vsyncpa %s242, 1

// kernel: _lambda_.2
$region0: #{_lambda_.2}
  #allocation0 [shape = 'u32[]', space=smem, size = 0x4, offset = 0x4, fixed_abs, tag = 'smem constant byte address 0x4 - core index']
  #allocation1 [shape = 'u32[144,128]{1,0:T(1,128)}', space=vmem, size = 0x12000, scoped, tag = 'internal scratch']
  %s0 = inlined_call_operand.vmem [shape: f32[2,9], index: 0, kind: input, shape index: {}]
  %s1 = inlined_call_operand.vmem [shape: f32[2,1,3,24,136], index: 1, kind: input, shape index: {}]
  %s2 = inlined_call_operand.vmem [shape: f32[2,16,128], index: 2, kind: output, shape index: {0}]
  %s3 = inlined_call_operand.vmem [shape: f32[2,1,2,128], index: 3, kind: output, shape index: {1}]
  %4 = xla_tuple %s2, %s3
  %s5 = sld [smem:[#allocation0]]
  $region53: #{_lambda_.2} parent=0
    _
  %s7 = ssub.s32 1, %s5
  %s8 = scalar_select 0, %s7, %s5
  $region1: #{_lambda_.2} parent=0
    #allocation2 [shape = 'u8[1024]{0}', space=smem, size = 0x400, scoped, tag = 'input window, operand 0, single buffered']
    #allocation3 [shape = 's32[2]{0}', space=sflag, size = 0x8, scoped, tag = 'scoped memory for _lambda_.2']
    %9 = vsyncpa [#allocation3], 0
    loop: start=0, step=1, limit=4
    $region2: #{_lambda_.2} parent=1 // loop_pre_header
      _
    $region3: #{_lambda_.2} parent=1 // loop_header
      %s11 = sphi 0, %s15
      %p12 = scmp.ge.s32.totalorder %s11, 4
      %s18 = sphi 0, %s30
      %s19 = sphi 0, %s26
      %s20 = sphi 0, %s18
      %s21 = sphi 0, %s19
      %s22 = sphi 0, %s20
      %s23 = sphi 0, %s21
      %s31 = sphi 0, %s31
      %s33 = sphi 0, %s31
      %s34 = sphi 0, %s33
      %s48 = sphi 0, %s34
      %s56 = sphi 0, %s58
      %s59 = sphi 0, %s56
      %s60 = sphi 0, %s59
      %s76 = sphi 0, %s60
      %s84 = sphi 0, %s86
      %s87 = sphi 0, %s84
      %s88 = sphi 0, %s87
      %s104 = sphi 0, %s88
      %s112 = sphi 0, %s114
      %s115 = sphi 0, %s112
      %s116 = sphi 0, %s115
      %s132 = sphi 0, %s116
    $region4: #{_lambda_.2} parent=1 // loop_header_branch
      %14 = sbr.rel (%p12) target = $region8
    $region5: #{_lambda_.2} parent=1 // loop_body
      %s16 = ssub.s32 %s11, 1
      %s17 = ssub.s32 %s11, 2
      %s24 = sadd.s32 1, %s19
      %p25 = scmp.ge.s32.totalorder %s24, 1
      %s26 = scalar_select %p25, 0, %s24
      %s27 = sadd.s32 1, %s18
      %s28 = scalar_select %p25, %s27, %s18
      %p29 = scmp.ge.s32.totalorder %s28, 2
      %s30 = scalar_select %p29, 0, %s28
      %s32 = sadd.s32 %s31, 1
      %p35 = scmp.eq.s32.totalorder %s11, 1
      %p36 = scmp.ne.s32.totalorder %s31, %s33
      %p37 = scmp.eq.s32.totalorder %s11, 0
      %p38 = por %p36, %p37
      %p39 = scmp.ne.s32.totalorder %s31, %s33
      %p40 = scmp.eq.s32.totalorder %s16, 1
      %p41 = por %p39, %p40
      %p42 = scmp.ne.s32.totalorder %s33, %s34
      %p43 = scmp.eq.s32.totalorder %s16, 0
      %p44 = por %p42, %p43
      %p45 = scmp.ne.s32.totalorder %s33, %s34
      %p46 = scmp.eq.s32.totalorder %s17, 1
      %p47 = por %p45, %p46
      %p49 = scmp.ne.s32.totalorder %s34, %s48
      %p50 = scmp.eq.s32.totalorder %s17, 0
      %p51 = por %p49, %p50
      %s52 = ssub.s32 %s18, %s30
      %s53 = ssub.s32 %s19, %s26
      %s54 = sor.u32 %s52, %s53
      %p55 = scmp.eq.s32.totalorder %s54, 0
      %s57 = sadd.s32 %s56, 1
      %s58 = scalar_select %p55, %s56, %s57
      %p61 = pneg %p55
      %p62 = scmp.eq.s32.totalorder %s11, 1
      %p63 = por %p61, %p62
      %p64 = scmp.ne.s32.totalorder %s56, %s59
      %p65 = scmp.eq.s32.totalorder %s11, 0
      %p66 = por %p64, %p65
      %p67 = scmp.ne.s32.totalorder %s56, %s59
      %p68 = scmp.eq.s32.totalorder %s16, 1
      %p69 = por %p67, %p68
      %p70 = scmp.ne.s32.totalorder %s59, %s60
      %p71 = scmp.eq.s32.totalorder %s16, 0
      %p72 = por %p70, %p71
      %p73 = scmp.ne.s32.totalorder %s59, %s60
      %p74 = scmp.eq.s32.totalorder %s17, 1
      %p75 = por %p73, %p74
      %p77 = scmp.ne.s32.totalorder %s60, %s76
      %p78 = scmp.eq.s32.totalorder %s17, 0
      %p79 = por %p77, %p78
      %s80 = ssub.s32 %s18, %s30
      %s81 = ssub.s32 %s19, %s26
      %s82 = sor.u32 %s80, %s81
      %p83 = scmp.eq.s32.totalorder %s82, 0
      %s85 = sadd.s32 %s84, 1
      %s86 = scalar_select %p83, %s84, %s85
      %p89 = pneg %p83
      %p90 = scmp.eq.s32.totalorder %s11, 1
      %p91 = por %p89, %p90
      %p92 = scmp.ne.s32.totalorder %s84, %s87
      %p93 = scmp.eq.s32.totalorder %s11, 0
      %p94 = por %p92, %p93
      %p95 = scmp.ne.s32.totalorder %s84, %s87
      %p96 = scmp.eq.s32.totalorder %s16, 1
      %p97 = por %p95, %p96
      %p98 = scmp.ne.s32.totalorder %s87, %s88
      %p99 = scmp.eq.s32.totalorder %s16, 0
      %p100 = por %p98, %p99
      %p101 = scmp.ne.s32.totalorder %s87, %s88
      %p102 = scmp.eq.s32.totalorder %s17, 1
      %p103 = por %p101, %p102
      %p105 = scmp.ne.s32.totalorder %s88, %s104
      %p106 = scmp.eq.s32.totalorder %s17, 0
      %p107 = por %p105, %p106
      %s108 = ssub.s32 %s18, %s30
      %s109 = ssub.s32 %s19, %s26
      %s110 = sor.u32 %s108, %s109
      %p111 = scmp.eq.s32.totalorder %s110, 0
      %s113 = sadd.s32 %s112, 1
      %s114 = scalar_select %p111, %s112, %s113
      %p117 = pneg %p111
      %p118 = scmp.eq.s32.totalorder %s11, 1
      %p119 = por %p117, %p118
      %p120 = scmp.ne.s32.totalorder %s112, %s115
      %p121 = scmp.eq.s32.totalorder %s11, 0
      %p122 = por %p120, %p121
      %p123 = scmp.ne.s32.totalorder %s112, %s115
      %p124 = scmp.eq.s32.totalorder %s16, 1
      %p125 = por %p123, %p124
      %p126 = scmp.ne.s32.totalorder %s115, %s116
      %p127 = scmp.eq.s32.totalorder %s16, 0
      %p128 = por %p126, %p127
      %p129 = scmp.ne.s32.totalorder %s115, %s116
      %p130 = scmp.eq.s32.totalorder %s17, 1
      %p131 = por %p129, %p130
      %p133 = scmp.ne.s32.totalorder %s116, %s132
      %p134 = scmp.eq.s32.totalorder %s17, 0
      %p135 = por %p133, %p134
      %p136 = scmp.le.s32.totalorder 1, %s11
      %p137 = scmp.lt.s32.totalorder %s11, 3
      %p138 = pnand %p136, %p137
      %p139 = pneg %p138
      // Predicated region
      $region9: #{_lambda_.2} parent=5 // pred_check
        _
      $region10: #{_lambda_.2} parent=5 // pred_check_branch
        %141 = sbr.rel (%p138) target = $region12
      $region11: #{_lambda_.2} parent=5 // pred_region
        %s142 = ssub.s32 %s11, 1
        // Predicated region
        $region13: #{_lambda_.2} parent=11 // pred_check
          %p143 = pneg %p44
        $region14: #{_lambda_.2} parent=11 // pred_check_branch
          %145 = sbr.rel (%p143) target = $region16
        $region15: #{_lambda_.2} parent=11 // pred_region
          %s147 = ssub.s32 32, 32
          %148 = vsyncadd [#allocation3], %s147
          %s150 = sshll.u32 %s0, 4
          %s151 = int_to_ptr.vmem [resolvable:$true] %s150
          %153 = dma.vmem_to_smem %s151, 32, [#allocation2], [#allocation3]
        $region16: #{_lambda_.2} parent=11 // pred_fallthru
          _
      $region12: #{_lambda_.2} parent=5 // pred_fallthru
        _
      %p154 = scmp.lt.s32.totalorder %s11, 2
      // Predicated region
      $region17: #{_lambda_.2} parent=5 // pred_check
        %p155 = pneg %p154
      $region18: #{_lambda_.2} parent=5 // pred_check_branch
        %157 = sbr.rel (%p155) target = $region20
      $region19: #{_lambda_.2} parent=5 // pred_region
        // Predicated region
        $region21: #{_lambda_.2} parent=19 // pred_check
          %p158 = pneg %p66
        $region22: #{_lambda_.2} parent=19 // pred_check_branch
          %160 = sbr.rel (%p158) target = $region24
        $region23: #{_lambda_.2} parent=19 // pred_region
          %p161 = scmp.lt.s32.totalorder %s18, 1
          %s162 = scalar_select %p161, %s18, 1
          %p163 = scmp.lt.s32.totalorder %s19, 0
          %s164 = scalar_select %p163, %s19, 0
          %s165 = smul.addr %s164, 18
          %s166 = smul.addr %s162, 18
          %s167 = sadd.s32 %s165, %s166
          %s168 = smul.addr %s167, 8
          %s169 = scalar_lea.vmem %s1, %s168
        $region24: #{_lambda_.2} parent=19 // pred_fallthru
          _
      $region20: #{_lambda_.2} parent=5 // pred_fallthru
        _
      %p170 = scmp.le.s32.totalorder 1, %s11
      %p171 = scmp.lt.s32.totalorder %s11, 3
      %p172 = pnand %p170, %p171
      %p173 = pneg %p172
      // Predicated region
      $region25: #{_lambda_.2} parent=5 // pred_check
        _
      $region26: #{_lambda_.2} parent=5 // pred_check_branch
        %175 = sbr.rel (%p172) target = $region28
      $region27: #{_lambda_.2} parent=5 // pred_region
        %s176 = ssub.s32 %s11, 1
        // Predicated region
        $region29: #{_lambda_.2} parent=27 // pred_check
          %p177 = pneg %p44
        $region30: #{_lambda_.2} parent=27 // pred_check_branch
          %179 = sbr.rel (%p177) target = $region32
        $region31: #{_lambda_.2} parent=27 // pred_region
          %180 = dma.done [#allocation3], 32
        $region32: #{_lambda_.2} parent=27 // pred_fallthru
          _
        %181 = sfence
        %p182 = pneg %p44
        %p183 = pneg %p41
        %p184 = scmp.lt.s32.totalorder %s20, 1
        %s185 = scalar_select %p184, %s20, 1
        %p186 = scmp.lt.s32.totalorder %s21, 0
        %s187 = scalar_select %p186, %s21, 0
        %s188 = smul.addr %s187, 18
        %s189 = smul.addr %s185, 18
        %s190 = sadd.s32 %s188, %s189
        %s191 = smul.addr %s190, 8
        %s192 = scalar_lea.vmem %s1, %s191
        %p193 = pneg %p72
        %p194 = pneg %p69
        %p195 = pneg %p100
        %p196 = pneg %p97
        %s197 = smul.u32 2, %s21
        %p198 = scmp.lt.s32.totalorder %s20, 1
        %s199 = scalar_select %p198, %s20, 1
        %p200 = scmp.lt.s32.totalorder %s197, 1
        %s201 = scalar_select %p200, %s197, 1
        %s202 = smul.addr %s199, 2
        %s203 = sadd.s32 %s201, %s202
        %s204 = smul.addr %s203, 8
        %s205 = scalar_lea.vmem %s2, %s204
        %p206 = pneg %p128
        %p207 = pneg %p125
        %p208 = scmp.lt.s32.totalorder %s20, 1
        %s209 = scalar_select %p208, %s20, 1
        %p210 = scmp.lt.s32.totalorder %s21, 0
        %s211 = scalar_select %p210, %s21, 0
        %s212 = sadd.s32 %s211, %s209
        %s213 = smul.addr %s212, 2
        %s214 = scalar_lea.vmem %s3, %s213
        %p215 = scmp.lt.s32.totalorder %s20, 1
        %s216 = scalar_select %p215, %s20, 1
        %p217 = scmp.lt.s32.totalorder %s21, 0
        %s218 = scalar_select %p217, %s21, 0
        %s219 = smul.addr %s218, 18
        %s220 = smul.addr %s216, 18
        %s221 = sadd.s32 %s219, %s220
        %s222 = smul.addr %s221, 8
        %s223 = scalar_lea.vmem %s1, %s222
        %s224 = smul.u32 2, %s21
        %p225 = scmp.lt.s32.totalorder %s20, 1
        %s226 = scalar_select %p225, %s20, 1
        %p227 = scmp.lt.s32.totalorder %s224, 1
        %s228 = scalar_select %p227, %s224, 1
        %s229 = smul.addr %s226, 2
        %s230 = sadd.s32 %s228, %s229
        %s231 = smul.addr %s230, 8
        %s232 = scalar_lea.vmem %s2, %s231
        %s233 = smul.u32 2, %s21
        %p234 = scmp.lt.s32.totalorder %s20, 1
        %s235 = scalar_select %p234, %s20, 1
        %p236 = scmp.lt.s32.totalorder %s21, 0
        %s237 = scalar_select %p236, %s21, 0
        %s238 = sadd.s32 %s237, %s235
        %s239 = smul.addr %s238, 2
        %s240 = scalar_lea.vmem %s3, %s239
        %s241 = sld [smem:[#allocation2]]
        %s242 = sld [smem:[#allocation2 + $0x1]]
        %s243 = sld [smem:[#allocation2 + $0x2]]
        %s244 = sld [smem:[#allocation2 + $0x3]]
        %s245 = sld [smem:[#allocation2 + $0x4]]
        %s246 = sld [smem:[#allocation2 + $0x80]]
        %s247 = sld [smem:[#allocation2 + $0x81]]
        %s248 = sld [smem:[#allocation2 + $0x82]]
        %s249 = sld [smem:[#allocation2 + $0x83]]
        %v250 = vld [vmem:[%s223] sm:$0xff]
        %v251 = vld [vmem:[%s223 + $0x8] sm:$0xff]
        %v252 = vld [vmem:[%s223 + $0x10] sm:$0xff]
        %v253 = vld [vmem:[%s223 + $0x18] sm:$0xff]
        %v254 = vld [vmem:[%s223 + $0x20] sm:$0xff]
        %v255 = vld [vmem:[%s223 + $0x28] sm:$0xff]
        %v256 = vmul.f32 %v250, 0.06
        %v257 = vmul.f32 %v251, 0.06
        %v258 = vmul.f32 %v252, 0.06
        %v259 = vmul.f32 %v253, 0.06
        %v260 = vmul.f32 %v254, 0.06
        %v261 = vmul.f32 %v255, 0.06
        %s262 = scalar_lea.vmem %s223, 48
        %v263 = vld [vmem:[%s262] sm:$0xff]
        %v264 = vld [vmem:[%s262 + $0x8] sm:$0xff]
        %v265 = vld [vmem:[%s262 + $0x10] sm:$0xff]
        %v266 = vld [vmem:[%s262 + $0x18] sm:$0xff]
        %v267 = vld [vmem:[%s262 + $0x20] sm:$0xff]
        %v268 = vld [vmem:[%s262 + $0x28] sm:$0xff]
        %v269 = vmul.f32 %v263, 0.63
        %v270 = vmul.f32 %v264, 0.63
        %v271 = vmul.f32 %v265, 0.63
        %v272 = vmul.f32 %v266, 0.63
        %v273 = vmul.f32 %v267, 0.63
        %v274 = vmul.f32 %v268, 0.63
        %v275 = vadd.f32 %v256, %v269
        %v276 = vadd.f32 %v257, %v270
        %v277 = vadd.f32 %v258, %v271
        %v278 = vadd.f32 %v259, %v272
        %v279 = vadd.f32 %v260, %v273
        %v280 = vadd.f32 %v261, %v274
        %s281 = scalar_lea.vmem %s223, 96
        %v282 = vld [vmem:[%s281] sm:$0xff]
        %v283 = vld [vmem:[%s281 + $0x8] sm:$0xff]
        %v284 = vld [vmem:[%s281 + $0x10] sm:$0xff]
        %v285 = vld [vmem:[%s281 + $0x18] sm:$0xff]
        %v286 = vld [vmem:[%s281 + $0x20] sm:$0xff]
        %v287 = vld [vmem:[%s281 + $0x28] sm:$0xff]
        %v288 = vmul.f32 %v282, 0.27
        %v289 = vmul.f32 %v283, 0.27
        %v290 = vmul.f32 %v284, 0.27
        %v291 = vmul.f32 %v285, 0.27
        %v292 = vmul.f32 %v286, 0.27
        %v293 = vmul.f32 %v287, 0.27
        %v294 = vadd.f32 %v275, %v288
        %v295 = vadd.f32 %v276, %v289
        %v296 = vadd.f32 %v277, %v290
        %v297 = vadd.f32 %v278, %v291
        %v298 = vadd.f32 %v279, %v292
        %v299 = vadd.f32 %v280, %v293
        %v300 = vstv %s245
        %v301 = vmul.f32 %v300, %v294
        %v302 = vmul.f32 %v300, %v295
        %v303 = vmul.f32 %v300, %v296
        %v304 = vmul.f32 %v300, %v297
        %v305 = vmul.f32 %v300, %v298
        %v306 = vmul.f32 %v300, %v299
        %313 = vrot.lane.b32.xlu0 %v294, 120
        %v314 = vpop.permute.xlu0 %313
        %315 = vrot.lane.b32.xlu0 %v295, 120
        %v316 = vpop.permute.xlu0 %315
        %317 = vrot.lane.b32.xlu0 %v296, 120
        %v318 = vpop.permute.xlu0 %317
        %319 = vrot.lane.b32.xlu0 %v297, 120
        %v320 = vpop.permute.xlu0 %319
        %321 = vrot.lane.b32.xlu0 %v298, 120
        %v322 = vpop.permute.xlu0 %321
        %323 = vrot.lane.b32.xlu0 %v299, 120
        %v324 = vpop.permute.xlu0 %323
        %vm325 = vcmask 982016
        %v326 = vsel %vm325, %v314, %v316
        %v327 = vsel %vm325, %v318, %v320
        %v328 = vsel %vm325, %v322, %v324
        %v332 = vadd.f32 %v294, %v326
        %v333 = vadd.f32 %v296, %v327
        %v334 = vadd.f32 %v298, %v328
        %v335 = vstv %s241
        %v336 = vmul.f32 %v335, %v332
        %v337 = vmul.f32 %v335, %v333
        %v338 = vmul.f32 %v335, %v334
        %342 = vrot.lane.b32.xlu0 %v336, 4
        %v343 = vpop.permute.xlu0 %342
        %344 = vrot.lane.b32.xlu0 %v337, 4
        %v345 = vpop.permute.xlu0 %344
        %346 = vrot.lane.b32.xlu0 %v338, 4
        %v347 = vpop.permute.xlu0 %346
        %v351 = vadd.f32 %v301, %v343
        %v352 = vadd.f32 %v302, %v343
        %v353 = vadd.f32 %v303, %v345
        %v354 = vadd.f32 %v304, %v345
        %v355 = vadd.f32 %v305, %v347
        %v356 = vadd.f32 %v306, %v347
        %v357 = vsub.f32 %v294, %v326
        %v358 = vsub.f32 %v296, %v327
        %v359 = vsub.f32 %v298, %v328
        %v360 = vstv %s246
        %v361 = vmul.f32 %v360, %v357
        %v362 = vmul.f32 %v360, %v358
        %v363 = vmul.f32 %v360, %v359
        %364 = vrot.lane.b32.xlu0 %v294, 122
        %v365 = vpop.permute.xlu0 %364
        %366 = vrot.lane.b32.xlu0 %v295, 122
        %v367 = vpop.permute.xlu0 %366
        %368 = vrot.lane.b32.xlu0 %v296, 122
        %v369 = vpop.permute.xlu0 %368
        %370 = vrot.lane.b32.xlu0 %v297, 122
        %v371 = vpop.permute.xlu0 %370
        %372 = vrot.lane.b32.xlu0 %v298, 122
        %v373 = vpop.permute.xlu0 %372
        %374 = vrot.lane.b32.xlu0 %v299, 122
        %v375 = vpop.permute.xlu0 %374
        %vm376 = vcmask 998400
        %v377 = vsel %vm376, %v365, %v367
        %v378 = vsel %vm376, %v369, %v371
        %v379 = vsel %vm376, %v373, %v375
        %v386 = vadd.f32 %v294, %v377
        %v387 = vadd.f32 %v295, %v367
        %v388 = vadd.f32 %v296, %v378
        %v389 = vadd.f32 %v297, %v371
        %v390 = vadd.f32 %v298, %v379
        %v391 = vadd.f32 %v299, %v375
        %v392 = vstv %s242
        %v393 = vmul.f32 %v392, %v386
        %v394 = vmul.f32 %v392, %v387
        %v395 = vmul.f32 %v392, %v388
        %v396 = vmul.f32 %v392, %v389
        %v397 = vmul.f32 %v392, %v390
        %v398 = vmul.f32 %v392, %v391
        %405 = vrot.lane.b32.xlu0 %v393, 3
        %v406 = vpop.permute.xlu0 %405
        %407 = vrot.lane.b32.xlu0 %v394, 3
        %v408 = vpop.permute.xlu0 %407
        %409 = vrot.lane.b32.xlu0 %v395, 3
        %v410 = vpop.permute.xlu0 %409
        %411 = vrot.lane.b32.xlu0 %v396, 3
        %v412 = vpop.permute.xlu0 %411
        %413 = vrot.lane.b32.xlu0 %v397, 3
        %v414 = vpop.permute.xlu0 %413
        %415 = vrot.lane.b32.xlu0 %v398, 3
        %v416 = vpop.permute.xlu0 %415
        %vm417 = vcmask 23552
        %v418 = vsel %vm417, %v406, %v408
        %v419 = vsel %vm417, %v410, %v412
        %v420 = vsel %vm417, %v414, %v416
        %v427 = vadd.f32 %v351, %v406
        %v428 = vadd.f32 %v352, %v418
        %v429 = vadd.f32 %v353, %v410
        %v430 = vadd.f32 %v354, %v419
        %v431 = vadd.f32 %v355, %v414
        %v432 = vadd.f32 %v356, %v420
        %v433 = vsub.f32 %v294, %v377
        %v434 = vsub.f32 %v295, %v367
        %v435 = vsub.f32 %v296, %v378
        %v436 = vsub.f32 %v297, %v371
        %v437 = vsub.f32 %v298, %v379
        %v438 = vsub.f32 %v299, %v375
        %v439 = vstv %s247
        %v440 = vmul.f32 %v439, %v433
        %v441 = vmul.f32 %v439, %v434
        %v442 = vmul.f32 %v439, %v435
        %v443 = vmul.f32 %v439, %v436
        %v444 = vmul.f32 %v439, %v437
        %v445 = vmul.f32 %v439, %v438
        %452 = vrot.lane.b32.xlu0 %v440, 127
        %v453 = vpop.permute.xlu0 %452
        %454 = vrot.lane.b32.xlu0 %v441, 127
        %v455 = vpop.permute.xlu0 %454
        %456 = vrot.lane.b32.xlu0 %v442, 127
        %v457 = vpop.permute.xlu0 %456
        %458 = vrot.lane.b32.xlu0 %v443, 127
        %v459 = vpop.permute.xlu0 %458
        %460 = vrot.lane.b32.xlu0 %v444, 127
        %v461 = vpop.permute.xlu0 %460
        %462 = vrot.lane.b32.xlu0 %v445, 127
        %v463 = vpop.permute.xlu0 %462
        %vm464 = vcmask 1039360
        %v465 = vsel %vm464, %v453, %v455
        %v466 = vsel %vm464, %v457, %v459
        %v467 = vsel %vm464, %v461, %v463
        %v471 = vadd.f32 %v361, %v465
        %v472 = vadd.f32 %v362, %v466
        %v473 = vadd.f32 %v363, %v467
        %474 = vrot.lane.b32.xlu0 %v294, 124
        %v475 = vpop.permute.xlu0 %474
        %476 = vrot.lane.b32.xlu0 %v295, 124
        %v477 = vpop.permute.xlu0 %476
        %478 = vrot.lane.b32.xlu0 %v296, 124
        %v479 = vpop.permute.xlu0 %478
        %480 = vrot.lane.b32.xlu0 %v297, 124
        %v481 = vpop.permute.xlu0 %480
        %482 = vrot.lane.b32.xlu0 %v298, 124
        %v483 = vpop.permute.xlu0 %482
        %484 = vrot.lane.b32.xlu0 %v299, 124
        %v485 = vpop.permute.xlu0 %484
        %vm486 = vcmask 1014784
        %v487 = vsel %vm486, %v475, %v477
        %v488 = vsel %vm486, %v479, %v481
        %v489 = vsel %vm486, %v483, %v485
        %v496 = vadd.f32 %v294, %v487
        %v497 = vadd.f32 %v295, %v477
        %v498 = vadd.f32 %v296, %v488
        %v499 = vadd.f32 %v297, %v481
        %v500 = vadd.f32 %v298, %v489
        %v501 = vadd.f32 %v299, %v485
        %v502 = vstv %s243
        %v503 = vmul.f32 %v502, %v496
        %v504 = vmul.f32 %v502, %v497
        %v505 = vmul.f32 %v502, %v498
        %v506 = vmul.f32 %v502, %v499
        %v507 = vmul.f32 %v502, %v500
        %v508 = vmul.f32 %v502, %v501
        %515 = vrot.lane.b32.xlu0 %v503, 2
        %v516 = vpop.permute.xlu0 %515
        %517 = vrot.lane.b32.xlu0 %v504, 2
        %v518 = vpop.permute.xlu0 %517
        %519 = vrot.lane.b32.xlu0 %v505, 2
        %v520 = vpop.permute.xlu0 %519
        %521 = vrot.lane.b32.xlu0 %v506, 2
        %v522 = vpop.permute.xlu0 %521
        %523 = vrot.lane.b32.xlu0 %v507, 2
        %v524 = vpop.permute.xlu0 %523
        %525 = vrot.lane.b32.xlu0 %v508, 2
        %v526 = vpop.permute.xlu0 %525
        %vm527 = vcmask 15360
        %v528 = vsel %vm527, %v516, %v518
        %v529 = vsel %vm527, %v520, %v522
        %v530 = vsel %vm527, %v524, %v526
        %v537 = vadd.f32 %v427, %v516
        %v538 = vadd.f32 %v428, %v528
        %v539 = vadd.f32 %v429, %v520
        %v540 = vadd.f32 %v430, %v529
        %v541 = vadd.f32 %v431, %v524
        %v542 = vadd.f32 %v432, %v530
        %v543 = vsub.f32 %v294, %v487
        %v544 = vsub.f32 %v295, %v477
        %v545 = vsub.f32 %v296, %v488
        %v546 = vsub.f32 %v297, %v481
        %v547 = vsub.f32 %v298, %v489
        %v548 = vsub.f32 %v299, %v485
        %v549 = vstv %s248
        %v550 = vmul.f32 %v549, %v543
        %v551 = vmul.f32 %v549, %v544
        %v552 = vmul.f32 %v549, %v545
        %v553 = vmul.f32 %v549, %v546
        %v554 = vmul.f32 %v549, %v547
        %v555 = vmul.f32 %v549, %v548
        %562 = vrot.lane.b32.xlu0 %v550, 126
        %v563 = vpop.permute.xlu0 %562
        %564 = vrot.lane.b32.xlu0 %v551, 126
        %v565 = vpop.permute.xlu0 %564
        %566 = vrot.lane.b32.xlu0 %v552, 126
        %v567 = vpop.permute.xlu0 %566
        %568 = vrot.lane.b32.xlu0 %v553, 126
        %v569 = vpop.permute.xlu0 %568
        %570 = vrot.lane.b32.xlu0 %v554, 126
        %v571 = vpop.permute.xlu0 %570
        %572 = vrot.lane.b32.xlu0 %v555, 126
        %v573 = vpop.permute.xlu0 %572
        %vm574 = vcmask 1031168
        %v575 = vsel %vm574, %v563, %v565
        %v576 = vsel %vm574, %v567, %v569
        %v577 = vsel %vm574, %v571, %v573
        %v581 = vadd.f32 %v471, %v575
        %v582 = vadd.f32 %v472, %v576
        %v583 = vadd.f32 %v473, %v577
        %584 = vrot.lane.b32.xlu0 %v294, 126
        %v585 = vpop.permute.xlu0 %584
        %586 = vrot.lane.b32.xlu0 %v295, 126
        %v587 = vpop.permute.xlu0 %586
        %588 = vrot.lane.b32.xlu0 %v296, 126
        %v589 = vpop.permute.xlu0 %588
        %590 = vrot.lane.b32.xlu0 %v297, 126
        %v591 = vpop.permute.xlu0 %590
        %592 = vrot.lane.b32.xlu0 %v298, 126
        %v593 = vpop.permute.xlu0 %592
        %594 = vrot.lane.b32.xlu0 %v299, 126
        %v595 = vpop.permute.xlu0 %594
        %v596 = vsel %vm574, %v585, %v587
        %v597 = vsel %vm574, %v589, %v591
        %v598 = vsel %vm574, %v593, %v595
        %v605 = vadd.f32 %v294, %v596
        %v606 = vadd.f32 %v295, %v587
        %v607 = vadd.f32 %v296, %v597
        %v608 = vadd.f32 %v297, %v591
        %v609 = vadd.f32 %v298, %v598
        %v610 = vadd.f32 %v299, %v595
        %v611 = vstv %s244
        %v612 = vmul.f32 %v611, %v605
        %v613 = vmul.f32 %v611, %v606
        %v614 = vmul.f32 %v611, %v607
        %v615 = vmul.f32 %v611, %v608
        %v616 = vmul.f32 %v611, %v609
        %v617 = vmul.f32 %v611, %v610
        %624 = vrot.lane.b32.xlu0 %v612, 1
        %v625 = vpop.permute.xlu0 %624
        %626 = vrot.lane.b32.xlu0 %v613, 1
        %v627 = vpop.permute.xlu0 %626
        %628 = vrot.lane.b32.xlu0 %v614, 1
        %v629 = vpop.permute.xlu0 %628
        %630 = vrot.lane.b32.xlu0 %v615, 1
        %v631 = vpop.permute.xlu0 %630
        %632 = vrot.lane.b32.xlu0 %v616, 1
        %v633 = vpop.permute.xlu0 %632
        %634 = vrot.lane.b32.xlu0 %v617, 1
        %v635 = vpop.permute.xlu0 %634
        %vm636 = vcmask 7168
        %v637 = vsel %vm636, %v625, %v627
        %v638 = vsel %vm636, %v629, %v631
        %v639 = vsel %vm636, %v633, %v635
        %v646 = vadd.f32 %v537, %v625
        %v647 = vadd.f32 %v538, %v637
        %v648 = vadd.f32 %v539, %v629
        %v649 = vadd.f32 %v540, %v638
        %v650 = vadd.f32 %v541, %v633
        %v651 = vadd.f32 %v542, %v639
        %v652 = vsub.f32 %v294, %v596
        %v653 = vsub.f32 %v295, %v587
        %v654 = vsub.f32 %v296, %v597
        %v655 = vsub.f32 %v297, %v591
        %v656 = vsub.f32 %v298, %v598
        %v657 = vsub.f32 %v299, %v595
        %v658 = vstv %s249
        %v659 = vmul.f32 %v658, %v652
        %v660 = vmul.f32 %v658, %v653
        %v661 = vmul.f32 %v658, %v654
        %v662 = vmul.f32 %v658, %v655
        %v663 = vmul.f32 %v658, %v656
        %v664 = vmul.f32 %v658, %v657
        %671 = vrot.lane.b32.xlu0 %v659, 125
        %v672 = vpop.permute.xlu0 %671
        %673 = vrot.lane.b32.xlu0 %v660, 125
        %v674 = vpop.permute.xlu0 %673
        %675 = vrot.lane.b32.xlu0 %v661, 125
        %v676 = vpop.permute.xlu0 %675
        %677 = vrot.lane.b32.xlu0 %v662, 125
        %v678 = vpop.permute.xlu0 %677
        %679 = vrot.lane.b32.xlu0 %v663, 125
        %v680 = vpop.permute.xlu0 %679
        %681 = vrot.lane.b32.xlu0 %v664, 125
        %v682 = vpop.permute.xlu0 %681
        %vm683 = vcmask 1022976
        %v684 = vsel %vm683, %v672, %v674
        %v685 = vsel %vm683, %v676, %v678
        %v686 = vsel %vm683, %v680, %v682
        %v690 = vadd.f32 %v581, %v684
        %v691 = vadd.f32 %v582, %v685
        %v692 = vadd.f32 %v583, %v686
        %v693 = vmul.f32 %v300, %v646
        %v694 = vmul.f32 %v300, %v647
        %v695 = vmul.f32 %v300, %v648
        %v696 = vmul.f32 %v300, %v649
        %v697 = vmul.f32 %v300, %v650
        %v698 = vmul.f32 %v300, %v651
        %v699 = vmul.f32 %v300, %v690
        %v700 = vmul.f32 %v300, %v691
        %v701 = vmul.f32 %v300, %v692
        %v702 = vadd.f32 %v646, %v648
        %v703 = vadd.f32 %v647, %v649
        %v704 = vadd.f32 %v648, %v650
        %v705 = vadd.f32 %v649, %v651
        %v706 = vmul.f32 %v335, %v702
        %v707 = vmul.f32 %v335, %v703
        %v708 = vmul.f32 %v335, %v704
        %v709 = vmul.f32 %v335, %v705
        %vm714 = vcmask 1043456
        %v715 = vrot.slane %v706, 4
        %v716 = vrot.slane %v707, 4
        %v717 = vrot.slane %v708, 4
        %v718 = vsel %vm714, %v715, %v717
        %v719 = vrot.slane %v709, 4
        %v720 = vsel %vm714, %v716, %v719
        %v727 = vadd.f32 %v693, %v715
        %v728 = vadd.f32 %v694, %v716
        %v729 = vadd.f32 %v695, %v718
        %v730 = vadd.f32 %v696, %v720
        %v731 = vadd.f32 %v697, %v717
        %v732 = vadd.f32 %v698, %v719
        %v733 = vadd.f32 %v690, %v691
        %v734 = vadd.f32 %v691, %v692
        %v735 = vmul.f32 %v335, %v733
        %v736 = vmul.f32 %v335, %v734
        %v739 = vrot.slane %v735, 4
        %v740 = vrot.slane %v736, 4
        %v741 = vsel %vm714, %v739, %v740
        %v745 = vadd.f32 %v699, %v739
        %v746 = vadd.f32 %v700, %v741
        %v747 = vadd.f32 %v701, %v740
        %v748 = vsub.f32 %v646, %v648
        %v749 = vsub.f32 %v647, %v649
        %v750 = vsub.f32 %v648, %v650
        %v751 = vsub.f32 %v649, %v651
        %v752 = vmul.f32 %v360, %v748
        %v753 = vmul.f32 %v360, %v749
        %v754 = vmul.f32 %v360, %v750
        %v755 = vmul.f32 %v360, %v751
        %vm762 = vcmask 1041408
        %v763 = vrot.slane %v646, 6
        %v764 = vrot.slane %v648, 6
        %v765 = vsel %vm762, %v763, %v764
        %v766 = vrot.slane %v647, 6
        %v767 = vrot.slane %v649, 6
        %v768 = vsel %vm762, %v766, %v767
        %v769 = vrot.slane %v650, 6
        %v770 = vsel %vm762, %v764, %v769
        %v771 = vrot.slane %v651, 6
        %v772 = vsel %vm762, %v767, %v771
        %v779 = vadd.f32 %v646, %v765
        %v780 = vadd.f32 %v647, %v768
        %v781 = vadd.f32 %v648, %v770
        %v782 = vadd.f32 %v649, %v772
        %v783 = vadd.f32 %v650, %v769
        %v784 = vadd.f32 %v651, %v771
        %v785 = vmul.f32 %v392, %v779
        %v786 = vmul.f32 %v392, %v780
        %v787 = vmul.f32 %v392, %v781
        %v788 = vmul.f32 %v392, %v782
        %v789 = vmul.f32 %v392, %v783
        %v790 = vmul.f32 %v392, %v784
        %vm797 = vcmask 1042432
        %v798 = vrot.slane %v785, 5
        %v799 = vrot.slane %v786, 5
        %v800 = vrot.slane %v787, 5
        %v801 = vsel %vm797, %v798, %v800
        %v802 = vrot.slane %v788, 5
        %v803 = vsel %vm797, %v799, %v802
        %v804 = vrot.slane %v789, 5
        %v805 = vsel %vm797, %v800, %v804
        %v806 = vrot.slane %v790, 5
        %v807 = vsel %vm797, %v802, %v806
        %v814 = vadd.f32 %v727, %v798
        %v815 = vadd.f32 %v728, %v799
        %v816 = vadd.f32 %v729, %v801
        %v817 = vadd.f32 %v730, %v803
        %v818 = vadd.f32 %v731, %v805
        %v819 = vadd.f32 %v732, %v807
        %v823 = vrot.slane %v690, 6
        %v824 = vrot.slane %v691, 6
        %v825 = vsel %vm762, %v823, %v824
        %v826 = vrot.slane %v692, 6
        %v827 = vsel %vm762, %v824, %v826
        %v831 = vadd.f32 %v690, %v825
        %v832 = vadd.f32 %v691, %v827
        %v833 = vadd.f32 %v692, %v826
        %v834 = vmul.f32 %v392, %v831
        %v835 = vmul.f32 %v392, %v832
        %v836 = vmul.f32 %v392, %v833
        %v840 = vrot.slane %v834, 5
        %v841 = vrot.slane %v835, 5
        %v842 = vsel %vm797, %v840, %v841
        %v843 = vrot.slane %v836, 5
        %v844 = vsel %vm797, %v841, %v843
        %v848 = vadd.f32 %v745, %v840
        %v849 = vadd.f32 %v746, %v842
        %v850 = vadd.f32 %v747, %v844
        %v851 = vsub.f32 %v646, %v765
        %v852 = vsub.f32 %v647, %v768
        %v853 = vsub.f32 %v648, %v770
        %v854 = vsub.f32 %v649, %v772
        %v855 = vsub.f32 %v650, %v769
        %v856 = vsub.f32 %v651, %v771
        %v857 = vmul.f32 %v439, %v851
        %v858 = vmul.f32 %v439, %v852
        %v859 = vmul.f32 %v439, %v853
        %v860 = vmul.f32 %v439, %v854
        %v861 = vmul.f32 %v439, %v855
        %v862 = vmul.f32 %v439, %v856
        %vm869 = vcmask 1046528
        %v870 = vrot.slane %v857, 1
        %v871 = vrot.slane %v859, 1
        %v872 = vsel %vm869, %v870, %v871
        %v873 = vrot.slane %v858, 1
        %v874 = vrot.slane %v860, 1
        %v875 = vsel %vm869, %v873, %v874
        %v876 = vrot.slane %v861, 1
        %v877 = vsel %vm869, %v871, %v876
        %v878 = vrot.slane %v862, 1
        %v879 = vsel %vm869, %v874, %v878
        %v884 = vadd.f32 %v752, %v872
        %v885 = vadd.f32 %v753, %v875
        %v886 = vadd.f32 %v754, %v877
        %v887 = vadd.f32 %v755, %v879
        %v888 = vrot.slane %v646, 4
        %v889 = vrot.slane %v648, 4
        %v890 = vsel %vm714, %v888, %v889
        %v891 = vrot.slane %v647, 4
        %v892 = vrot.slane %v649, 4
        %v893 = vsel %vm714, %v891, %v892
        %v894 = vrot.slane %v650, 4
        %v895 = vsel %vm714, %v889, %v894
        %v896 = vrot.slane %v651, 4
        %v897 = vsel %vm714, %v892, %v896
        %v904 = vadd.f32 %v646, %v890
        %v905 = vadd.f32 %v647, %v893
        %v906 = vadd.f32 %v648, %v895
        %v907 = vadd.f32 %v649, %v897
        %v908 = vadd.f32 %v650, %v894
        %v909 = vadd.f32 %v651, %v896
        %v910 = vmul.f32 %v502, %v904
        %v911 = vmul.f32 %v502, %v905
        %v912 = vmul.f32 %v502, %v906
        %v913 = vmul.f32 %v502, %v907
        %v914 = vmul.f32 %v502, %v908
        %v915 = vmul.f32 %v502, %v909
        %v922 = vrot.slane %v910, 6
        %v923 = vrot.slane %v911, 6
        %v924 = vrot.slane %v912, 6
        %v925 = vsel %vm762, %v922, %v924
        %v926 = vrot.slane %v913, 6
        %v927 = vsel %vm762, %v923, %v926
        %v928 = vrot.slane %v914, 6
        %v929 = vsel %vm762, %v924, %v928
        %v930 = vrot.slane %v915, 6
        %v931 = vsel %vm762, %v926, %v930
        %v938 = vadd.f32 %v814, %v922
        %v939 = vadd.f32 %v815, %v923
        %v940 = vadd.f32 %v816, %v925
        %v941 = vadd.f32 %v817, %v927
        %v942 = vadd.f32 %v818, %v929
        %v943 = vadd.f32 %v819, %v931
        %v944 = vrot.slane %v690, 4
        %v945 = vrot.slane %v691, 4
        %v946 = vsel %vm714, %v944, %v945
        %v947 = vrot.slane %v692, 4
        %v948 = vsel %vm714, %v945, %v947
        %v952 = vadd.f32 %v690, %v946
        %v953 = vadd.f32 %v691, %v948
        %v954 = vadd.f32 %v692, %v947
        %v955 = vmul.f32 %v502, %v952
        %v956 = vmul.f32 %v502, %v953
        %v957 = vmul.f32 %v502, %v954
        %v961 = vrot.slane %v955, 6
        %v962 = vrot.slane %v956, 6
        %v963 = vsel %vm762, %v961, %v962
        %v964 = vrot.slane %v957, 6
        %v965 = vsel %vm762, %v962, %v964
        %v969 = vadd.f32 %v848, %v961
        %v970 = vadd.f32 %v849, %v963
        %v971 = vadd.f32 %v850, %v965
        %v972 = vsub.f32 %v646, %v890
        %v973 = vsub.f32 %v647, %v893
        %v974 = vsub.f32 %v648, %v895
        %v975 = vsub.f32 %v649, %v897
        %v976 = vsub.f32 %v650, %v894
        %v977 = vsub.f32 %v651, %v896
        %v978 = vmul.f32 %v549, %v972
        %v979 = vmul.f32 %v549, %v973
        %v980 = vmul.f32 %v549, %v974
        %v981 = vmul.f32 %v549, %v975
        %v982 = vmul.f32 %v549, %v976
        %v983 = vmul.f32 %v549, %v977
        %vm990 = vcmask 1045504
        %v991 = vrot.slane %v978, 2
        %v992 = vrot.slane %v980, 2
        %v993 = vsel %vm990, %v991, %v992
        %v994 = vrot.slane %v979, 2
        %v995 = vrot.slane %v981, 2
        %v996 = vsel %vm990, %v994, %v995
        %v997 = vrot.slane %v982, 2
        %v998 = vsel %vm990, %v992, %v997
        %v999 = vrot.slane %v983, 2
        %v1000 = vsel %vm990, %v995, %v999
        %v1005 = vadd.f32 %v884, %v993
        %v1006 = vadd.f32 %v885, %v996
        %v1007 = vadd.f32 %v886, %v998
        %v1008 = vadd.f32 %v887, %v1000
        %v1009 = vrot.slane %v646, 2
        %v1010 = vrot.slane %v648, 2
        %v1011 = vsel %vm990, %v1009, %v1010
        %v1012 = vrot.slane %v647, 2
        %v1013 = vrot.slane %v649, 2
        %v1014 = vsel %vm990, %v1012, %v1013
        %v1015 = vrot.slane %v650, 2
        %v1016 = vsel %vm990, %v1010, %v1015
        %v1017 = vrot.slane %v651, 2
        %v1018 = vsel %vm990, %v1013, %v1017
        %v1025 = vadd.f32 %v646, %v1011
        %v1026 = vadd.f32 %v647, %v1014
        %v1027 = vadd.f32 %v648, %v1016
        %v1028 = vadd.f32 %v649, %v1018
        %v1029 = vadd.f32 %v650, %v1015
        %v1030 = vadd.f32 %v651, %v1017
        %v1031 = vmul.f32 %v611, %v1025
        %v1032 = vmul.f32 %v611, %v1026
        %v1033 = vmul.f32 %v611, %v1027
        %v1034 = vmul.f32 %v611, %v1028
        %v1035 = vmul.f32 %v611, %v1029
        %v1036 = vmul.f32 %v611, %v1030
        %vm1043 = vcmask 1040384
        %v1044 = vrot.slane %v1031, 7
        %v1045 = vrot.slane %v1032, 7
        %v1046 = vrot.slane %v1033, 7
        %v1047 = vsel %vm1043, %v1044, %v1046
        %v1048 = vrot.slane %v1034, 7
        %v1049 = vsel %vm1043, %v1045, %v1048
        %v1050 = vrot.slane %v1035, 7
        %v1051 = vsel %vm1043, %v1046, %v1050
        %v1052 = vrot.slane %v1036, 7
        %v1053 = vsel %vm1043, %v1048, %v1052
        %v1060 = vadd.f32 %v938, %v1044
        %v1061 = vadd.f32 %v939, %v1045
        %v1062 = vadd.f32 %v940, %v1047
        %v1063 = vadd.f32 %v941, %v1049
        %v1064 = vadd.f32 %v942, %v1051
        %v1065 = vadd.f32 %v943, %v1053
        %v1066 = vrot.slane %v690, 2
        %v1067 = vrot.slane %v691, 2
        %v1068 = vsel %vm990, %v1066, %v1067
        %v1069 = vrot.slane %v692, 2
        %v1070 = vsel %vm990, %v1067, %v1069
        %v1074 = vadd.f32 %v690, %v1068
        %v1075 = vadd.f32 %v691, %v1070
        %v1076 = vadd.f32 %v692, %v1069
        %v1077 = vmul.f32 %v611, %v1074
        %v1078 = vmul.f32 %v611, %v1075
        %v1079 = vmul.f32 %v611, %v1076
        %v1083 = vrot.slane %v1077, 7
        %v1084 = vrot.slane %v1078, 7
        %v1085 = vsel %vm1043, %v1083, %v1084
        %v1086 = vrot.slane %v1079, 7
        %v1087 = vsel %vm1043, %v1084, %v1086
        %v1091 = vadd.f32 %v969, %v1083
        %v1092 = vadd.f32 %v970, %v1085
        %v1093 = vadd.f32 %v971, %v1087
        %v1094 = vsub.f32 %v646, %v1011
        %v1095 = vsub.f32 %v647, %v1014
        %v1096 = vsub.f32 %v648, %v1016
        %v1097 = vsub.f32 %v649, %v1018
        %v1098 = vsub.f32 %v650, %v1015
        %v1099 = vsub.f32 %v651, %v1017
        %v1100 = vmul.f32 %v658, %v1094
        %v1101 = vmul.f32 %v658, %v1095
        %v1102 = vmul.f32 %v658, %v1096
        %v1103 = vmul.f32 %v658, %v1097
        %v1104 = vmul.f32 %v658, %v1098
        %v1105 = vmul.f32 %v658, %v1099
        %vm1112 = vcmask 1044480
        %v1113 = vrot.slane %v1100, 3
        %v1114 = vrot.slane %v1102, 3
        %v1115 = vsel %vm1112, %v1113, %v1114
        %v1116 = vrot.slane %v1101, 3
        %v1117 = vrot.slane %v1103, 3
        %v1118 = vsel %vm1112, %v1116, %v1117
        %v1119 = vrot.slane %v1104, 3
        %v1120 = vsel %vm1112, %v1114, %v1119
        %v1121 = vrot.slane %v1105, 3
        %v1122 = vsel %vm1112, %v1117, %v1121
        %v1127 = vadd.f32 %v1005, %v1115
        %v1128 = vadd.f32 %v1006, %v1118
        %v1129 = vadd.f32 %v1007, %v1120
        %v1130 = vadd.f32 %v1008, %v1122
        %v1131 = vmul.f32 %v250, 0.3
        %v1132 = vmul.f32 %v251, 0.3
        %v1133 = vmul.f32 %v252, 0.3
        %v1134 = vmul.f32 %v253, 0.3
        %v1135 = vmul.f32 %v254, 0.3
        %v1136 = vmul.f32 %v255, 0.3
        %v1137 = vmul.f32 %v263, 0.04
        %v1138 = vmul.f32 %v264, 0.04
        %v1139 = vmul.f32 %v265, 0.04
        %v1140 = vmul.f32 %v266, 0.04
        %v1141 = vmul.f32 %v267, 0.04
        %v1142 = vmul.f32 %v268, 0.04
        %v1143 = vadd.f32 %v1131, %v1137
        %v1144 = vadd.f32 %v1132, %v1138
        %v1145 = vadd.f32 %v1133, %v1139
        %v1146 = vadd.f32 %v1134, %v1140
        %v1147 = vadd.f32 %v1135, %v1141
        %v1148 = vadd.f32 %v1136, %v1142
        %v1149 = vmul.f32 %v282, -0.35
        %v1150 = vmul.f32 %v283, -0.35
        %v1151 = vmul.f32 %v284, -0.35
        %v1152 = vmul.f32 %v285, -0.35
        %v1153 = vmul.f32 %v286, -0.35
        %v1154 = vmul.f32 %v287, -0.35
        %v1155 = vadd.f32 %v1143, %v1149
        %v1156 = vadd.f32 %v1144, %v1150
        %v1157 = vadd.f32 %v1145, %v1151
        %v1158 = vadd.f32 %v1146, %v1152
        %v1159 = vadd.f32 %v1147, %v1153
        %v1160 = vadd.f32 %v1148, %v1154
        %v1161 = vmul.f32 %v300, %v1155
        %v1162 = vmul.f32 %v300, %v1156
        %v1163 = vmul.f32 %v300, %v1157
        %v1164 = vmul.f32 %v300, %v1158
        %v1165 = vmul.f32 %v300, %v1159
        %v1166 = vmul.f32 %v300, %v1160
        %1173 = vrot.lane.b32.xlu0 %v1155, 120
        %v1174 = vpop.permute.xlu0 %1173
        %1175 = vrot.lane.b32.xlu0 %v1156, 120
        %v1176 = vpop.permute.xlu0 %1175
        %1177 = vrot.lane.b32.xlu0 %v1157, 120
        %v1178 = vpop.permute.xlu0 %1177
        %1179 = vrot.lane.b32.xlu0 %v1158, 120
        %v1180 = vpop.permute.xlu0 %1179
        %1181 = vrot.lane.b32.xlu0 %v1159, 120
        %v1182 = vpop.permute.xlu0 %1181
        %1183 = vrot.lane.b32.xlu0 %v1160, 120
        %v1184 = vpop.permute.xlu0 %1183
        %v1185 = vsel %vm325, %v1174, %v1176
        %v1186 = vsel %vm325, %v1178, %v1180
        %v1187 = vsel %vm325, %v1182, %v1184
        %v1191 = vadd.f32 %v1155, %v1185
        %v1192 = vadd.f32 %v1157, %v1186
        %v1193 = vadd.f32 %v1159, %v1187
        %v1194 = vmul.f32 %v335, %v1191
        %v1195 = vmul.f32 %v335, %v1192
        %v1196 = vmul.f32 %v335, %v1193
        %1200 = vrot.lane.b32.xlu0 %v1194, 4
        %v1201 = vpop.permute.xlu0 %1200
        %1202 = vrot.lane.b32.xlu0 %v1195, 4
        %v1203 = vpop.permute.xlu0 %1202
        %1204 = vrot.lane.b32.xlu0 %v1196, 4
        %v1205 = vpop.permute.xlu0 %1204
        %v1209 = vadd.f32 %v1161, %v1201
        %v1210 = vadd.f32 %v1162, %v1201
        %v1211 = vadd.f32 %v1163, %v1203
        %v1212 = vadd.f32 %v1164, %v1203
        %v1213 = vadd.f32 %v1165, %v1205
        %v1214 = vadd.f32 %v1166, %v1205
        %v1215 = vsub.f32 %v1155, %v1185
        %v1216 = vsub.f32 %v1157, %v1186
        %v1217 = vsub.f32 %v1159, %v1187
        %v1218 = vmul.f32 %v360, %v1215
        %v1219 = vmul.f32 %v360, %v1216
        %v1220 = vmul.f32 %v360, %v1217
        %1221 = vrot.lane.b32.xlu0 %v1155, 122
        %v1222 = vpop.permute.xlu0 %1221
        %1223 = vrot.lane.b32.xlu0 %v1156, 122
        %v1224 = vpop.permute.xlu0 %1223
        %1225 = vrot.lane.b32.xlu0 %v1157, 122
        %v1226 = vpop.permute.xlu0 %1225
        %1227 = vrot.lane.b32.xlu0 %v1158, 122
        %v1228 = vpop.permute.xlu0 %1227
        %1229 = vrot.lane.b32.xlu0 %v1159, 122
        %v1230 = vpop.permute.xlu0 %1229
        %1231 = vrot.lane.b32.xlu0 %v1160, 122
        %v1232 = vpop.permute.xlu0 %1231
        %v1233 = vsel %vm376, %v1222, %v1224
        %v1234 = vsel %vm376, %v1226, %v1228
        %v1235 = vsel %vm376, %v1230, %v1232
        %v1242 = vadd.f32 %v1155, %v1233
        %v1243 = vadd.f32 %v1156, %v1224
        %v1244 = vadd.f32 %v1157, %v1234
        %v1245 = vadd.f32 %v1158, %v1228
        %v1246 = vadd.f32 %v1159, %v1235
        %v1247 = vadd.f32 %v1160, %v1232
        %v1248 = vmul.f32 %v392, %v1242
        %v1249 = vmul.f32 %v392, %v1243
        %v1250 = vmul.f32 %v392, %v1244
        %v1251 = vmul.f32 %v392, %v1245
        %v1252 = vmul.f32 %v392, %v1246
        %v1253 = vmul.f32 %v392, %v1247
        %1260 = vrot.lane.b32.xlu0 %v1248, 3
        %v1261 = vpop.permute.xlu0 %1260
        %1262 = vrot.lane.b32.xlu0 %v1249, 3
        %v1263 = vpop.permute.xlu0 %1262
        %1264 = vrot.lane.b32.xlu0 %v1250, 3
        %v1265 = vpop.permute.xlu0 %1264
        %1266 = vrot.lane.b32.xlu0 %v1251, 3
        %v1267 = vpop.permute.xlu0 %1266
        %1268 = vrot.lane.b32.xlu0 %v1252, 3
        %v1269 = vpop.permute.xlu0 %1268
        %1270 = vrot.lane.b32.xlu0 %v1253, 3
        %v1271 = vpop.permute.xlu0 %1270
        %v1272 = vsel %vm417, %v1261, %v1263
        %v1273 = vsel %vm417, %v1265, %v1267
        %v1274 = vsel %vm417, %v1269, %v1271
        %v1281 = vadd.f32 %v1209, %v1261
        %v1282 = vadd.f32 %v1210, %v1272
        %v1283 = vadd.f32 %v1211, %v1265
        %v1284 = vadd.f32 %v1212, %v1273
        %v1285 = vadd.f32 %v1213, %v1269
        %v1286 = vadd.f32 %v1214, %v1274
        %v1287 = vsub.f32 %v1155, %v1233
        %v1288 = vsub.f32 %v1156, %v1224
        %v1289 = vsub.f32 %v1157, %v1234
        %v1290 = vsub.f32 %v1158, %v1228
        %v1291 = vsub.f32 %v1159, %v1235
        %v1292 = vsub.f32 %v1160, %v1232
        %v1293 = vmul.f32 %v439, %v1287
        %v1294 = vmul.f32 %v439, %v1288
        %v1295 = vmul.f32 %v439, %v1289
        %v1296 = vmul.f32 %v439, %v1290
        %v1297 = vmul.f32 %v439, %v1291
        %v1298 = vmul.f32 %v439, %v1292
        %1305 = vrot.lane.b32.xlu0 %v1293, 127
        %v1306 = vpop.permute.xlu0 %1305
        %1307 = vrot.lane.b32.xlu0 %v1294, 127
        %v1308 = vpop.permute.xlu0 %1307
        %1309 = vrot.lane.b32.xlu0 %v1295, 127
        %v1310 = vpop.permute.xlu0 %1309
        %1311 = vrot.lane.b32.xlu0 %v1296, 127
        %v1312 = vpop.permute.xlu0 %1311
        %1313 = vrot.lane.b32.xlu0 %v1297, 127
        %v1314 = vpop.permute.xlu0 %1313
        %1315 = vrot.lane.b32.xlu0 %v1298, 127
        %v1316 = vpop.permute.xlu0 %1315
        %v1317 = vsel %vm464, %v1306, %v1308
        %v1318 = vsel %vm464, %v1310, %v1312
        %v1319 = vsel %vm464, %v1314, %v1316
        %v1323 = vadd.f32 %v1218, %v1317
        %v1324 = vadd.f32 %v1219, %v1318
        %v1325 = vadd.f32 %v1220, %v1319
        %1326 = vrot.lane.b32.xlu0 %v1155, 124
        %v1327 = vpop.permute.xlu0 %1326
        %1328 = vrot.lane.b32.xlu0 %v1156, 124
        %v1329 = vpop.permute.xlu0 %1328
        %1330 = vrot.lane.b32.xlu0 %v1157, 124
        %v1331 = vpop.permute.xlu0 %1330
        %1332 = vrot.lane.b32.xlu0 %v1158, 124
        %v1333 = vpop.permute.xlu0 %1332
        %1334 = vrot.lane.b32.xlu0 %v1159, 124
        %v1335 = vpop.permute.xlu0 %1334
        %1336 = vrot.lane.b32.xlu0 %v1160, 124
        %v1337 = vpop.permute.xlu0 %1336
        %v1338 = vsel %vm486, %v1327, %v1329
        %v1339 = vsel %vm486, %v1331, %v1333
        %v1340 = vsel %vm486, %v1335, %v1337
        %v1347 = vadd.f32 %v1155, %v1338
        %v1348 = vadd.f32 %v1156, %v1329
        %v1349 = vadd.f32 %v1157, %v1339
        %v1350 = vadd.f32 %v1158, %v1333
        %v1351 = vadd.f32 %v1159, %v1340
        %v1352 = vadd.f32 %v1160, %v1337
        %v1353 = vmul.f32 %v502, %v1347
        %v1354 = vmul.f32 %v502, %v1348
        %v1355 = vmul.f32 %v502, %v1349
        %v1356 = vmul.f32 %v502, %v1350
        %v1357 = vmul.f32 %v502, %v1351
        %v1358 = vmul.f32 %v502, %v1352
        %1365 = vrot.lane.b32.xlu0 %v1353, 2
        %v1366 = vpop.permute.xlu0 %1365
        %1367 = vrot.lane.b32.xlu0 %v1354, 2
        %v1368 = vpop.permute.xlu0 %1367
        %1369 = vrot.lane.b32.xlu0 %v1355, 2
        %v1370 = vpop.permute.xlu0 %1369
        %1371 = vrot.lane.b32.xlu0 %v1356, 2
        %v1372 = vpop.permute.xlu0 %1371
        %1373 = vrot.lane.b32.xlu0 %v1357, 2
        %v1374 = vpop.permute.xlu0 %1373
        %1375 = vrot.lane.b32.xlu0 %v1358, 2
        %v1376 = vpop.permute.xlu0 %1375
        %v1377 = vsel %vm527, %v1366, %v1368
        %v1378 = vsel %vm527, %v1370, %v1372
        %v1379 = vsel %vm527, %v1374, %v1376
        %v1386 = vadd.f32 %v1281, %v1366
        %v1387 = vadd.f32 %v1282, %v1377
        %v1388 = vadd.f32 %v1283, %v1370
        %v1389 = vadd.f32 %v1284, %v1378
        %v1390 = vadd.f32 %v1285, %v1374
        %v1391 = vadd.f32 %v1286, %v1379
        %v1392 = vsub.f32 %v1155, %v1338
        %v1393 = vsub.f32 %v1156, %v1329
        %v1394 = vsub.f32 %v1157, %v1339
        %v1395 = vsub.f32 %v1158, %v1333
        %v1396 = vsub.f32 %v1159, %v1340
        %v1397 = vsub.f32 %v1160, %v1337
        %v1398 = vmul.f32 %v549, %v1392
        %v1399 = vmul.f32 %v549, %v1393
        %v1400 = vmul.f32 %v549, %v1394
        %v1401 = vmul.f32 %v549, %v1395
        %v1402 = vmul.f32 %v549, %v1396
        %v1403 = vmul.f32 %v549, %v1397
        %1410 = vrot.lane.b32.xlu0 %v1398, 126
        %v1411 = vpop.permute.xlu0 %1410
        %1412 = vrot.lane.b32.xlu0 %v1399, 126
        %v1413 = vpop.permute.xlu0 %1412
        %1414 = vrot.lane.b32.xlu0 %v1400, 126
        %v1415 = vpop.permute.xlu0 %1414
        %1416 = vrot.lane.b32.xlu0 %v1401, 126
        %v1417 = vpop.permute.xlu0 %1416
        %1418 = vrot.lane.b32.xlu0 %v1402, 126
        %v1419 = vpop.permute.xlu0 %1418
        %1420 = vrot.lane.b32.xlu0 %v1403, 126
        %v1421 = vpop.permute.xlu0 %1420
        %v1422 = vsel %vm574, %v1411, %v1413
        %v1423 = vsel %vm574, %v1415, %v1417
        %v1424 = vsel %vm574, %v1419, %v1421
        %v1428 = vadd.f32 %v1323, %v1422
        %v1429 = vadd.f32 %v1324, %v1423
        %v1430 = vadd.f32 %v1325, %v1424
        %1431 = vrot.lane.b32.xlu0 %v1155, 126
        %v1432 = vpop.permute.xlu0 %1431
        %1433 = vrot.lane.b32.xlu0 %v1156, 126
        %v1434 = vpop.permute.xlu0 %1433
        %1435 = vrot.lane.b32.xlu0 %v1157, 126
        %v1436 = vpop.permute.xlu0 %1435
        %1437 = vrot.lane.b32.xlu0 %v1158, 126
        %v1438 = vpop.permute.xlu0 %1437
        %1439 = vrot.lane.b32.xlu0 %v1159, 126
        %v1440 = vpop.permute.xlu0 %1439
        %1441 = vrot.lane.b32.xlu0 %v1160, 126
        %v1442 = vpop.permute.xlu0 %1441
        %v1443 = vsel %vm574, %v1432, %v1434
        %v1444 = vsel %vm574, %v1436, %v1438
        %v1445 = vsel %vm574, %v1440, %v1442
        %v1452 = vadd.f32 %v1155, %v1443
        %v1453 = vadd.f32 %v1156, %v1434
        %v1454 = vadd.f32 %v1157, %v1444
        %v1455 = vadd.f32 %v1158, %v1438
        %v1456 = vadd.f32 %v1159, %v1445
        %v1457 = vadd.f32 %v1160, %v1442
        %v1458 = vmul.f32 %v611, %v1452
        %v1459 = vmul.f32 %v611, %v1453
        %v1460 = vmul.f32 %v611, %v1454
        %v1461 = vmul.f32 %v611, %v1455
        %v1462 = vmul.f32 %v611, %v1456
        %v1463 = vmul.f32 %v611, %v1457
        %1470 = vrot.lane.b32.xlu0 %v1458, 1
        %v1471 = vpop.permute.xlu0 %1470
        %1472 = vrot.lane.b32.xlu0 %v1459, 1
        %v1473 = vpop.permute.xlu0 %1472
        %1474 = vrot.lane.b32.xlu0 %v1460, 1
        %v1475 = vpop.permute.xlu0 %1474
        %1476 = vrot.lane.b32.xlu0 %v1461, 1
        %v1477 = vpop.permute.xlu0 %1476
        %1478 = vrot.lane.b32.xlu0 %v1462, 1
        %v1479 = vpop.permute.xlu0 %1478
        %1480 = vrot.lane.b32.xlu0 %v1463, 1
        %v1481 = vpop.permute.xlu0 %1480
        %v1482 = vsel %vm636, %v1471, %v1473
        %v1483 = vsel %vm636, %v1475, %v1477
        %v1484 = vsel %vm636, %v1479, %v1481
        %v1491 = vadd.f32 %v1386, %v1471
        %v1492 = vadd.f32 %v1387, %v1482
        %v1493 = vadd.f32 %v1388, %v1475
        %v1494 = vadd.f32 %v1389, %v1483
        %v1495 = vadd.f32 %v1390, %v1479
        %v1496 = vadd.f32 %v1391, %v1484
        %v1497 = vsub.f32 %v1155, %v1443
        %v1498 = vsub.f32 %v1156, %v1434
        %v1499 = vsub.f32 %v1157, %v1444
        %v1500 = vsub.f32 %v1158, %v1438
        %v1501 = vsub.f32 %v1159, %v1445
        %v1502 = vsub.f32 %v1160, %v1442
        %v1503 = vmul.f32 %v658, %v1497
        %v1504 = vmul.f32 %v658, %v1498
        %v1505 = vmul.f32 %v658, %v1499
        %v1506 = vmul.f32 %v658, %v1500
        %v1507 = vmul.f32 %v658, %v1501
        %v1508 = vmul.f32 %v658, %v1502
        %1515 = vrot.lane.b32.xlu0 %v1503, 125
        %v1516 = vpop.permute.xlu0 %1515
        %1517 = vrot.lane.b32.xlu0 %v1504, 125
        %v1518 = vpop.permute.xlu0 %1517
        %1519 = vrot.lane.b32.xlu0 %v1505, 125
        %v1520 = vpop.permute.xlu0 %1519
        %1521 = vrot.lane.b32.xlu0 %v1506, 125
        %v1522 = vpop.permute.xlu0 %1521
        %1523 = vrot.lane.b32.xlu0 %v1507, 125
        %v1524 = vpop.permute.xlu0 %1523
        %1525 = vrot.lane.b32.xlu0 %v1508, 125
        %v1526 = vpop.permute.xlu0 %1525
        %v1527 = vsel %vm683, %v1516, %v1518
        %v1528 = vsel %vm683, %v1520, %v1522
        %v1529 = vsel %vm683, %v1524, %v1526
        %v1533 = vadd.f32 %v1428, %v1527
        %v1534 = vadd.f32 %v1429, %v1528
        %v1535 = vadd.f32 %v1430, %v1529
        %v1536 = vmul.f32 %v300, %v1533
        %v1537 = vmul.f32 %v300, %v1534
        %v1538 = vmul.f32 %v300, %v1535
        %v1539 = vadd.f32 %v1533, %v1534
        %v1540 = vadd.f32 %v1534, %v1535
        %v1541 = vmul.f32 %v335, %v1539
        %v1542 = vmul.f32 %v335, %v1540
        %v1545 = vrot.slane %v1541, 4
        %v1546 = vrot.slane %v1542, 4
        %v1547 = vsel %vm714, %v1545, %v1546
        %v1551 = vadd.f32 %v1536, %v1545
        %v1552 = vadd.f32 %v1537, %v1547
        %v1553 = vadd.f32 %v1538, %v1546
        %v1554 = vsub.f32 %v1491, %v1493
        %v1555 = vsub.f32 %v1492, %v1494
        %v1556 = vsub.f32 %v1493, %v1495
        %v1557 = vsub.f32 %v1494, %v1496
        %v1558 = vmul.f32 %v360, %v1554
        %v1559 = vmul.f32 %v360, %v1555
        %v1560 = vmul.f32 %v360, %v1556
        %v1561 = vmul.f32 %v360, %v1557
        %v1565 = vrot.slane %v1533, 6
        %v1566 = vrot.slane %v1534, 6
        %v1567 = vsel %vm762, %v1565, %v1566
        %v1568 = vrot.slane %v1535, 6
        %v1569 = vsel %vm762, %v1566, %v1568
        %v1573 = vadd.f32 %v1533, %v1567
        %v1574 = vadd.f32 %v1534, %v1569
        %v1575 = vadd.f32 %v1535, %v1568
        %v1576 = vmul.f32 %v392, %v1573
        %v1577 = vmul.f32 %v392, %v1574
        %v1578 = vmul.f32 %v392, %v1575
        %v1582 = vrot.slane %v1576, 5
        %v1583 = vrot.slane %v1577, 5
        %v1584 = vsel %vm797, %v1582, %v1583
        %v1585 = vrot.slane %v1578, 5
        %v1586 = vsel %vm797, %v1583, %v1585
        %v1590 = vadd.f32 %v1551, %v1582
        %v1591 = vadd.f32 %v1552, %v1584
        %v1592 = vadd.f32 %v1553, %v1586
        %v1599 = vrot.slane %v1491, 6
        %v1600 = vrot.slane %v1493, 6
        %v1601 = vsel %vm762, %v1599, %v1600
        %v1602 = vrot.slane %v1492, 6
        %v1603 = vrot.slane %v1494, 6
        %v1604 = vsel %vm762, %v1602, %v1603
        %v1605 = vrot.slane %v1495, 6
        %v1606 = vsel %vm762, %v1600, %v1605
        %v1607 = vrot.slane %v1496, 6
        %v1608 = vsel %vm762, %v1603, %v1607
        %v1615 = vsub.f32 %v1491, %v1601
        %v1616 = vsub.f32 %v1492, %v1604
        %v1617 = vsub.f32 %v1493, %v1606
        %v1618 = vsub.f32 %v1494, %v1608
        %v1619 = vsub.f32 %v1495, %v1605
        %v1620 = vsub.f32 %v1496, %v1607
        %v1621 = vmul.f32 %v439, %v1615
        %v1622 = vmul.f32 %v439, %v1616
        %v1623 = vmul.f32 %v439, %v1617
        %v1624 = vmul.f32 %v439, %v1618
        %v1625 = vmul.f32 %v439, %v1619
        %v1626 = vmul.f32 %v439, %v1620
        %v1633 = vrot.slane %v1621, 1
        %v1634 = vrot.slane %v1623, 1
        %v1635 = vsel %vm869, %v1633, %v1634
        %v1636 = vrot.slane %v1622, 1
        %v1637 = vrot.slane %v1624, 1
        %v1638 = vsel %vm869, %v1636, %v1637
        %v1639 = vrot.slane %v1625, 1
        %v1640 = vsel %vm869, %v1634, %v1639
        %v1641 = vrot.slane %v1626, 1
        %v1642 = vsel %vm869, %v1637, %v1641
        %v1647 = vadd.f32 %v1558, %v1635
        %v1648 = vadd.f32 %v1559, %v1638
        %v1649 = vadd.f32 %v1560, %v1640
        %v1650 = vadd.f32 %v1561, %v1642
        %v1651 = vrot.slane %v1533, 4
        %v1652 = vrot.slane %v1534, 4
        %v1653 = vsel %vm714, %v1651, %v1652
        %v1654 = vrot.slane %v1535, 4
        %v1655 = vsel %vm714, %v1652, %v1654
        %v1659 = vadd.f32 %v1533, %v1653
        %v1660 = vadd.f32 %v1534, %v1655
        %v1661 = vadd.f32 %v1535, %v1654
        %v1662 = vmul.f32 %v502, %v1659
        %v1663 = vmul.f32 %v502, %v1660
        %v1664 = vmul.f32 %v502, %v1661
        %v1668 = vrot.slane %v1662, 6
        %v1669 = vrot.slane %v1663, 6
        %v1670 = vsel %vm762, %v1668, %v1669
        %v1671 = vrot.slane %v1664, 6
        %v1672 = vsel %vm762, %v1669, %v1671
        %v1676 = vadd.f32 %v1590, %v1668
        %v1677 = vadd.f32 %v1591, %v1670
        %v1678 = vadd.f32 %v1592, %v1672
        %v1679 = vrot.slane %v1491, 4
        %v1680 = vrot.slane %v1493, 4
        %v1681 = vsel %vm714, %v1679, %v1680
        %v1682 = vrot.slane %v1492, 4
        %v1683 = vrot.slane %v1494, 4
        %v1684 = vsel %vm714, %v1682, %v1683
        %v1685 = vrot.slane %v1495, 4
        %v1686 = vsel %vm714, %v1680, %v1685
        %v1687 = vrot.slane %v1496, 4
        %v1688 = vsel %vm714, %v1683, %v1687
        %v1695 = vsub.f32 %v1491, %v1681
        %v1696 = vsub.f32 %v1492, %v1684
        %v1697 = vsub.f32 %v1493, %v1686
        %v1698 = vsub.f32 %v1494, %v1688
        %v1699 = vsub.f32 %v1495, %v1685
        %v1700 = vsub.f32 %v1496, %v1687
        %v1701 = vmul.f32 %v549, %v1695
        %v1702 = vmul.f32 %v549, %v1696
        %v1703 = vmul.f32 %v549, %v1697
        %v1704 = vmul.f32 %v549, %v1698
        %v1705 = vmul.f32 %v549, %v1699
        %v1706 = vmul.f32 %v549, %v1700
        %v1713 = vrot.slane %v1701, 2
        %v1714 = vrot.slane %v1703, 2
        %v1715 = vsel %vm990, %v1713, %v1714
        %v1716 = vrot.slane %v1702, 2
        %v1717 = vrot.slane %v1704, 2
        %v1718 = vsel %vm990, %v1716, %v1717
        %v1719 = vrot.slane %v1705, 2
        %v1720 = vsel %vm990, %v1714, %v1719
        %v1721 = vrot.slane %v1706, 2
        %v1722 = vsel %vm990, %v1717, %v1721
        %v1727 = vadd.f32 %v1647, %v1715
        %v1728 = vadd.f32 %v1648, %v1718
        %v1729 = vadd.f32 %v1649, %v1720
        %v1730 = vadd.f32 %v1650, %v1722
        %v1731 = vrot.slane %v1533, 2
        %v1732 = vrot.slane %v1534, 2
        %v1733 = vsel %vm990, %v1731, %v1732
        %v1734 = vrot.slane %v1535, 2
        %v1735 = vsel %vm990, %v1732, %v1734
        %v1739 = vadd.f32 %v1533, %v1733
        %v1740 = vadd.f32 %v1534, %v1735
        %v1741 = vadd.f32 %v1535, %v1734
        %v1742 = vmul.f32 %v611, %v1739
        %v1743 = vmul.f32 %v611, %v1740
        %v1744 = vmul.f32 %v611, %v1741
        %v1748 = vrot.slane %v1742, 7
        %v1749 = vrot.slane %v1743, 7
        %v1750 = vsel %vm1043, %v1748, %v1749
        %v1751 = vrot.slane %v1744, 7
        %v1752 = vsel %vm1043, %v1749, %v1751
        %v1756 = vadd.f32 %v1676, %v1748
        %v1757 = vadd.f32 %v1677, %v1750
        %v1758 = vadd.f32 %v1678, %v1752
        %v1759 = vrot.slane %v1491, 2
        %v1760 = vrot.slane %v1493, 2
        %v1761 = vsel %vm990, %v1759, %v1760
        %v1762 = vrot.slane %v1492, 2
        %v1763 = vrot.slane %v1494, 2
        %v1764 = vsel %vm990, %v1762, %v1763
        %v1765 = vrot.slane %v1495, 2
        %v1766 = vsel %vm990, %v1760, %v1765
        %v1767 = vrot.slane %v1496, 2
        %v1768 = vsel %vm990, %v1763, %v1767
        %v1775 = vsub.f32 %v1491, %v1761
        %v1776 = vsub.f32 %v1492, %v1764
        %v1777 = vsub.f32 %v1493, %v1766
        %v1778 = vsub.f32 %v1494, %v1768
        %v1779 = vsub.f32 %v1495, %v1765
        %v1780 = vsub.f32 %v1496, %v1767
        %v1781 = vmul.f32 %v658, %v1775
        %v1782 = vmul.f32 %v658, %v1776
        %v1783 = vmul.f32 %v658, %v1777
        %v1784 = vmul.f32 %v658, %v1778
        %v1785 = vmul.f32 %v658, %v1779
        %v1786 = vmul.f32 %v658, %v1780
        %v1793 = vrot.slane %v1781, 3
        %v1794 = vrot.slane %v1783, 3
        %v1795 = vsel %vm1112, %v1793, %v1794
        %v1796 = vrot.slane %v1782, 3
        %v1797 = vrot.slane %v1784, 3
        %v1798 = vsel %vm1112, %v1796, %v1797
        %v1799 = vrot.slane %v1785, 3
        %v1800 = vsel %vm1112, %v1794, %v1799
        %v1801 = vrot.slane %v1786, 3
        %v1802 = vsel %vm1112, %v1797, %v1801
        %v1807 = vadd.f32 %v1727, %v1795
        %v1808 = vadd.f32 %v1728, %v1798
        %v1809 = vadd.f32 %v1729, %v1800
        %v1810 = vadd.f32 %v1730, %v1802
        %v1811 = vmul.f32 %v250, 0.34
        %v1812 = vmul.f32 %v251, 0.34
        %v1813 = vmul.f32 %v252, 0.34
        %v1814 = vmul.f32 %v253, 0.34
        %v1815 = vmul.f32 %v254, 0.34
        %v1816 = vmul.f32 %v255, 0.34
        %v1817 = vmul.f32 %v263, -0.6
        %v1818 = vmul.f32 %v264, -0.6
        %v1819 = vmul.f32 %v265, -0.6
        %v1820 = vmul.f32 %v266, -0.6
        %v1821 = vmul.f32 %v267, -0.6
        %v1822 = vmul.f32 %v268, -0.6
        %v1823 = vadd.f32 %v1811, %v1817
        %v1824 = vadd.f32 %v1812, %v1818
        %v1825 = vadd.f32 %v1813, %v1819
        %v1826 = vadd.f32 %v1814, %v1820
        %v1827 = vadd.f32 %v1815, %v1821
        %v1828 = vadd.f32 %v1816, %v1822
        %v1829 = vmul.f32 %v282, 0.17
        %v1830 = vmul.f32 %v283, 0.17
        %v1831 = vmul.f32 %v284, 0.17
        %v1832 = vmul.f32 %v285, 0.17
        %v1833 = vmul.f32 %v286, 0.17
        %v1834 = vmul.f32 %v287, 0.17
        %v1835 = vadd.f32 %v1823, %v1829
        %v1836 = vadd.f32 %v1824, %v1830
        %v1837 = vadd.f32 %v1825, %v1831
        %v1838 = vadd.f32 %v1826, %v1832
        %v1839 = vadd.f32 %v1827, %v1833
        %v1840 = vadd.f32 %v1828, %v1834
        %v1841 = vmul.f32 %v300, %v1835
        %v1842 = vmul.f32 %v300, %v1836
        %v1843 = vmul.f32 %v300, %v1837
        %v1844 = vmul.f32 %v300, %v1838
        %v1845 = vmul.f32 %v300, %v1839
        %v1846 = vmul.f32 %v300, %v1840
        %1853 = vrot.lane.b32.xlu0 %v1835, 120
        %v1854 = vpop.permute.xlu0 %1853
        %1855 = vrot.lane.b32.xlu0 %v1836, 120
        %v1856 = vpop.permute.xlu0 %1855
        %1857 = vrot.lane.b32.xlu0 %v1837, 120
        %v1858 = vpop.permute.xlu0 %1857
        %1859 = vrot.lane.b32.xlu0 %v1838, 120
        %v1860 = vpop.permute.xlu0 %1859
        %1861 = vrot.lane.b32.xlu0 %v1839, 120
        %v1862 = vpop.permute.xlu0 %1861
        %1863 = vrot.lane.b32.xlu0 %v1840, 120
        %v1864 = vpop.permute.xlu0 %1863
        %v1865 = vsel %vm325, %v1854, %v1856
        %v1866 = vsel %vm325, %v1858, %v1860
        %v1867 = vsel %vm325, %v1862, %v1864
        %v1871 = vadd.f32 %v1835, %v1865
        %v1872 = vadd.f32 %v1837, %v1866
        %v1873 = vadd.f32 %v1839, %v1867
        %v1874 = vmul.f32 %v335, %v1871
        %v1875 = vmul.f32 %v335, %v1872
        %v1876 = vmul.f32 %v335, %v1873
        %1880 = vrot.lane.b32.xlu0 %v1874, 4
        %v1881 = vpop.permute.xlu0 %1880
        %1882 = vrot.lane.b32.xlu0 %v1875, 4
        %v1883 = vpop.permute.xlu0 %1882
        %1884 = vrot.lane.b32.xlu0 %v1876, 4
        %v1885 = vpop.permute.xlu0 %1884
        %v1889 = vadd.f32 %v1841, %v1881
        %v1890 = vadd.f32 %v1842, %v1881
        %v1891 = vadd.f32 %v1843, %v1883
        %v1892 = vadd.f32 %v1844, %v1883
        %v1893 = vadd.f32 %v1845, %v1885
        %v1894 = vadd.f32 %v1846, %v1885
        %v1895 = vsub.f32 %v1835, %v1865
        %v1896 = vsub.f32 %v1837, %v1866
        %v1897 = vsub.f32 %v1839, %v1867
        %v1898 = vmul.f32 %v360, %v1895
        %v1899 = vmul.f32 %v360, %v1896
        %v1900 = vmul.f32 %v360, %v1897
        %1901 = vrot.lane.b32.xlu0 %v1835, 122
        %v1902 = vpop.permute.xlu0 %1901
        %1903 = vrot.lane.b32.xlu0 %v1836, 122
        %v1904 = vpop.permute.xlu0 %1903
        %1905 = vrot.lane.b32.xlu0 %v1837, 122
        %v1906 = vpop.permute.xlu0 %1905
        %1907 = vrot.lane.b32.xlu0 %v1838, 122
        %v1908 = vpop.permute.xlu0 %1907
        %1909 = vrot.lane.b32.xlu0 %v1839, 122
        %v1910 = vpop.permute.xlu0 %1909
        %1911 = vrot.lane.b32.xlu0 %v1840, 122
        %v1912 = vpop.permute.xlu0 %1911
        %v1913 = vsel %vm376, %v1902, %v1904
        %v1914 = vsel %vm376, %v1906, %v1908
        %v1915 = vsel %vm376, %v1910, %v1912
        %v1922 = vadd.f32 %v1835, %v1913
        %v1923 = vadd.f32 %v1836, %v1904
        %v1924 = vadd.f32 %v1837, %v1914
        %v1925 = vadd.f32 %v1838, %v1908
        %v1926 = vadd.f32 %v1839, %v1915
        %v1927 = vadd.f32 %v1840, %v1912
        %v1928 = vmul.f32 %v392, %v1922
        %v1929 = vmul.f32 %v392, %v1923
        %v1930 = vmul.f32 %v392, %v1924
        %v1931 = vmul.f32 %v392, %v1925
        %v1932 = vmul.f32 %v392, %v1926
        %v1933 = vmul.f32 %v392, %v1927
        %1940 = vrot.lane.b32.xlu0 %v1928, 3
        %v1941 = vpop.permute.xlu0 %1940
        %1942 = vrot.lane.b32.xlu0 %v1929, 3
        %v1943 = vpop.permute.xlu0 %1942
        %1944 = vrot.lane.b32.xlu0 %v1930, 3
        %v1945 = vpop.permute.xlu0 %1944
        %1946 = vrot.lane.b32.xlu0 %v1931, 3
        %v1947 = vpop.permute.xlu0 %1946
        %1948 = vrot.lane.b32.xlu0 %v1932, 3
        %v1949 = vpop.permute.xlu0 %1948
        %1950 = vrot.lane.b32.xlu0 %v1933, 3
        %v1951 = vpop.permute.xlu0 %1950
        %v1952 = vsel %vm417, %v1941, %v1943
        %v1953 = vsel %vm417, %v1945, %v1947
        %v1954 = vsel %vm417, %v1949, %v1951
        %v1961 = vadd.f32 %v1889, %v1941
        %v1962 = vadd.f32 %v1890, %v1952
        %v1963 = vadd.f32 %v1891, %v1945
        %v1964 = vadd.f32 %v1892, %v1953
        %v1965 = vadd.f32 %v1893, %v1949
        %v1966 = vadd.f32 %v1894, %v1954
        %v1967 = vsub.f32 %v1835, %v1913
        %v1968 = vsub.f32 %v1836, %v1904
        %v1969 = vsub.f32 %v1837, %v1914
        %v1970 = vsub.f32 %v1838, %v1908
        %v1971 = vsub.f32 %v1839, %v1915
        %v1972 = vsub.f32 %v1840, %v1912
        %v1973 = vmul.f32 %v439, %v1967
        %v1974 = vmul.f32 %v439, %v1968
        %v1975 = vmul.f32 %v439, %v1969
        %v1976 = vmul.f32 %v439, %v1970
        %v1977 = vmul.f32 %v439, %v1971
        %v1978 = vmul.f32 %v439, %v1972
        %1985 = vrot.lane.b32.xlu0 %v1973, 127
        %v1986 = vpop.permute.xlu0 %1985
        %1987 = vrot.lane.b32.xlu0 %v1974, 127
        %v1988 = vpop.permute.xlu0 %1987
        %1989 = vrot.lane.b32.xlu0 %v1975, 127
        %v1990 = vpop.permute.xlu0 %1989
        %1991 = vrot.lane.b32.xlu0 %v1976, 127
        %v1992 = vpop.permute.xlu0 %1991
        %1993 = vrot.lane.b32.xlu0 %v1977, 127
        %v1994 = vpop.permute.xlu0 %1993
        %1995 = vrot.lane.b32.xlu0 %v1978, 127
        %v1996 = vpop.permute.xlu0 %1995
        %v1997 = vsel %vm464, %v1986, %v1988
        %v1998 = vsel %vm464, %v1990, %v1992
        %v1999 = vsel %vm464, %v1994, %v1996
        %v2003 = vadd.f32 %v1898, %v1997
        %v2004 = vadd.f32 %v1899, %v1998
        %v2005 = vadd.f32 %v1900, %v1999
        %2006 = vrot.lane.b32.xlu0 %v1835, 124
        %v2007 = vpop.permute.xlu0 %2006
        %2008 = vrot.lane.b32.xlu0 %v1836, 124
        %v2009 = vpop.permute.xlu0 %2008
        %2010 = vrot.lane.b32.xlu0 %v1837, 124
        %v2011 = vpop.permute.xlu0 %2010
        %2012 = vrot.lane.b32.xlu0 %v1838, 124
        %v2013 = vpop.permute.xlu0 %2012
        %2014 = vrot.lane.b32.xlu0 %v1839, 124
        %v2015 = vpop.permute.xlu0 %2014
        %2016 = vrot.lane.b32.xlu0 %v1840, 124
        %v2017 = vpop.permute.xlu0 %2016
        %v2018 = vsel %vm486, %v2007, %v2009
        %v2019 = vsel %vm486, %v2011, %v2013
        %v2020 = vsel %vm486, %v2015, %v2017
        %v2027 = vadd.f32 %v1835, %v2018
        %v2028 = vadd.f32 %v1836, %v2009
        %v2029 = vadd.f32 %v1837, %v2019
        %v2030 = vadd.f32 %v1838, %v2013
        %v2031 = vadd.f32 %v1839, %v2020
        %v2032 = vadd.f32 %v1840, %v2017
        %v2033 = vmul.f32 %v502, %v2027
        %v2034 = vmul.f32 %v502, %v2028
        %v2035 = vmul.f32 %v502, %v2029
        %v2036 = vmul.f32 %v502, %v2030
        %v2037 = vmul.f32 %v502, %v2031
        %v2038 = vmul.f32 %v502, %v2032
        %2045 = vrot.lane.b32.xlu0 %v2033, 2
        %v2046 = vpop.permute.xlu0 %2045
        %2047 = vrot.lane.b32.xlu0 %v2034, 2
        %v2048 = vpop.permute.xlu0 %2047
        %2049 = vrot.lane.b32.xlu0 %v2035, 2
        %v2050 = vpop.permute.xlu0 %2049
        %2051 = vrot.lane.b32.xlu0 %v2036, 2
        %v2052 = vpop.permute.xlu0 %2051
        %2053 = vrot.lane.b32.xlu0 %v2037, 2
        %v2054 = vpop.permute.xlu0 %2053
        %2055 = vrot.lane.b32.xlu0 %v2038, 2
        %v2056 = vpop.permute.xlu0 %2055
        %v2057 = vsel %vm527, %v2046, %v2048
        %v2058 = vsel %vm527, %v2050, %v2052
        %v2059 = vsel %vm527, %v2054, %v2056
        %v2066 = vadd.f32 %v1961, %v2046
        %v2067 = vadd.f32 %v1962, %v2057
        %v2068 = vadd.f32 %v1963, %v2050
        %v2069 = vadd.f32 %v1964, %v2058
        %v2070 = vadd.f32 %v1965, %v2054
        %v2071 = vadd.f32 %v1966, %v2059
        %v2072 = vsub.f32 %v1835, %v2018
        %v2073 = vsub.f32 %v1836, %v2009
        %v2074 = vsub.f32 %v1837, %v2019
        %v2075 = vsub.f32 %v1838, %v2013
        %v2076 = vsub.f32 %v1839, %v2020
        %v2077 = vsub.f32 %v1840, %v2017
        %v2078 = vmul.f32 %v549, %v2072
        %v2079 = vmul.f32 %v549, %v2073
        %v2080 = vmul.f32 %v549, %v2074
        %v2081 = vmul.f32 %v549, %v2075
        %v2082 = vmul.f32 %v549, %v2076
        %v2083 = vmul.f32 %v549, %v2077
        %2090 = vrot.lane.b32.xlu0 %v2078, 126
        %v2091 = vpop.permute.xlu0 %2090
        %2092 = vrot.lane.b32.xlu0 %v2079, 126
        %v2093 = vpop.permute.xlu0 %2092
        %2094 = vrot.lane.b32.xlu0 %v2080, 126
        %v2095 = vpop.permute.xlu0 %2094
        %2096 = vrot.lane.b32.xlu0 %v2081, 126
        %v2097 = vpop.permute.xlu0 %2096
        %2098 = vrot.lane.b32.xlu0 %v2082, 126
        %v2099 = vpop.permute.xlu0 %2098
        %2100 = vrot.lane.b32.xlu0 %v2083, 126
        %v2101 = vpop.permute.xlu0 %2100
        %v2102 = vsel %vm574, %v2091, %v2093
        %v2103 = vsel %vm574, %v2095, %v2097
        %v2104 = vsel %vm574, %v2099, %v2101
        %v2108 = vadd.f32 %v2003, %v2102
        %v2109 = vadd.f32 %v2004, %v2103
        %v2110 = vadd.f32 %v2005, %v2104
        %2111 = vrot.lane.b32.xlu0 %v1835, 126
        %v2112 = vpop.permute.xlu0 %2111
        %2113 = vrot.lane.b32.xlu0 %v1836, 126
        %v2114 = vpop.permute.xlu0 %2113
        %2115 = vrot.lane.b32.xlu0 %v1837, 126
        %v2116 = vpop.permute.xlu0 %2115
        %2117 = vrot.lane.b32.xlu0 %v1838, 126
        %v2118 = vpop.permute.xlu0 %2117
        %2119 = vrot.lane.b32.xlu0 %v1839, 126
        %v2120 = vpop.permute.xlu0 %2119
        %2121 = vrot.lane.b32.xlu0 %v1840, 126
        %v2122 = vpop.permute.xlu0 %2121
        %v2123 = vsel %vm574, %v2112, %v2114
        %v2124 = vsel %vm574, %v2116, %v2118
        %v2125 = vsel %vm574, %v2120, %v2122
        %v2132 = vadd.f32 %v1835, %v2123
        %v2133 = vadd.f32 %v1836, %v2114
        %v2134 = vadd.f32 %v1837, %v2124
        %v2135 = vadd.f32 %v1838, %v2118
        %v2136 = vadd.f32 %v1839, %v2125
        %v2137 = vadd.f32 %v1840, %v2122
        %v2138 = vmul.f32 %v611, %v2132
        %v2139 = vmul.f32 %v611, %v2133
        %v2140 = vmul.f32 %v611, %v2134
        %v2141 = vmul.f32 %v611, %v2135
        %v2142 = vmul.f32 %v611, %v2136
        %v2143 = vmul.f32 %v611, %v2137
        %2150 = vrot.lane.b32.xlu0 %v2138, 1
        %v2151 = vpop.permute.xlu0 %2150
        %2152 = vrot.lane.b32.xlu0 %v2139, 1
        %v2153 = vpop.permute.xlu0 %2152
        %2154 = vrot.lane.b32.xlu0 %v2140, 1
        %v2155 = vpop.permute.xlu0 %2154
        %2156 = vrot.lane.b32.xlu0 %v2141, 1
        %v2157 = vpop.permute.xlu0 %2156
        %2158 = vrot.lane.b32.xlu0 %v2142, 1
        %v2159 = vpop.permute.xlu0 %2158
        %2160 = vrot.lane.b32.xlu0 %v2143, 1
        %v2161 = vpop.permute.xlu0 %2160
        %v2162 = vsel %vm636, %v2151, %v2153
        %v2163 = vsel %vm636, %v2155, %v2157
        %v2164 = vsel %vm636, %v2159, %v2161
        %v2171 = vadd.f32 %v2066, %v2151
        %v2172 = vadd.f32 %v2067, %v2162
        %v2173 = vadd.f32 %v2068, %v2155
        %v2174 = vadd.f32 %v2069, %v2163
        %v2175 = vadd.f32 %v2070, %v2159
        %v2176 = vadd.f32 %v2071, %v2164
        %v2177 = vsub.f32 %v1835, %v2123
        %v2178 = vsub.f32 %v1836, %v2114
        %v2179 = vsub.f32 %v1837, %v2124
        %v2180 = vsub.f32 %v1838, %v2118
        %v2181 = vsub.f32 %v1839, %v2125
        %v2182 = vsub.f32 %v1840, %v2122
        %v2183 = vmul.f32 %v658, %v2177
        %v2184 = vmul.f32 %v658, %v2178
        %v2185 = vmul.f32 %v658, %v2179
        %v2186 = vmul.f32 %v658, %v2180
        %v2187 = vmul.f32 %v658, %v2181
        %v2188 = vmul.f32 %v658, %v2182
        %2195 = vrot.lane.b32.xlu0 %v2183, 125
        %v2196 = vpop.permute.xlu0 %2195
        %2197 = vrot.lane.b32.xlu0 %v2184, 125
        %v2198 = vpop.permute.xlu0 %2197
        %2199 = vrot.lane.b32.xlu0 %v2185, 125
        %v2200 = vpop.permute.xlu0 %2199
        %2201 = vrot.lane.b32.xlu0 %v2186, 125
        %v2202 = vpop.permute.xlu0 %2201
        %2203 = vrot.lane.b32.xlu0 %v2187, 125
        %v2204 = vpop.permute.xlu0 %2203
        %2205 = vrot.lane.b32.xlu0 %v2188, 125
        %v2206 = vpop.permute.xlu0 %2205
        %v2207 = vsel %vm683, %v2196, %v2198
        %v2208 = vsel %vm683, %v2200, %v2202
        %v2209 = vsel %vm683, %v2204, %v2206
        %v2213 = vadd.f32 %v2108, %v2207
        %v2214 = vadd.f32 %v2109, %v2208
        %v2215 = vadd.f32 %v2110, %v2209
        %v2216 = vmul.f32 %v300, %v2213
        %v2217 = vmul.f32 %v300, %v2214
        %v2218 = vmul.f32 %v300, %v2215
        %v2219 = vadd.f32 %v2213, %v2214
        %v2220 = vadd.f32 %v2214, %v2215
        %v2221 = vmul.f32 %v335, %v2219
        %v2222 = vmul.f32 %v335, %v2220
        %v2225 = vrot.slane %v2221, 4
        %v2226 = vrot.slane %v2222, 4
        %v2227 = vsel %vm714, %v2225, %v2226
        %v2231 = vadd.f32 %v2216, %v2225
        %v2232 = vadd.f32 %v2217, %v2227
        %v2233 = vadd.f32 %v2218, %v2226
        %v2234 = vsub.f32 %v2171, %v2173
        %v2235 = vsub.f32 %v2172, %v2174
        %v2236 = vsub.f32 %v2173, %v2175
        %v2237 = vsub.f32 %v2174, %v2176
        %v2238 = vmul.f32 %v360, %v2234
        %v2239 = vmul.f32 %v360, %v2235
        %v2240 = vmul.f32 %v360, %v2236
        %v2241 = vmul.f32 %v360, %v2237
        %v2245 = vrot.slane %v2213, 6
        %v2246 = vrot.slane %v2214, 6
        %v2247 = vsel %vm762, %v2245, %v2246
        %v2248 = vrot.slane %v2215, 6
        %v2249 = vsel %vm762, %v2246, %v2248
        %v2253 = vadd.f32 %v2213, %v2247
        %v2254 = vadd.f32 %v2214, %v2249
        %v2255 = vadd.f32 %v2215, %v2248
        %v2256 = vmul.f32 %v392, %v2253
        %v2257 = vmul.f32 %v392, %v2254
        %v2258 = vmul.f32 %v392, %v2255
        %v2262 = vrot.slane %v2256, 5
        %v2263 = vrot.slane %v2257, 5
        %v2264 = vsel %vm797, %v2262, %v2263
        %v2265 = vrot.slane %v2258, 5
        %v2266 = vsel %vm797, %v2263, %v2265
        %v2270 = vadd.f32 %v2231, %v2262
        %v2271 = vadd.f32 %v2232, %v2264
        %v2272 = vadd.f32 %v2233, %v2266
        %v2279 = vrot.slane %v2171, 6
        %v2280 = vrot.slane %v2173, 6
        %v2281 = vsel %vm762, %v2279, %v2280
        %v2282 = vrot.slane %v2172, 6
        %v2283 = vrot.slane %v2174, 6
        %v2284 = vsel %vm762, %v2282, %v2283
        %v2285 = vrot.slane %v2175, 6
        %v2286 = vsel %vm762, %v2280, %v2285
        %v2287 = vrot.slane %v2176, 6
        %v2288 = vsel %vm762, %v2283, %v2287
        %v2295 = vsub.f32 %v2171, %v2281
        %v2296 = vsub.f32 %v2172, %v2284
        %v2297 = vsub.f32 %v2173, %v2286
        %v2298 = vsub.f32 %v2174, %v2288
        %v2299 = vsub.f32 %v2175, %v2285
        %v2300 = vsub.f32 %v2176, %v2287
        %v2301 = vmul.f32 %v439, %v2295
        %v2302 = vmul.f32 %v439, %v2296
        %v2303 = vmul.f32 %v439, %v2297
        %v2304 = vmul.f32 %v439, %v2298
        %v2305 = vmul.f32 %v439, %v2299
        %v2306 = vmul.f32 %v439, %v2300
        %v2313 = vrot.slane %v2301, 1
        %v2314 = vrot.slane %v2303, 1
        %v2315 = vsel %vm869, %v2313, %v2314
        %v2316 = vrot.slane %v2302, 1
        %v2317 = vrot.slane %v2304, 1
        %v2318 = vsel %vm869, %v2316, %v2317
        %v2319 = vrot.slane %v2305, 1
        %v2320 = vsel %vm869, %v2314, %v2319
        %v2321 = vrot.slane %v2306, 1
        %v2322 = vsel %vm869, %v2317, %v2321
        %v2327 = vadd.f32 %v2238, %v2315
        %v2328 = vadd.f32 %v2239, %v2318
        %v2329 = vadd.f32 %v2240, %v2320
        %v2330 = vadd.f32 %v2241, %v2322
        %v2331 = vrot.slane %v2213, 4
        %v2332 = vrot.slane %v2214, 4
        %v2333 = vsel %vm714, %v2331, %v2332
        %v2334 = vrot.slane %v2215, 4
        %v2335 = vsel %vm714, %v2332, %v2334
        %v2339 = vadd.f32 %v2213, %v2333
        %v2340 = vadd.f32 %v2214, %v2335
        %v2341 = vadd.f32 %v2215, %v2334
        %v2342 = vmul.f32 %v502, %v2339
        %v2343 = vmul.f32 %v502, %v2340
        %v2344 = vmul.f32 %v502, %v2341
        %v2348 = vrot.slane %v2342, 6
        %v2349 = vrot.slane %v2343, 6
        %v2350 = vsel %vm762, %v2348, %v2349
        %v2351 = vrot.slane %v2344, 6
        %v2352 = vsel %vm762, %v2349, %v2351
        %v2356 = vadd.f32 %v2270, %v2348
        %v2357 = vadd.f32 %v2271, %v2350
        %v2358 = vadd.f32 %v2272, %v2352
        %v2359 = vrot.slane %v2171, 4
        %v2360 = vrot.slane %v2173, 4
        %v2361 = vsel %vm714, %v2359, %v2360
        %v2362 = vrot.slane %v2172, 4
        %v2363 = vrot.slane %v2174, 4
        %v2364 = vsel %vm714, %v2362, %v2363
        %v2365 = vrot.slane %v2175, 4
        %v2366 = vsel %vm714, %v2360, %v2365
        %v2367 = vrot.slane %v2176, 4
        %v2368 = vsel %vm714, %v2363, %v2367
        %v2375 = vsub.f32 %v2171, %v2361
        %v2376 = vsub.f32 %v2172, %v2364
        %v2377 = vsub.f32 %v2173, %v2366
        %v2378 = vsub.f32 %v2174, %v2368
        %v2379 = vsub.f32 %v2175, %v2365
        %v2380 = vsub.f32 %v2176, %v2367
        %v2381 = vmul.f32 %v549, %v2375
        %v2382 = vmul.f32 %v549, %v2376
        %v2383 = vmul.f32 %v549, %v2377
        %v2384 = vmul.f32 %v549, %v2378
        %v2385 = vmul.f32 %v549, %v2379
        %v2386 = vmul.f32 %v549, %v2380
        %v2393 = vrot.slane %v2381, 2
        %v2394 = vrot.slane %v2383, 2
        %v2395 = vsel %vm990, %v2393, %v2394
        %v2396 = vrot.slane %v2382, 2
        %v2397 = vrot.slane %v2384, 2
        %v2398 = vsel %vm990, %v2396, %v2397
        %v2399 = vrot.slane %v2385, 2
        %v2400 = vsel %vm990, %v2394, %v2399
        %v2401 = vrot.slane %v2386, 2
        %v2402 = vsel %vm990, %v2397, %v2401
        %v2407 = vadd.f32 %v2327, %v2395
        %v2408 = vadd.f32 %v2328, %v2398
        %v2409 = vadd.f32 %v2329, %v2400
        %v2410 = vadd.f32 %v2330, %v2402
        %v2411 = vrot.slane %v2213, 2
        %v2412 = vrot.slane %v2214, 2
        %v2413 = vsel %vm990, %v2411, %v2412
        %v2414 = vrot.slane %v2215, 2
        %v2415 = vsel %vm990, %v2412, %v2414
        %v2419 = vadd.f32 %v2213, %v2413
        %v2420 = vadd.f32 %v2214, %v2415
        %v2421 = vadd.f32 %v2215, %v2414
        %v2422 = vmul.f32 %v611, %v2419
        %v2423 = vmul.f32 %v611, %v2420
        %v2424 = vmul.f32 %v611, %v2421
        %v2428 = vrot.slane %v2422, 7
        %v2429 = vrot.slane %v2423, 7
        %v2430 = vsel %vm1043, %v2428, %v2429
        %v2431 = vrot.slane %v2424, 7
        %v2432 = vsel %vm1043, %v2429, %v2431
        %v2436 = vadd.f32 %v2356, %v2428
        %v2437 = vadd.f32 %v2357, %v2430
        %v2438 = vadd.f32 %v2358, %v2432
        %v2439 = vrot.slane %v2171, 2
        %v2440 = vrot.slane %v2173, 2
        %v2441 = vsel %vm990, %v2439, %v2440
        %v2442 = vrot.slane %v2172, 2
        %v2443 = vrot.slane %v2174, 2
        %v2444 = vsel %vm990, %v2442, %v2443
        %v2445 = vrot.slane %v2175, 2
        %v2446 = vsel %vm990, %v2440, %v2445
        %v2447 = vrot.slane %v2176, 2
        %v2448 = vsel %vm990, %v2443, %v2447
        %v2455 = vsub.f32 %v2171, %v2441
        %v2456 = vsub.f32 %v2172, %v2444
        %v2457 = vsub.f32 %v2173, %v2446
        %v2458 = vsub.f32 %v2174, %v2448
        %v2459 = vsub.f32 %v2175, %v2445
        %v2460 = vsub.f32 %v2176, %v2447
        %v2461 = vmul.f32 %v658, %v2455
        %v2462 = vmul.f32 %v658, %v2456
        %v2463 = vmul.f32 %v658, %v2457
        %v2464 = vmul.f32 %v658, %v2458
        %v2465 = vmul.f32 %v658, %v2459
        %v2466 = vmul.f32 %v658, %v2460
        %v2473 = vrot.slane %v2461, 3
        %v2474 = vrot.slane %v2463, 3
        %v2475 = vsel %vm1112, %v2473, %v2474
        %v2476 = vrot.slane %v2462, 3
        %v2477 = vrot.slane %v2464, 3
        %v2478 = vsel %vm1112, %v2476, %v2477
        %v2479 = vrot.slane %v2465, 3
        %v2480 = vsel %vm1112, %v2474, %v2479
        %v2481 = vrot.slane %v2466, 3
        %v2482 = vsel %vm1112, %v2477, %v2481
        %v2487 = vadd.f32 %v2407, %v2475
        %v2488 = vadd.f32 %v2408, %v2478
        %v2489 = vadd.f32 %v2409, %v2480
        %v2490 = vadd.f32 %v2410, %v2482
        %v2491 = vadd.f32 %v1060, 1e-05
        %v2492 = vadd.f32 %v1061, 1e-05
        %v2493 = vadd.f32 %v1062, 1e-05
        %v2494 = vadd.f32 %v1063, 1e-05
        %v2495 = vadd.f32 %v1064, 1e-05
        %v2496 = vadd.f32 %v1065, 1e-05
        %v2497 = vrcp.pop %v2491
        %v2498 = vrcp.pop %v2492
        %v2499 = vrcp.pop %v2493
        %v2500 = vrcp.pop %v2494
        %v2501 = vrcp.pop %v2495
        %v2502 = vrcp.pop %v2496
        %v2503 = vmul.f32 %v2491, %v2497
        %v2504 = vmul.f32 %v2492, %v2498
        %v2505 = vmul.f32 %v2493, %v2499
        %v2506 = vmul.f32 %v2494, %v2500
        %v2507 = vmul.f32 %v2495, %v2501
        %v2508 = vmul.f32 %v2496, %v2502
        %v2509 = vsub.f32 2.0, %v2503
        %v2510 = vsub.f32 2.0, %v2504
        %v2511 = vsub.f32 2.0, %v2505
        %v2512 = vsub.f32 2.0, %v2506
        %v2513 = vsub.f32 2.0, %v2507
        %v2514 = vsub.f32 2.0, %v2508
        %v2515 = vmul.f32 %v2497, %v2509
        %v2516 = vmul.f32 %v2498, %v2510
        %v2517 = vmul.f32 %v2499, %v2511
        %v2518 = vmul.f32 %v2500, %v2512
        %v2519 = vmul.f32 %v2501, %v2513
        %v2520 = vmul.f32 %v2502, %v2514
        %v2527 = vrot.slane %v2515, 4
        %v2528 = vrot.slane %v2517, 4
        %v2529 = vsel %vm714, %v2527, %v2528
        %v2530 = vrot.slane %v2516, 4
        %v2531 = vrot.slane %v2518, 4
        %v2532 = vsel %vm714, %v2530, %v2531
        %v2533 = vrot.slane %v2519, 4
        %v2534 = vsel %vm714, %v2528, %v2533
        %v2535 = vrot.slane %v2520, 4
        %v2536 = vsel %vm714, %v2531, %v2535
        %v2541 = vmul.f32 %v1127, %v2529
        %v2542 = vmul.f32 %v1128, %v2532
        %v2543 = vmul.f32 %v1129, %v2534
        %v2544 = vmul.f32 %v1130, %v2536
        %v2545 = vmul.f32 %v2541, %v2541
        %v2546 = vmul.f32 %v2542, %v2542
        %v2547 = vmul.f32 %v2543, %v2543
        %v2548 = vmul.f32 %v2544, %v2544
        %v2549 = vmul.f32 %v1807, %v2529
        %v2550 = vmul.f32 %v1808, %v2532
        %v2551 = vmul.f32 %v1809, %v2534
        %v2552 = vmul.f32 %v1810, %v2536
        %v2553 = vmul.f32 %v2549, %v2549
        %v2554 = vmul.f32 %v2550, %v2550
        %v2555 = vmul.f32 %v2551, %v2551
        %v2556 = vmul.f32 %v2552, %v2552
        %v2557 = vadd.f32 %v2545, %v2553
        %v2558 = vadd.f32 %v2546, %v2554
        %v2559 = vadd.f32 %v2547, %v2555
        %v2560 = vadd.f32 %v2548, %v2556
        %v2561 = vmul.f32 %v2487, %v2529
        %v2562 = vmul.f32 %v2488, %v2532
        %v2563 = vmul.f32 %v2489, %v2534
        %v2564 = vmul.f32 %v2490, %v2536
        %v2565 = vmul.f32 %v2561, %v2561
        %v2566 = vmul.f32 %v2562, %v2562
        %v2567 = vmul.f32 %v2563, %v2563
        %v2568 = vmul.f32 %v2564, %v2564
        %v2569 = vadd.f32 %v2557, %v2565
        %v2570 = vadd.f32 %v2558, %v2566
        %v2571 = vadd.f32 %v2559, %v2567
        %v2572 = vadd.f32 %v2560, %v2568
        %2573 = vrot.lane.b32.xlu0 %v2515, 124
        %v2574 = vpop.permute.xlu0 %2573
        %2575 = vrot.lane.b32.xlu0 %v2516, 124
        %v2576 = vpop.permute.xlu0 %2575
        %2577 = vrot.lane.b32.xlu0 %v2517, 124
        %v2578 = vpop.permute.xlu0 %2577
        %2579 = vrot.lane.b32.xlu0 %v2518, 124
        %v2580 = vpop.permute.xlu0 %2579
        %2581 = vrot.lane.b32.xlu0 %v2519, 124
        %v2582 = vpop.permute.xlu0 %2581
        %2583 = vrot.lane.b32.xlu0 %v2520, 124
        %v2584 = vpop.permute.xlu0 %2583
        %v2585 = vsel %vm486, %v2574, %v2576
        %v2586 = vsel %vm486, %v2578, %v2580
        %v2587 = vsel %vm486, %v2582, %v2584
        %v2591 = vmul.f32 %v1091, %v2585
        %v2592 = vmul.f32 %v1092, %v2586
        %v2593 = vmul.f32 %v1093, %v2587
        %v2594 = vmul.f32 %v2591, %v2591
        %v2595 = vmul.f32 %v2592, %v2592
        %v2596 = vmul.f32 %v2593, %v2593
        %v2600 = vrot.slane %v2594, 4
        %v2601 = vrot.slane %v2595, 4
        %v2602 = vsel %vm714, %v2600, %v2601
        %v2603 = vrot.slane %v2596, 4
        %v2604 = vsel %vm714, %v2601, %v2603
        %2605 = vrot.lane.b32.xlu0 %v2602, 4
        %v2606 = vpop.permute.xlu0 %2605
        %2607 = vrot.lane.b32.xlu0 %v2604, 4
        %v2608 = vpop.permute.xlu0 %2607
        %v2611 = vadd.f32 %v2569, %v2606
        %v2612 = vadd.f32 %v2570, %v2606
        %v2613 = vadd.f32 %v2571, %v2608
        %v2614 = vadd.f32 %v2572, %v2608
        %v2615 = vmul.f32 %v1756, %v2585
        %v2616 = vmul.f32 %v1757, %v2586
        %v2617 = vmul.f32 %v1758, %v2587
        %v2618 = vmul.f32 %v2615, %v2615
        %v2619 = vmul.f32 %v2616, %v2616
        %v2620 = vmul.f32 %v2617, %v2617
        %v2624 = vrot.slane %v2618, 4
        %v2625 = vrot.slane %v2619, 4
        %v2626 = vsel %vm714, %v2624, %v2625
        %v2627 = vrot.slane %v2620, 4
        %v2628 = vsel %vm714, %v2625, %v2627
        %2629 = vrot.lane.b32.xlu0 %v2626, 4
        %v2630 = vpop.permute.xlu0 %2629
        %2631 = vrot.lane.b32.xlu0 %v2628, 4
        %v2632 = vpop.permute.xlu0 %2631
        %v2635 = vadd.f32 %v2611, %v2630
        %v2636 = vadd.f32 %v2612, %v2630
        %v2637 = vadd.f32 %v2613, %v2632
        %v2638 = vadd.f32 %v2614, %v2632
        %v2639 = vmul.f32 %v2436, %v2585
        %v2640 = vmul.f32 %v2437, %v2586
        %v2641 = vmul.f32 %v2438, %v2587
        %v2642 = vmul.f32 %v2639, %v2639
        %v2643 = vmul.f32 %v2640, %v2640
        %v2644 = vmul.f32 %v2641, %v2641
        %v2648 = vrot.slane %v2642, 4
        %v2649 = vrot.slane %v2643, 4
        %v2650 = vsel %vm714, %v2648, %v2649
        %v2651 = vrot.slane %v2644, 4
        %v2652 = vsel %vm714, %v2649, %v2651
        %2653 = vrot.lane.b32.xlu0 %v2650, 4
        %v2654 = vpop.permute.xlu0 %2653
        %2655 = vrot.lane.b32.xlu0 %v2652, 4
        %v2656 = vpop.permute.xlu0 %2655
        %v2659 = vadd.f32 %v2635, %v2654
        %v2660 = vadd.f32 %v2636, %v2654
        %v2661 = vadd.f32 %v2637, %v2656
        %v2662 = vadd.f32 %v2638, %v2656
        %v2663 = vadd.f32 %v2659, 1e-05
        %v2664 = vadd.f32 %v2660, 1e-05
        %v2665 = vadd.f32 %v2661, 1e-05
        %v2666 = vadd.f32 %v2662, 1e-05
        %v2667 = vlog2.pop %v2663
        %v2668 = vmul.f32 %v2667, 0.6931472
        %v2669 = vlog2.pop %v2664
        %v2670 = vmul.f32 %v2669, 0.6931472
        %v2671 = vlog2.pop %v2665
        %v2672 = vmul.f32 %v2671, 0.6931472
        %v2673 = vlog2.pop %v2666
        %v2674 = vmul.f32 %v2673, 0.6931472
        %2679 = vrot.lane.b32.xlu0 %v2668, 124
        %v2680 = vpop.permute.xlu0 %2679
        %2681 = vrot.lane.b32.xlu0 %v2670, 124
        %v2682 = vpop.permute.xlu0 %2681
        %2683 = vrot.lane.b32.xlu0 %v2672, 124
        %v2684 = vpop.permute.xlu0 %2683
        %2685 = vrot.lane.b32.xlu0 %v2674, 124
        %v2686 = vpop.permute.xlu0 %2685
        %v2687 = vsel %vm486, %v2680, %v2682
        %v2688 = vsel %vm486, %v2684, %v2686
        %2691 = vst [vmem:[%s232] sm:$0xff] %v2687
        %2692 = vst [vmem:[%s232 + $0x8] sm:$0xff] %v2688
        %v2693 = vlaneseq
        %v2694 = vshrl.u32 %v2693, 7
        %v2695 = vadd.s32 %v2694, 8
        %s2696 = smul.u32 %s21, 16
        %v2697 = vstv %s2696
        %v2698 = vadd.s32 %v2694, %v2697
        %v2699 = vadd.s32 %v2695, %v2697
        %v2700 = vlaneseq
        %v2701 = vand.u32 %v2700, 127
        %vm2702 = vcmp.lt.s32.totalorder %v2698, 16
        %vm2703 = vcmp.lt.s32.totalorder %v2699, 16
        %vm2704 = vcmp.lt.s32.totalorder %v2701, 16
        %vm2705 = vmand %vm2702, %vm2704
        %vm2706 = vmand %vm2703, %vm2704
        %v2707 = vsel %vm2705, %v2687, 0.0
        %v2708 = vsel %vm2706, %v2688, 0.0
        %v2709 = vadd.f32 %v2707, %v2708
        %2710 = vadd.xlane.f32.xlu0 %v2709
        %v2711 = vpop.xlane.xlu0 %2710
        %v2712 = vrot.slane %v2711, 4
        %v2713 = vadd.f32 %v2711, %v2712
        %v2714 = vrot.slane %v2713, 2
        %v2715 = vadd.f32 %v2713, %v2714
        %v2716 = vrot.slane %v2715, 1
        %v2717 = vadd.f32 %v2715, %v2716
        %s2718 = vtos %v2717
        %v2719 = vmul.f32 %v2707, %v2707
        %v2720 = vmul.f32 %v2708, %v2708
        %v2721 = vadd.f32 %v2719, %v2720
        %2722 = vadd.xlane.f32.xlu0 %v2721
        %v2723 = vpop.xlane.xlu0 %2722
        %v2724 = vrot.slane %v2723, 4
        %v2725 = vadd.f32 %v2723, %v2724
        %v2726 = vrot.slane %v2725, 2
        %v2727 = vadd.f32 %v2725, %v2726
        %v2728 = vrot.slane %v2727, 1
        %v2729 = vadd.f32 %v2727, %v2728
        %s2730 = vtos %v2729
        %vm2731 = vcmp.eq.s32.totalorder %v2694, 0
        %v2732 = vstv %s2718
        %v2733 = vstv %s2730
        %v2734 = vsel %vm2731, %v2732, %v2733
        %2735 = vst [vmem:[%s240] sm:$0x3] %v2734
        %s2736 = smul.u32 2, %s21
        %p2737 = scmp.lt.s32.totalorder %s20, 1
        %s2738 = scalar_select %p2737, %s20, 1
        %p2739 = scmp.lt.s32.totalorder %s2736, 1
        %s2740 = scalar_select %p2739, %s2736, 1
        %s2741 = smul.addr %s2738, 2
        %s2742 = sadd.s32 %s2740, %s2741
        %s2743 = smul.addr %s2742, 8
        %s2744 = scalar_lea.vmem %s2, %s2743
        %p2745 = scmp.lt.s32.totalorder %s20, 1
        %s2746 = scalar_select %p2745, %s20, 1
        %p2747 = scmp.lt.s32.totalorder %s21, 0
        %s2748 = scalar_select %p2747, %s21, 0
        %s2749 = sadd.s32 %s2748, %s2746
        %s2750 = smul.addr %s2749, 2
        %s2751 = scalar_lea.vmem %s3, %s2750
        // Predicated region
        $region33: #{_lambda_.2} parent=27 // pred_check
          %p2752 = pneg %p97
        $region34: #{_lambda_.2} parent=27 // pred_check_branch
          %2754 = sbr.rel (%p2752) target = $region36
        $region35: #{_lambda_.2} parent=27 // pred_region
          %s2755 = smul.u32 2, %s21
        $region36: #{_lambda_.2} parent=27 // pred_fallthru
          _
        // Predicated region
        $region37: #{_lambda_.2} parent=27 // pred_check
          %p2756 = pneg %p125
        $region38: #{_lambda_.2} parent=27 // pred_check_branch
          %2758 = sbr.rel (%p2756) target = $region40
        $region39: #{_lambda_.2} parent=27 // pred_region
          _
        $region40: #{_lambda_.2} parent=27 // pred_fallthru
          _
      $region28: #{_lambda_.2} parent=5 // pred_fallthru
        _
      %p2759 = scmp.le.s32.totalorder 2, %s11
      // Predicated region
      $region41: #{_lambda_.2} parent=5 // pred_check
        %p2760 = pneg %p2759
      $region42: #{_lambda_.2} parent=5 // pred_check_branch
        %2762 = sbr.rel (%p2760) target = $region44
      $region43: #{_lambda_.2} parent=5 // pred_region
        %s2763 = ssub.s32 %s11, 2
        // Predicated region
        $region45: #{_lambda_.2} parent=43 // pred_check
          %p2764 = pneg %p103
        $region46: #{_lambda_.2} parent=43 // pred_check_branch
          %2766 = sbr.rel (%p2764) target = $region48
        $region47: #{_lambda_.2} parent=43 // pred_region
          %s2767 = smul.u32 2, %s23
          %p2768 = scmp.lt.s32.totalorder %s22, 1
          %s2769 = scalar_select %p2768, %s22, 1
          %p2770 = scmp.lt.s32.totalorder %s2767, 1
          %s2771 = scalar_select %p2770, %s2767, 1
          %s2772 = smul.addr %s2769, 2
          %s2773 = sadd.s32 %s2771, %s2772
          %s2774 = smul.addr %s2773, 8
          %s2775 = scalar_lea.vmem %s2, %s2774
        $region48: #{_lambda_.2} parent=43 // pred_fallthru
          _
        // Predicated region
        $region49: #{_lambda_.2} parent=43 // pred_check
          %p2776 = pneg %p131
        $region50: #{_lambda_.2} parent=43 // pred_check_branch
          %2778 = sbr.rel (%p2776) target = $region52
        $region51: #{_lambda_.2} parent=43 // pred_region
          %p2779 = scmp.lt.s32.totalorder %s22, 1
          %s2780 = scalar_select %p2779, %s22, 1
          %p2781 = scmp.lt.s32.totalorder %s23, 0
          %s2782 = scalar_select %p2781, %s23, 0
          %s2783 = sadd.s32 %s2782, %s2780
          %s2784 = smul.addr %s2783, 2
          %s2785 = scalar_lea.vmem %s3, %s2784
        $region52: #{_lambda_.2} parent=43 // pred_fallthru
          _
      $region44: #{_lambda_.2} parent=5 // pred_fallthru
        _
    $region6: #{_lambda_.2} parent=1 // loop_footer
      %s15 = sadd.s32 1, %s11
    $region7: #{_lambda_.2} parent=1 // loop_footer_branch
      %10 = sbr.rel target = $region3
    $region8: #{_lambda_.2} parent=1 // loop_exit
      _
    %2786 = vsyncpa [#allocation3], 1
    %s2787 = scalar_lea.sflag [#allocation3], 1
    %2788 = vsyncpa %s2787, 1

</llo_original>
